<compile_context>
chip_gen: v7x
topology: tpu7x:2x2x1
jax: 0.10.0
libtpu: 0.0.40
codegen_flags: <defaults>
</compile_context>

<pallas_src>
import math

import jax
import jax.numpy as jnp
from jax import lax
from jax.experimental import pallas as pl
from jax.experimental.pallas import tpu as pltpu


def attention_kernel(qT_ref, ctxT_ref, w_in_ref, w_om_ref, w_oq_ref, aeab_ref,
                     out_ref, attw_ref, s_ref):
    L, D, tb = ctxT_ref.shape

    # --- linear_in (general attention): qp = q @ W_in^T  ->  qpT = W_in @ qT ------
    qpT = jnp.dot(w_in_ref[...], qT_ref[...],
                  preferred_element_type=jnp.float32)          # (D, tb)

    # --- pass 1: attention scores, streamed one (D, tb) context slab at a time ----
    # (statically unrolled; avoids materializing the (L, D, tb) product)
    for l in range(L):
        s_ref[l:l + 1, :] = jnp.sum(qpT * ctxT_ref[l], axis=0, keepdims=True)

    # --- softmax over query_len (axis 0); EXACT reciprocal for numerical parity ---
    sT = s_ref[...]                                            # (L, tb)
    m = jnp.max(sT, axis=0, keepdims=True)                     # (1, tb)
    e = jnp.exp(sT - m)                                        # (L, tb)
    denom = jnp.sum(e, axis=0, keepdims=True)                  # (1, tb)
    awT = e * (1.0 / denom)                                    # (L, tb)
    attw_ref[...] = awT                                        # lane-dense store

    # --- temporal decay, hoisted per-(l,b) factor: c = ae * exp(-ab * delta_t) ----
    ae = aeab_ref[0:1, :]                                      # (1, tb)
    ab = aeab_ref[1:2, :]                                      # (1, tb)
    iota_l = lax.broadcasted_iota(jnp.int32, (L, tb), 0).astype(jnp.float32)
    delta_t = jnp.float32(L - 1) - iota_l                      # (L, tb)
    c = ae * jnp.exp(-ab * delta_t)                            # (L, tb)

    # --- pass 2: sum_l [ relu(c * aw * ctx) + aw * ctx ], accumulated slab-wise ---
    acc = jnp.zeros((D, tb), jnp.float32)
    for l in range(L):
        mix_l = awT[l:l + 1, :] * ctxT_ref[l]                  # (D, tb)
        acc = acc + jnp.maximum(c[l:l + 1, :] * mix_l, 0.0) + mix_l

    # --- linear_out on concat([mix_sum, qp]) as two accumulated (D, D) matmuls ----
    outT = jnp.dot(w_om_ref[...], acc, preferred_element_type=jnp.float32)
    outT = outT + jnp.dot(w_oq_ref[...], qpT, preferred_element_type=jnp.float32)
    out_ref[...] = jnp.tanh(outT)                              # (D, tb) lane-dense


def _choose_block_b(B):
    """v7x has 2 TensorCores: use 2 grid blocks so the 'parallel' axis splits evenly
    across them; single-TC chips (v5e/v6e) use 3 smaller blocks (less padding, still
    enough grid steps to pipeline the HBM->VMEM DMA). Falls back cleanly off-TPU."""
    try:
        kind = jax.devices()[0].device_kind.lower()
    except Exception:
        kind = ""
    n_blocks = 2 if ("v7" in kind or "7x" in kind) else 3
    per_block = pl.cdiv(B, n_blocks)
    return max(128, int(pl.cdiv(per_block, 128)) * 128)


def attention_forward(query, context, w_in, w_out, ae, ab, *, block_b=None):
    """query: (B, 1, D), context: (B, L, D), w_in: (D, D), w_out: (D, 2D),
    ae/ab: (B, 1, 1).  Returns (output (B, 1, D), attention_weights (B, 1, L))."""
    B, O, D = query.shape
    assert O == 1, "module semantics require output_len == 1 (broadcast vs ae/ab)"
    L = context.shape[1]
    if block_b is None:
        block_b = _choose_block_b(B)
    assert block_b % 128 == 0, "batch tile must be lane-aligned"

    n_blocks = pl.cdiv(B, block_b)
    B_pad = n_blocks * block_b
    pad = B_pad - B

    # Batch-on-lanes layout. Each operand is ONE fused transpose+pad XLA op (no
    # zeros().at[].set() round trip).  Padded lanes are benign (uniform softmax over
    # zero scores, ae = ab = 0 -> no NaN/Inf) and trimmed below.
    # TODO(synk): callers that can keep query/context resident in this (..., B_pad)
    # batch-on-lanes layout across calls should pass it directly and skip these
    # per-call relayouts entirely (they are the largest remaining HBM consumer).
    qT = jnp.pad(query.reshape(B, D).T, ((0, 0), (0, pad)))                     # (D, B_pad)
    ctxT = jnp.pad(jnp.transpose(context, (1, 2, 0)),
                   ((0, 0), (0, 0), (0, pad)))                                  # (L, D, B_pad)
    aeab = jnp.pad(jnp.stack([ae.reshape(B), ab.reshape(B)], axis=0),
                   ((0, 6), (0, pad)))                                          # (8, B_pad)

    outT, attwT = pl.pallas_call(
        attention_kernel,
        out_shape=(jax.ShapeDtypeStruct((D, B_pad), jnp.float32),
                   jax.ShapeDtypeStruct((L, B_pad), jnp.float32)),
        grid=(n_blocks,),
        in_specs=[
            pl.BlockSpec((D, block_b), lambda i: (0, i)),         # qT
            pl.BlockSpec((L, D, block_b), lambda i: (0, 0, i)),   # ctxT
            pl.BlockSpec((D, D), lambda i: (0, 0)),               # W_in (out, in)
            pl.BlockSpec((D, D), lambda i: (0, 0)),               # W_out[:, :D]
            pl.BlockSpec((D, D), lambda i: (0, 0)),               # W_out[:, D:]
            pl.BlockSpec((8, block_b), lambda i: (0, i)),         # packed ae/ab
        ],
        out_specs=(pl.BlockSpec((D, block_b), lambda i: (0, i)),
                   pl.BlockSpec((L, block_b), lambda i: (0, i))),
        scratch_shapes=[pltpu.VMEM((L, block_b), jnp.float32)],   # score staging
        compiler_params=pltpu.CompilerParams(
            dimension_semantics=("parallel",)),
    )(qT, ctxT, w_in, w_out[:, :D], w_out[:, D:], aeab)

    out = outT[:, :B].T.reshape(B, O, D)
    attw = attwT[:, :B].T.reshape(B, O, L)
    return out, attw


def ref_forward(query, context, w_in, w_out, ae, ab):
    """Pure-JAX transliteration of the PyTorch forward (for verification)."""
    B, O, D = query.shape
    L = context.shape[1]
    q = (query.reshape(B * O, D) @ w_in.T).reshape(B, O, D)
    scores = jnp.einsum('bod,bld->bol', q, context)
    aw = jax.nn.softmax(scores.reshape(B * O, L), axis=-1).reshape(B, O, L)
    mix = aw * jnp.transpose(context, (0, 2, 1))          # (B, D, L)
    delta_t = jnp.flip(jnp.arange(L, dtype=jnp.float32))  # (L,)
    delta_t = jnp.broadcast_to(delta_t, (B, 1, L))
    bt = jnp.exp(-ab * delta_t)                           # (B, 1, L)
    term_2 = jax.nn.relu(ae * mix * bt)                   # (B, D, L)
    mix2 = jnp.sum(term_2 + mix, axis=-1)[:, None, :]     # (B, 1, D)
    combined = jnp.concatenate([mix2, q], axis=2).reshape(B * O, 2 * D)
    output = jnp.tanh((combined @ w_out.T).reshape(B, O, D))
    return output, aw


def xavier_normal(key, shape, fan_in, fan_out):
    std = math.sqrt(2.0 / (fan_in + fan_out))
    return std * jax.random.normal(key, shape, dtype=jnp.float32)


if __name__ == "__main__":
    B = 1026      # fixed by the module's ae/ab parameter shape (1026, 1, 1)
    D = 32        # dimensions
    L = 16        # query_len (context sequence length)
    O = 1         # output_len

    key = jax.random.PRNGKey(0)
    k1, k2, k3, k4, k5, k6 = jax.random.split(key, 6)

    # Deterministic parameter init (xavier_normal, matching reset_parameters()).
    w_in = xavier_normal(k1, (D, D), D, D)          # torch Linear weight layout (out, in)
    w_out = xavier_normal(k2, (D, 2 * D), 2 * D, D)
    ae = xavier_normal(k3, (B, 1, 1), 1, B)
    ab = xavier_normal(k4, (B, 1, 1), 1, B)

    query = jax.random.normal(k5, (B, O, D), dtype=jnp.float32)
    context = jax.random.normal(k6, (B, L, D), dtype=jnp.float32)

    out, attw = attention_forward(query, context, w_in, w_out, ae, ab)
    out = jax.block_until_ready(out)
    attw = jax.block_until_ready(attw)

    out_ref, attw_ref = ref_forward(query, context, w_in, w_out, ae, ab)
    assert out.shape == (B, O, D) and attw.shape == (B, O, L)
    assert jnp.allclose(out, out_ref, atol=2e-3, rtol=2e-3)
    assert jnp.allclose(attw, attw_ref, atol=2e-3, rtol=2e-3)

    print("KERNEL_OK")
</pallas_src>

<mosaic_0001>
module attributes {stable_mosaic.version = 11 : i64} {
  func.func @attention_kernel(%arg0: i32, %arg1: memref<32x384xf32, #tpu.memory_space<vmem>>, %arg2: memref<16x32x384xf32, #tpu.memory_space<vmem>>, %arg3: memref<32x32xf32, #tpu.memory_space<vmem>>, %arg4: memref<32x32xf32, #tpu.memory_space<vmem>>, %arg5: memref<32x32xf32, #tpu.memory_space<vmem>>, %arg6: memref<8x384xf32, #tpu.memory_space<vmem>>, %arg7: memref<32x384xf32, #tpu.memory_space<vmem>>, %arg8: memref<16x384xf32, #tpu.memory_space<vmem>>, %arg9: memref<16x384xf32, #tpu.memory_space<vmem>>) attributes {dimension_semantics = [#tpu.dimension_semantics<parallel>], iteration_bounds = array<i64: 3>, scalar_prefetch = 0 : i64, scratch_operands = 1 : i64, tpu.core_type = #tpu.core_type<tc>, window_params = [{transform_indices = @transform_0, window_bounds = array<i64: 32, 384>}, {transform_indices = @transform_1, window_bounds = array<i64: 16, 32, 384>}, {pipeline_mode = #tpu.pipeline_mode<synchronous>, transform_indices = @transform_2, window_bounds = array<i64: 32, 32>}, {pipeline_mode = #tpu.pipeline_mode<synchronous>, transform_indices = @transform_3, window_bounds = array<i64: 32, 32>}, {pipeline_mode = #tpu.pipeline_mode<synchronous>, transform_indices = @transform_4, window_bounds = array<i64: 32, 32>}, {transform_indices = @transform_5, window_bounds = array<i64: 8, 384>}, {transform_indices = @transform_6, window_bounds = array<i64: 32, 384>}, {transform_indices = @transform_7, window_bounds = array<i64: 16, 384>}]} {
    %c0 = arith.constant 0 : index
    %c0_0 = arith.constant 0 : index
    %0 = vector.load %arg3[%c0, %c0_0] : memref<32x32xf32, #tpu.memory_space<vmem>>, vector<32x32xf32>
    %c0_1 = arith.constant 0 : index
    %c0_2 = arith.constant 0 : index
    %1 = vector.load %arg1[%c0_1, %c0_2] : memref<32x384xf32, #tpu.memory_space<vmem>>, vector<32x384xf32>
    %cst = arith.constant dense<0.000000e+00> : vector<32x384xf32>
    %2 = tpu.matmul %0, %1, %cst {dimension_numbers = #tpu.dot_dimension_numbers<[1], [0], [0], [1], [0, 0, 1, 1], [], []>} : vector<32x32xf32>, vector<32x384xf32>, vector<32x384xf32> -> vector<32x384xf32>
    %c0_3 = arith.constant 0 : index
    %c0_4 = arith.constant 0 : index
    %c0_5 = arith.constant 0 : index
    %3 = vector.load %arg2[%c0_3, %c0_4, %c0_5] : memref<16x32x384xf32, #tpu.memory_space<vmem>>, vector<1x32x384xf32>
    %4 = vector.shape_cast %3 : vector<1x32x384xf32> to vector<32x384xf32>
    %5 = arith.mulf %2, %4 : vector<32x384xf32>
    %cst_6 = arith.constant dense<0.000000e+00> : vector<384xf32>
    %6 = vector.multi_reduction <add>, %5, %cst_6 [0] : vector<32x384xf32> to vector<384xf32>
    %7 = vector.shape_cast %6 : vector<384xf32> to vector<1x384xf32>
    %c0_7 = arith.constant 0 : index
    %c0_8 = arith.constant 0 : index
    %8 = vector.load %arg9[%c0_7, %c0_8] : memref<16x384xf32, #tpu.memory_space<vmem>>, vector<1x384xf32>
    tpu.vector_store %arg9[%c0_7, %c0_8], %7 {strides = array<i32>} : memref<16x384xf32, #tpu.memory_space<vmem>>, vector<1x384xf32>,
    %c1 = arith.constant 1 : index
    %c0_9 = arith.constant 0 : index
    %c0_10 = arith.constant 0 : index
    %9 = vector.load %arg2[%c1, %c0_9, %c0_10] : memref<16x32x384xf32, #tpu.memory_space<vmem>>, vector<1x32x384xf32>
    %10 = vector.shape_cast %9 : vector<1x32x384xf32> to vector<32x384xf32>
    %11 = arith.mulf %2, %10 : vector<32x384xf32>
    %cst_11 = arith.constant dense<0.000000e+00> : vector<384xf32>
    %12 = vector.multi_reduction <add>, %11, %cst_11 [0] : vector<32x384xf32> to vector<384xf32>
    %13 = vector.shape_cast %12 : vector<384xf32> to vector<1x384xf32>
    %c1_12 = arith.constant 1 : index
    %c0_13 = arith.constant 0 : index
    %14 = vector.load %arg9[%c1_12, %c0_13] : memref<16x384xf32, #tpu.memory_space<vmem>>, vector<1x384xf32>
    tpu.vector_store %arg9[%c1_12, %c0_13], %13 {strides = array<i32>} : memref<16x384xf32, #tpu.memory_space<vmem>>, vector<1x384xf32>,
    %c2 = arith.constant 2 : index
    %c0_14 = arith.constant 0 : index
    %c0_15 = arith.constant 0 : index
    %15 = vector.load %arg2[%c2, %c0_14, %c0_15] : memref<16x32x384xf32, #tpu.memory_space<vmem>>, vector<1x32x384xf32>
    %16 = vector.shape_cast %15 : vector<1x32x384xf32> to vector<32x384xf32>
    %17 = arith.mulf %2, %16 : vector<32x384xf32>
    %cst_16 = arith.constant dense<0.000000e+00> : vector<384xf32>
    %18 = vector.multi_reduction <add>, %17, %cst_16 [0] : vector<32x384xf32> to vector<384xf32>
    %19 = vector.shape_cast %18 : vector<384xf32> to vector<1x384xf32>
    %c2_17 = arith.constant 2 : index
    %c0_18 = arith.constant 0 : index
    %20 = vector.load %arg9[%c2_17, %c0_18] : memref<16x384xf32, #tpu.memory_space<vmem>>, vector<1x384xf32>
    tpu.vector_store %arg9[%c2_17, %c0_18], %19 {strides = array<i32>} : memref<16x384xf32, #tpu.memory_space<vmem>>, vector<1x384xf32>,
    %c3 = arith.constant 3 : index
    %c0_19 = arith.constant 0 : index
    %c0_20 = arith.constant 0 : index
    %21 = vector.load %arg2[%c3, %c0_19, %c0_20] : memref<16x32x384xf32, #tpu.memory_space<vmem>>, vector<1x32x384xf32>
    %22 = vector.shape_cast %21 : vector<1x32x384xf32> to vector<32x384xf32>
    %23 = arith.mulf %2, %22 : vector<32x384xf32>
    %cst_21 = arith.constant dense<0.000000e+00> : vector<384xf32>
    %24 = vector.multi_reduction <add>, %23, %cst_21 [0] : vector<32x384xf32> to vector<384xf32>
    %25 = vector.shape_cast %24 : vector<384xf32> to vector<1x384xf32>
    %c3_22 = arith.constant 3 : index
    %c0_23 = arith.constant 0 : index
    %26 = vector.load %arg9[%c3_22, %c0_23] : memref<16x384xf32, #tpu.memory_space<vmem>>, vector<1x384xf32>
    tpu.vector_store %arg9[%c3_22, %c0_23], %25 {strides = array<i32>} : memref<16x384xf32, #tpu.memory_space<vmem>>, vector<1x384xf32>,
    %c4 = arith.constant 4 : index
    %c0_24 = arith.constant 0 : index
    %c0_25 = arith.constant 0 : index
    %27 = vector.load %arg2[%c4, %c0_24, %c0_25] : memref<16x32x384xf32, #tpu.memory_space<vmem>>, vector<1x32x384xf32>
    %28 = vector.shape_cast %27 : vector<1x32x384xf32> to vector<32x384xf32>
    %29 = arith.mulf %2, %28 : vector<32x384xf32>
    %cst_26 = arith.constant dense<0.000000e+00> : vector<384xf32>
    %30 = vector.multi_reduction <add>, %29, %cst_26 [0] : vector<32x384xf32> to vector<384xf32>
    %31 = vector.shape_cast %30 : vector<384xf32> to vector<1x384xf32>
    %c4_27 = arith.constant 4 : index
    %c0_28 = arith.constant 0 : index
    %32 = vector.load %arg9[%c4_27, %c0_28] : memref<16x384xf32, #tpu.memory_space<vmem>>, vector<1x384xf32>
    tpu.vector_store %arg9[%c4_27, %c0_28], %31 {strides = array<i32>} : memref<16x384xf32, #tpu.memory_space<vmem>>, vector<1x384xf32>,
    %c5 = arith.constant 5 : index
    %c0_29 = arith.constant 0 : index
    %c0_30 = arith.constant 0 : index
    %33 = vector.load %arg2[%c5, %c0_29, %c0_30] : memref<16x32x384xf32, #tpu.memory_space<vmem>>, vector<1x32x384xf32>
    %34 = vector.shape_cast %33 : vector<1x32x384xf32> to vector<32x384xf32>
    %35 = arith.mulf %2, %34 : vector<32x384xf32>
    %cst_31 = arith.constant dense<0.000000e+00> : vector<384xf32>
    %36 = vector.multi_reduction <add>, %35, %cst_31 [0] : vector<32x384xf32> to vector<384xf32>
    %37 = vector.shape_cast %36 : vector<384xf32> to vector<1x384xf32>
    %c5_32 = arith.constant 5 : index
    %c0_33 = arith.constant 0 : index
    %38 = vector.load %arg9[%c5_32, %c0_33] : memref<16x384xf32, #tpu.memory_space<vmem>>, vector<1x384xf32>
    tpu.vector_store %arg9[%c5_32, %c0_33], %37 {strides = array<i32>} : memref<16x384xf32, #tpu.memory_space<vmem>>, vector<1x384xf32>,
    %c6 = arith.constant 6 : index
    %c0_34 = arith.constant 0 : index
    %c0_35 = arith.constant 0 : index
    %39 = vector.load %arg2[%c6, %c0_34, %c0_35] : memref<16x32x384xf32, #tpu.memory_space<vmem>>, vector<1x32x384xf32>
    %40 = vector.shape_cast %39 : vector<1x32x384xf32> to vector<32x384xf32>
    %41 = arith.mulf %2, %40 : vector<32x384xf32>
    %cst_36 = arith.constant dense<0.000000e+00> : vector<384xf32>
    %42 = vector.multi_reduction <add>, %41, %cst_36 [0] : vector<32x384xf32> to vector<384xf32>
    %43 = vector.shape_cast %42 : vector<384xf32> to vector<1x384xf32>
    %c6_37 = arith.constant 6 : index
    %c0_38 = arith.constant 0 : index
    %44 = vector.load %arg9[%c6_37, %c0_38] : memref<16x384xf32, #tpu.memory_space<vmem>>, vector<1x384xf32>
    tpu.vector_store %arg9[%c6_37, %c0_38], %43 {strides = array<i32>} : memref<16x384xf32, #tpu.memory_space<vmem>>, vector<1x384xf32>,
    %c7 = arith.constant 7 : index
    %c0_39 = arith.constant 0 : index
    %c0_40 = arith.constant 0 : index
    %45 = vector.load %arg2[%c7, %c0_39, %c0_40] : memref<16x32x384xf32, #tpu.memory_space<vmem>>, vector<1x32x384xf32>
    %46 = vector.shape_cast %45 : vector<1x32x384xf32> to vector<32x384xf32>
    %47 = arith.mulf %2, %46 : vector<32x384xf32>
    %cst_41 = arith.constant dense<0.000000e+00> : vector<384xf32>
    %48 = vector.multi_reduction <add>, %47, %cst_41 [0] : vector<32x384xf32> to vector<384xf32>
    %49 = vector.shape_cast %48 : vector<384xf32> to vector<1x384xf32>
    %c7_42 = arith.constant 7 : index
    %c0_43 = arith.constant 0 : index
    %50 = vector.load %arg9[%c7_42, %c0_43] : memref<16x384xf32, #tpu.memory_space<vmem>>, vector<1x384xf32>
    tpu.vector_store %arg9[%c7_42, %c0_43], %49 {strides = array<i32>} : memref<16x384xf32, #tpu.memory_space<vmem>>, vector<1x384xf32>,
    %c8 = arith.constant 8 : index
    %c0_44 = arith.constant 0 : index
    %c0_45 = arith.constant 0 : index
    %51 = vector.load %arg2[%c8, %c0_44, %c0_45] : memref<16x32x384xf32, #tpu.memory_space<vmem>>, vector<1x32x384xf32>
    %52 = vector.shape_cast %51 : vector<1x32x384xf32> to vector<32x384xf32>
    %53 = arith.mulf %2, %52 : vector<32x384xf32>
    %cst_46 = arith.constant dense<0.000000e+00> : vector<384xf32>
    %54 = vector.multi_reduction <add>, %53, %cst_46 [0] : vector<32x384xf32> to vector<384xf32>
    %55 = vector.shape_cast %54 : vector<384xf32> to vector<1x384xf32>
    %c8_47 = arith.constant 8 : index
    %c0_48 = arith.constant 0 : index
    %56 = vector.load %arg9[%c8_47, %c0_48] : memref<16x384xf32, #tpu.memory_space<vmem>>, vector<1x384xf32>
    tpu.vector_store %arg9[%c8_47, %c0_48], %55 {strides = array<i32>} : memref<16x384xf32, #tpu.memory_space<vmem>>, vector<1x384xf32>,
    %c9 = arith.constant 9 : index
    %c0_49 = arith.constant 0 : index
    %c0_50 = arith.constant 0 : index
    %57 = vector.load %arg2[%c9, %c0_49, %c0_50] : memref<16x32x384xf32, #tpu.memory_space<vmem>>, vector<1x32x384xf32>
    %58 = vector.shape_cast %57 : vector<1x32x384xf32> to vector<32x384xf32>
    %59 = arith.mulf %2, %58 : vector<32x384xf32>
    %cst_51 = arith.constant dense<0.000000e+00> : vector<384xf32>
    %60 = vector.multi_reduction <add>, %59, %cst_51 [0] : vector<32x384xf32> to vector<384xf32>
    %61 = vector.shape_cast %60 : vector<384xf32> to vector<1x384xf32>
    %c9_52 = arith.constant 9 : index
    %c0_53 = arith.constant 0 : index
    %62 = vector.load %arg9[%c9_52, %c0_53] : memref<16x384xf32, #tpu.memory_space<vmem>>, vector<1x384xf32>
    tpu.vector_store %arg9[%c9_52, %c0_53], %61 {strides = array<i32>} : memref<16x384xf32, #tpu.memory_space<vmem>>, vector<1x384xf32>,
    %c10 = arith.constant 10 : index
    %c0_54 = arith.constant 0 : index
    %c0_55 = arith.constant 0 : index
    %63 = vector.load %arg2[%c10, %c0_54, %c0_55] : memref<16x32x384xf32, #tpu.memory_space<vmem>>, vector<1x32x384xf32>
    %64 = vector.shape_cast %63 : vector<1x32x384xf32> to vector<32x384xf32>
    %65 = arith.mulf %2, %64 : vector<32x384xf32>
    %cst_56 = arith.constant dense<0.000000e+00> : vector<384xf32>
    %66 = vector.multi_reduction <add>, %65, %cst_56 [0] : vector<32x384xf32> to vector<384xf32>
    %67 = vector.shape_cast %66 : vector<384xf32> to vector<1x384xf32>
    %c10_57 = arith.constant 10 : index
    %c0_58 = arith.constant 0 : index
    %68 = vector.load %arg9[%c10_57, %c0_58] : memref<16x384xf32, #tpu.memory_space<vmem>>, vector<1x384xf32>
    tpu.vector_store %arg9[%c10_57, %c0_58], %67 {strides = array<i32>} : memref<16x384xf32, #tpu.memory_space<vmem>>, vector<1x384xf32>,
    %c11 = arith.constant 11 : index
    %c0_59 = arith.constant 0 : index
    %c0_60 = arith.constant 0 : index
    %69 = vector.load %arg2[%c11, %c0_59, %c0_60] : memref<16x32x384xf32, #tpu.memory_space<vmem>>, vector<1x32x384xf32>
    %70 = vector.shape_cast %69 : vector<1x32x384xf32> to vector<32x384xf32>
    %71 = arith.mulf %2, %70 : vector<32x384xf32>
    %cst_61 = arith.constant dense<0.000000e+00> : vector<384xf32>
    %72 = vector.multi_reduction <add>, %71, %cst_61 [0] : vector<32x384xf32> to vector<384xf32>
    %73 = vector.shape_cast %72 : vector<384xf32> to vector<1x384xf32>
    %c11_62 = arith.constant 11 : index
    %c0_63 = arith.constant 0 : index
    %74 = vector.load %arg9[%c11_62, %c0_63] : memref<16x384xf32, #tpu.memory_space<vmem>>, vector<1x384xf32>
    tpu.vector_store %arg9[%c11_62, %c0_63], %73 {strides = array<i32>} : memref<16x384xf32, #tpu.memory_space<vmem>>, vector<1x384xf32>,
    %c12 = arith.constant 12 : index
    %c0_64 = arith.constant 0 : index
    %c0_65 = arith.constant 0 : index
    %75 = vector.load %arg2[%c12, %c0_64, %c0_65] : memref<16x32x384xf32, #tpu.memory_space<vmem>>, vector<1x32x384xf32>
    %76 = vector.shape_cast %75 : vector<1x32x384xf32> to vector<32x384xf32>
    %77 = arith.mulf %2, %76 : vector<32x384xf32>
    %cst_66 = arith.constant dense<0.000000e+00> : vector<384xf32>
    %78 = vector.multi_reduction <add>, %77, %cst_66 [0] : vector<32x384xf32> to vector<384xf32>
    %79 = vector.shape_cast %78 : vector<384xf32> to vector<1x384xf32>
    %c12_67 = arith.constant 12 : index
    %c0_68 = arith.constant 0 : index
    %80 = vector.load %arg9[%c12_67, %c0_68] : memref<16x384xf32, #tpu.memory_space<vmem>>, vector<1x384xf32>
    tpu.vector_store %arg9[%c12_67, %c0_68], %79 {strides = array<i32>} : memref<16x384xf32, #tpu.memory_space<vmem>>, vector<1x384xf32>,
    %c13 = arith.constant 13 : index
    %c0_69 = arith.constant 0 : index
    %c0_70 = arith.constant 0 : index
    %81 = vector.load %arg2[%c13, %c0_69, %c0_70] : memref<16x32x384xf32, #tpu.memory_space<vmem>>, vector<1x32x384xf32>
    %82 = vector.shape_cast %81 : vector<1x32x384xf32> to vector<32x384xf32>
    %83 = arith.mulf %2, %82 : vector<32x384xf32>
    %cst_71 = arith.constant dense<0.000000e+00> : vector<384xf32>
    %84 = vector.multi_reduction <add>, %83, %cst_71 [0] : vector<32x384xf32> to vector<384xf32>
    %85 = vector.shape_cast %84 : vector<384xf32> to vector<1x384xf32>
    %c13_72 = arith.constant 13 : index
    %c0_73 = arith.constant 0 : index
    %86 = vector.load %arg9[%c13_72, %c0_73] : memref<16x384xf32, #tpu.memory_space<vmem>>, vector<1x384xf32>
    tpu.vector_store %arg9[%c13_72, %c0_73], %85 {strides = array<i32>} : memref<16x384xf32, #tpu.memory_space<vmem>>, vector<1x384xf32>,
    %c14 = arith.constant 14 : index
    %c0_74 = arith.constant 0 : index
    %c0_75 = arith.constant 0 : index
    %87 = vector.load %arg2[%c14, %c0_74, %c0_75] : memref<16x32x384xf32, #tpu.memory_space<vmem>>, vector<1x32x384xf32>
    %88 = vector.shape_cast %87 : vector<1x32x384xf32> to vector<32x384xf32>
    %89 = arith.mulf %2, %88 : vector<32x384xf32>
    %cst_76 = arith.constant dense<0.000000e+00> : vector<384xf32>
    %90 = vector.multi_reduction <add>, %89, %cst_76 [0] : vector<32x384xf32> to vector<384xf32>
    %91 = vector.shape_cast %90 : vector<384xf32> to vector<1x384xf32>
    %c14_77 = arith.constant 14 : index
    %c0_78 = arith.constant 0 : index
    %92 = vector.load %arg9[%c14_77, %c0_78] : memref<16x384xf32, #tpu.memory_space<vmem>>, vector<1x384xf32>
    tpu.vector_store %arg9[%c14_77, %c0_78], %91 {strides = array<i32>} : memref<16x384xf32, #tpu.memory_space<vmem>>, vector<1x384xf32>,
    %c15 = arith.constant 15 : index
    %c0_79 = arith.constant 0 : index
    %c0_80 = arith.constant 0 : index
    %93 = vector.load %arg2[%c15, %c0_79, %c0_80] : memref<16x32x384xf32, #tpu.memory_space<vmem>>, vector<1x32x384xf32>
    %94 = vector.shape_cast %93 : vector<1x32x384xf32> to vector<32x384xf32>
    %95 = arith.mulf %2, %94 : vector<32x384xf32>
    %cst_81 = arith.constant dense<0.000000e+00> : vector<384xf32>
    %96 = vector.multi_reduction <add>, %95, %cst_81 [0] : vector<32x384xf32> to vector<384xf32>
    %97 = vector.shape_cast %96 : vector<384xf32> to vector<1x384xf32>
    %c15_82 = arith.constant 15 : index
    %c0_83 = arith.constant 0 : index
    %98 = vector.load %arg9[%c15_82, %c0_83] : memref<16x384xf32, #tpu.memory_space<vmem>>, vector<1x384xf32>
    tpu.vector_store %arg9[%c15_82, %c0_83], %97 {strides = array<i32>} : memref<16x384xf32, #tpu.memory_space<vmem>>, vector<1x384xf32>,
    %c0_84 = arith.constant 0 : index
    %c0_85 = arith.constant 0 : index
    %99 = vector.load %arg9[%c0_84, %c0_85] : memref<16x384xf32, #tpu.memory_space<vmem>>, vector<16x384xf32>
    %cst_86 = arith.constant dense<0xFF800000> : vector<384xf32>
    %100 = vector.multi_reduction <maximumf>, %99, %cst_86 [0] : vector<16x384xf32> to vector<384xf32>
    %101 = vector.shape_cast %100 : vector<384xf32> to vector<1x384xf32>
    %102 = vector.broadcast %101 : vector<1x384xf32> to vector<16x384xf32>
    %103 = arith.subf %99, %102 : vector<16x384xf32>
    %104 = math.exp %103 : vector<16x384xf32>
    %cst_87 = arith.constant dense<0.000000e+00> : vector<384xf32>
    %105 = vector.multi_reduction <add>, %104, %cst_87 [0] : vector<16x384xf32> to vector<384xf32>
    %106 = vector.shape_cast %105 : vector<384xf32> to vector<1x384xf32>
    %cst_88 = arith.constant 1.000000e+00 : f32
    %107 = vector.broadcast %cst_88 : f32 to vector<1x384xf32>
    %108 = arith.divf %107, %106 : vector<1x384xf32>
    %109 = vector.broadcast %108 : vector<1x384xf32> to vector<16x384xf32>
    %110 = arith.mulf %104, %109 : vector<16x384xf32>
    %c0_89 = arith.constant 0 : index
    %c0_90 = arith.constant 0 : index
    %111 = vector.load %arg8[%c0_89, %c0_90] : memref<16x384xf32, #tpu.memory_space<vmem>>, vector<16x384xf32>
    tpu.vector_store %arg8[%c0_89, %c0_90], %110 {strides = array<i32>} : memref<16x384xf32, #tpu.memory_space<vmem>>, vector<16x384xf32>,
    %c0_91 = arith.constant 0 : index
    %c0_92 = arith.constant 0 : index
    %112 = vector.load %arg6[%c0_91, %c0_92] : memref<8x384xf32, #tpu.memory_space<vmem>>, vector<1x384xf32>
    %c1_93 = arith.constant 1 : index
    %c0_94 = arith.constant 0 : index
    %113 = vector.load %arg6[%c1_93, %c0_94] : memref<8x384xf32, #tpu.memory_space<vmem>>, vector<1x384xf32>
    %114 = tpu.iota {dimensions = array<i32: 0>} : vector<16x384xi32>
    %115 = arith.sitofp %114 : vector<16x384xi32> to vector<16x384xf32>
    %cst_95 = arith.constant 1.500000e+01 : f32
    %116 = vector.broadcast %cst_95 : f32 to vector<16x384xf32>
    %117 = arith.subf %116, %115 : vector<16x384xf32>
    %cst_96 = arith.constant 0.000000e+00 : f32
    %118 = vector.broadcast %cst_96 : f32 to vector<1x384xf32>
    %119 = arith.subf %118, %113 : vector<1x384xf32>
    %120 = vector.broadcast %119 : vector<1x384xf32> to vector<16x384xf32>
    %121 = arith.mulf %120, %117 : vector<16x384xf32>
    %122 = math.exp %121 : vector<16x384xf32>
    %123 = vector.broadcast %112 : vector<1x384xf32> to vector<16x384xf32>
    %124 = arith.mulf %123, %122 : vector<16x384xf32>
    %cst_97 = arith.constant 0.000000e+00 : f32
    %125 = vector.broadcast %cst_97 : f32 to vector<32x384xf32>
    %126 = vector.extract_strided_slice %110 {offsets = [0, 0], sizes = [1, 384], strides = [1, 1]} : vector<16x384xf32> to vector<1x384xf32>
    %c0_98 = arith.constant 0 : index
    %c0_99 = arith.constant 0 : index
    %c0_100 = arith.constant 0 : index
    %127 = vector.load %arg2[%c0_98, %c0_99, %c0_100] : memref<16x32x384xf32, #tpu.memory_space<vmem>>, vector<1x32x384xf32>
    %128 = vector.shape_cast %127 : vector<1x32x384xf32> to vector<32x384xf32>
    %129 = vector.broadcast %126 : vector<1x384xf32> to vector<32x384xf32>
    %130 = arith.mulf %129, %128 : vector<32x384xf32>
    %131 = vector.extract_strided_slice %124 {offsets = [0, 0], sizes = [1, 384], strides = [1, 1]} : vector<16x384xf32> to vector<1x384xf32>
    %132 = vector.broadcast %131 : vector<1x384xf32> to vector<32x384xf32>
    %133 = arith.mulf %132, %130 : vector<32x384xf32>
    %cst_101 = arith.constant 0.000000e+00 : f32
    %134 = vector.broadcast %cst_101 : f32 to vector<32x384xf32>
    %135 = arith.maximumf %133, %134 : vector<32x384xf32>
    %136 = arith.addf %125, %135 : vector<32x384xf32>
    %137 = arith.addf %136, %130 : vector<32x384xf32>
    %138 = vector.extract_strided_slice %110 {offsets = [1, 0], sizes = [1, 384], strides = [1, 1]} : vector<16x384xf32> to vector<1x384xf32>
    %c1_102 = arith.constant 1 : index
    %c0_103 = arith.constant 0 : index
    %c0_104 = arith.constant 0 : index
    %139 = vector.load %arg2[%c1_102, %c0_103, %c0_104] : memref<16x32x384xf32, #tpu.memory_space<vmem>>, vector<1x32x384xf32>
    %140 = vector.shape_cast %139 : vector<1x32x384xf32> to vector<32x384xf32>
    %141 = vector.broadcast %138 : vector<1x384xf32> to vector<32x384xf32>
    %142 = arith.mulf %141, %140 : vector<32x384xf32>
    %143 = vector.extract_strided_slice %124 {offsets = [1, 0], sizes = [1, 384], strides = [1, 1]} : vector<16x384xf32> to vector<1x384xf32>
    %144 = vector.broadcast %143 : vector<1x384xf32> to vector<32x384xf32>
    %145 = arith.mulf %144, %142 : vector<32x384xf32>
    %cst_105 = arith.constant 0.000000e+00 : f32
    %146 = vector.broadcast %cst_105 : f32 to vector<32x384xf32>
    %147 = arith.maximumf %145, %146 : vector<32x384xf32>
    %148 = arith.addf %137, %147 : vector<32x384xf32>
    %149 = arith.addf %148, %142 : vector<32x384xf32>
    %150 = vector.extract_strided_slice %110 {offsets = [2, 0], sizes = [1, 384], strides = [1, 1]} : vector<16x384xf32> to vector<1x384xf32>
    %c2_106 = arith.constant 2 : index
    %c0_107 = arith.constant 0 : index
    %c0_108 = arith.constant 0 : index
    %151 = vector.load %arg2[%c2_106, %c0_107, %c0_108] : memref<16x32x384xf32, #tpu.memory_space<vmem>>, vector<1x32x384xf32>
    %152 = vector.shape_cast %151 : vector<1x32x384xf32> to vector<32x384xf32>
    %153 = vector.broadcast %150 : vector<1x384xf32> to vector<32x384xf32>
    %154 = arith.mulf %153, %152 : vector<32x384xf32>
    %155 = vector.extract_strided_slice %124 {offsets = [2, 0], sizes = [1, 384], strides = [1, 1]} : vector<16x384xf32> to vector<1x384xf32>
    %156 = vector.broadcast %155 : vector<1x384xf32> to vector<32x384xf32>
    %157 = arith.mulf %156, %154 : vector<32x384xf32>
    %cst_109 = arith.constant 0.000000e+00 : f32
    %158 = vector.broadcast %cst_109 : f32 to vector<32x384xf32>
    %159 = arith.maximumf %157, %158 : vector<32x384xf32>
    %160 = arith.addf %149, %159 : vector<32x384xf32>
    %161 = arith.addf %160, %154 : vector<32x384xf32>
    %162 = vector.extract_strided_slice %110 {offsets = [3, 0], sizes = [1, 384], strides = [1, 1]} : vector<16x384xf32> to vector<1x384xf32>
    %c3_110 = arith.constant 3 : index
    %c0_111 = arith.constant 0 : index
    %c0_112 = arith.constant 0 : index
    %163 = vector.load %arg2[%c3_110, %c0_111, %c0_112] : memref<16x32x384xf32, #tpu.memory_space<vmem>>, vector<1x32x384xf32>
    %164 = vector.shape_cast %163 : vector<1x32x384xf32> to vector<32x384xf32>
    %165 = vector.broadcast %162 : vector<1x384xf32> to vector<32x384xf32>
    %166 = arith.mulf %165, %164 : vector<32x384xf32>
    %167 = vector.extract_strided_slice %124 {offsets = [3, 0], sizes = [1, 384], strides = [1, 1]} : vector<16x384xf32> to vector<1x384xf32>
    %168 = vector.broadcast %167 : vector<1x384xf32> to vector<32x384xf32>
    %169 = arith.mulf %168, %166 : vector<32x384xf32>
    %cst_113 = arith.constant 0.000000e+00 : f32
    %170 = vector.broadcast %cst_113 : f32 to vector<32x384xf32>
    %171 = arith.maximumf %169, %170 : vector<32x384xf32>
    %172 = arith.addf %161, %171 : vector<32x384xf32>
    %173 = arith.addf %172, %166 : vector<32x384xf32>
    %174 = vector.extract_strided_slice %110 {offsets = [4, 0], sizes = [1, 384], strides = [1, 1]} : vector<16x384xf32> to vector<1x384xf32>
    %c4_114 = arith.constant 4 : index
    %c0_115 = arith.constant 0 : index
    %c0_116 = arith.constant 0 : index
    %175 = vector.load %arg2[%c4_114, %c0_115, %c0_116] : memref<16x32x384xf32, #tpu.memory_space<vmem>>, vector<1x32x384xf32>
    %176 = vector.shape_cast %175 : vector<1x32x384xf32> to vector<32x384xf32>
    %177 = vector.broadcast %174 : vector<1x384xf32> to vector<32x384xf32>
    %178 = arith.mulf %177, %176 : vector<32x384xf32>
    %179 = vector.extract_strided_slice %124 {offsets = [4, 0], sizes = [1, 384], strides = [1, 1]} : vector<16x384xf32> to vector<1x384xf32>
    %180 = vector.broadcast %179 : vector<1x384xf32> to vector<32x384xf32>
    %181 = arith.mulf %180, %178 : vector<32x384xf32>
    %cst_117 = arith.constant 0.000000e+00 : f32
    %182 = vector.broadcast %cst_117 : f32 to vector<32x384xf32>
    %183 = arith.maximumf %181, %182 : vector<32x384xf32>
    %184 = arith.addf %173, %183 : vector<32x384xf32>
    %185 = arith.addf %184, %178 : vector<32x384xf32>
    %186 = vector.extract_strided_slice %110 {offsets = [5, 0], sizes = [1, 384], strides = [1, 1]} : vector<16x384xf32> to vector<1x384xf32>
    %c5_118 = arith.constant 5 : index
    %c0_119 = arith.constant 0 : index
    %c0_120 = arith.constant 0 : index
    %187 = vector.load %arg2[%c5_118, %c0_119, %c0_120] : memref<16x32x384xf32, #tpu.memory_space<vmem>>, vector<1x32x384xf32>
    %188 = vector.shape_cast %187 : vector<1x32x384xf32> to vector<32x384xf32>
    %189 = vector.broadcast %186 : vector<1x384xf32> to vector<32x384xf32>
    %190 = arith.mulf %189, %188 : vector<32x384xf32>
    %191 = vector.extract_strided_slice %124 {offsets = [5, 0], sizes = [1, 384], strides = [1, 1]} : vector<16x384xf32> to vector<1x384xf32>
    %192 = vector.broadcast %191 : vector<1x384xf32> to vector<32x384xf32>
    %193 = arith.mulf %192, %190 : vector<32x384xf32>
    %cst_121 = arith.constant 0.000000e+00 : f32
    %194 = vector.broadcast %cst_121 : f32 to vector<32x384xf32>
    %195 = arith.maximumf %193, %194 : vector<32x384xf32>
    %196 = arith.addf %185, %195 : vector<32x384xf32>
    %197 = arith.addf %196, %190 : vector<32x384xf32>
    %198 = vector.extract_strided_slice %110 {offsets = [6, 0], sizes = [1, 384], strides = [1, 1]} : vector<16x384xf32> to vector<1x384xf32>
    %c6_122 = arith.constant 6 : index
    %c0_123 = arith.constant 0 : index
    %c0_124 = arith.constant 0 : index
    %199 = vector.load %arg2[%c6_122, %c0_123, %c0_124] : memref<16x32x384xf32, #tpu.memory_space<vmem>>, vector<1x32x384xf32>
    %200 = vector.shape_cast %199 : vector<1x32x384xf32> to vector<32x384xf32>
    %201 = vector.broadcast %198 : vector<1x384xf32> to vector<32x384xf32>
    %202 = arith.mulf %201, %200 : vector<32x384xf32>
    %203 = vector.extract_strided_slice %124 {offsets = [6, 0], sizes = [1, 384], strides = [1, 1]} : vector<16x384xf32> to vector<1x384xf32>
    %204 = vector.broadcast %203 : vector<1x384xf32> to vector<32x384xf32>
    %205 = arith.mulf %204, %202 : vector<32x384xf32>
    %cst_125 = arith.constant 0.000000e+00 : f32
    %206 = vector.broadcast %cst_125 : f32 to vector<32x384xf32>
    %207 = arith.maximumf %205, %206 : vector<32x384xf32>
    %208 = arith.addf %197, %207 : vector<32x384xf32>
    %209 = arith.addf %208, %202 : vector<32x384xf32>
    %210 = vector.extract_strided_slice %110 {offsets = [7, 0], sizes = [1, 384], strides = [1, 1]} : vector<16x384xf32> to vector<1x384xf32>
    %c7_126 = arith.constant 7 : index
    %c0_127 = arith.constant 0 : index
    %c0_128 = arith.constant 0 : index
    %211 = vector.load %arg2[%c7_126, %c0_127, %c0_128] : memref<16x32x384xf32, #tpu.memory_space<vmem>>, vector<1x32x384xf32>
    %212 = vector.shape_cast %211 : vector<1x32x384xf32> to vector<32x384xf32>
    %213 = vector.broadcast %210 : vector<1x384xf32> to vector<32x384xf32>
    %214 = arith.mulf %213, %212 : vector<32x384xf32>
    %215 = vector.extract_strided_slice %124 {offsets = [7, 0], sizes = [1, 384], strides = [1, 1]} : vector<16x384xf32> to vector<1x384xf32>
    %216 = vector.broadcast %215 : vector<1x384xf32> to vector<32x384xf32>
    %217 = arith.mulf %216, %214 : vector<32x384xf32>
    %cst_129 = arith.constant 0.000000e+00 : f32
    %218 = vector.broadcast %cst_129 : f32 to vector<32x384xf32>
    %219 = arith.maximumf %217, %218 : vector<32x384xf32>
    %220 = arith.addf %209, %219 : vector<32x384xf32>
    %221 = arith.addf %220, %214 : vector<32x384xf32>
    %222 = vector.extract_strided_slice %110 {offsets = [8, 0], sizes = [1, 384], strides = [1, 1]} : vector<16x384xf32> to vector<1x384xf32>
    %c8_130 = arith.constant 8 : index
    %c0_131 = arith.constant 0 : index
    %c0_132 = arith.constant 0 : index
    %223 = vector.load %arg2[%c8_130, %c0_131, %c0_132] : memref<16x32x384xf32, #tpu.memory_space<vmem>>, vector<1x32x384xf32>
    %224 = vector.shape_cast %223 : vector<1x32x384xf32> to vector<32x384xf32>
    %225 = vector.broadcast %222 : vector<1x384xf32> to vector<32x384xf32>
    %226 = arith.mulf %225, %224 : vector<32x384xf32>
    %227 = vector.extract_strided_slice %124 {offsets = [8, 0], sizes = [1, 384], strides = [1, 1]} : vector<16x384xf32> to vector<1x384xf32>
    %228 = vector.broadcast %227 : vector<1x384xf32> to vector<32x384xf32>
    %229 = arith.mulf %228, %226 : vector<32x384xf32>
    %cst_133 = arith.constant 0.000000e+00 : f32
    %230 = vector.broadcast %cst_133 : f32 to vector<32x384xf32>
    %231 = arith.maximumf %229, %230 : vector<32x384xf32>
    %232 = arith.addf %221, %231 : vector<32x384xf32>
    %233 = arith.addf %232, %226 : vector<32x384xf32>
    %234 = vector.extract_strided_slice %110 {offsets = [9, 0], sizes = [1, 384], strides = [1, 1]} : vector<16x384xf32> to vector<1x384xf32>
    %c9_134 = arith.constant 9 : index
    %c0_135 = arith.constant 0 : index
    %c0_136 = arith.constant 0 : index
    %235 = vector.load %arg2[%c9_134, %c0_135, %c0_136] : memref<16x32x384xf32, #tpu.memory_space<vmem>>, vector<1x32x384xf32>
    %236 = vector.shape_cast %235 : vector<1x32x384xf32> to vector<32x384xf32>
    %237 = vector.broadcast %234 : vector<1x384xf32> to vector<32x384xf32>
    %238 = arith.mulf %237, %236 : vector<32x384xf32>
    %239 = vector.extract_strided_slice %124 {offsets = [9, 0], sizes = [1, 384], strides = [1, 1]} : vector<16x384xf32> to vector<1x384xf32>
    %240 = vector.broadcast %239 : vector<1x384xf32> to vector<32x384xf32>
    %241 = arith.mulf %240, %238 : vector<32x384xf32>
    %cst_137 = arith.constant 0.000000e+00 : f32
    %242 = vector.broadcast %cst_137 : f32 to vector<32x384xf32>
    %243 = arith.maximumf %241, %242 : vector<32x384xf32>
    %244 = arith.addf %233, %243 : vector<32x384xf32>
    %245 = arith.addf %244, %238 : vector<32x384xf32>
    %246 = vector.extract_strided_slice %110 {offsets = [10, 0], sizes = [1, 384], strides = [1, 1]} : vector<16x384xf32> to vector<1x384xf32>
    %c10_138 = arith.constant 10 : index
    %c0_139 = arith.constant 0 : index
    %c0_140 = arith.constant 0 : index
    %247 = vector.load %arg2[%c10_138, %c0_139, %c0_140] : memref<16x32x384xf32, #tpu.memory_space<vmem>>, vector<1x32x384xf32>
    %248 = vector.shape_cast %247 : vector<1x32x384xf32> to vector<32x384xf32>
    %249 = vector.broadcast %246 : vector<1x384xf32> to vector<32x384xf32>
    %250 = arith.mulf %249, %248 : vector<32x384xf32>
    %251 = vector.extract_strided_slice %124 {offsets = [10, 0], sizes = [1, 384], strides = [1, 1]} : vector<16x384xf32> to vector<1x384xf32>
    %252 = vector.broadcast %251 : vector<1x384xf32> to vector<32x384xf32>
    %253 = arith.mulf %252, %250 : vector<32x384xf32>
    %cst_141 = arith.constant 0.000000e+00 : f32
    %254 = vector.broadcast %cst_141 : f32 to vector<32x384xf32>
    %255 = arith.maximumf %253, %254 : vector<32x384xf32>
    %256 = arith.addf %245, %255 : vector<32x384xf32>
    %257 = arith.addf %256, %250 : vector<32x384xf32>
    %258 = vector.extract_strided_slice %110 {offsets = [11, 0], sizes = [1, 384], strides = [1, 1]} : vector<16x384xf32> to vector<1x384xf32>
    %c11_142 = arith.constant 11 : index
    %c0_143 = arith.constant 0 : index
    %c0_144 = arith.constant 0 : index
    %259 = vector.load %arg2[%c11_142, %c0_143, %c0_144] : memref<16x32x384xf32, #tpu.memory_space<vmem>>, vector<1x32x384xf32>
    %260 = vector.shape_cast %259 : vector<1x32x384xf32> to vector<32x384xf32>
    %261 = vector.broadcast %258 : vector<1x384xf32> to vector<32x384xf32>
    %262 = arith.mulf %261, %260 : vector<32x384xf32>
    %263 = vector.extract_strided_slice %124 {offsets = [11, 0], sizes = [1, 384], strides = [1, 1]} : vector<16x384xf32> to vector<1x384xf32>
    %264 = vector.broadcast %263 : vector<1x384xf32> to vector<32x384xf32>
    %265 = arith.mulf %264, %262 : vector<32x384xf32>
    %cst_145 = arith.constant 0.000000e+00 : f32
    %266 = vector.broadcast %cst_145 : f32 to vector<32x384xf32>
    %267 = arith.maximumf %265, %266 : vector<32x384xf32>
    %268 = arith.addf %257, %267 : vector<32x384xf32>
    %269 = arith.addf %268, %262 : vector<32x384xf32>
    %270 = vector.extract_strided_slice %110 {offsets = [12, 0], sizes = [1, 384], strides = [1, 1]} : vector<16x384xf32> to vector<1x384xf32>
    %c12_146 = arith.constant 12 : index
    %c0_147 = arith.constant 0 : index
    %c0_148 = arith.constant 0 : index
    %271 = vector.load %arg2[%c12_146, %c0_147, %c0_148] : memref<16x32x384xf32, #tpu.memory_space<vmem>>, vector<1x32x384xf32>
    %272 = vector.shape_cast %271 : vector<1x32x384xf32> to vector<32x384xf32>
    %273 = vector.broadcast %270 : vector<1x384xf32> to vector<32x384xf32>
    %274 = arith.mulf %273, %272 : vector<32x384xf32>
    %275 = vector.extract_strided_slice %124 {offsets = [12, 0], sizes = [1, 384], strides = [1, 1]} : vector<16x384xf32> to vector<1x384xf32>
    %276 = vector.broadcast %275 : vector<1x384xf32> to vector<32x384xf32>
    %277 = arith.mulf %276, %274 : vector<32x384xf32>
    %cst_149 = arith.constant 0.000000e+00 : f32
    %278 = vector.broadcast %cst_149 : f32 to vector<32x384xf32>
    %279 = arith.maximumf %277, %278 : vector<32x384xf32>
    %280 = arith.addf %269, %279 : vector<32x384xf32>
    %281 = arith.addf %280, %274 : vector<32x384xf32>
    %282 = vector.extract_strided_slice %110 {offsets = [13, 0], sizes = [1, 384], strides = [1, 1]} : vector<16x384xf32> to vector<1x384xf32>
    %c13_150 = arith.constant 13 : index
    %c0_151 = arith.constant 0 : index
    %c0_152 = arith.constant 0 : index
    %283 = vector.load %arg2[%c13_150, %c0_151, %c0_152] : memref<16x32x384xf32, #tpu.memory_space<vmem>>, vector<1x32x384xf32>
    %284 = vector.shape_cast %283 : vector<1x32x384xf32> to vector<32x384xf32>
    %285 = vector.broadcast %282 : vector<1x384xf32> to vector<32x384xf32>
    %286 = arith.mulf %285, %284 : vector<32x384xf32>
    %287 = vector.extract_strided_slice %124 {offsets = [13, 0], sizes = [1, 384], strides = [1, 1]} : vector<16x384xf32> to vector<1x384xf32>
    %288 = vector.broadcast %287 : vector<1x384xf32> to vector<32x384xf32>
    %289 = arith.mulf %288, %286 : vector<32x384xf32>
    %cst_153 = arith.constant 0.000000e+00 : f32
    %290 = vector.broadcast %cst_153 : f32 to vector<32x384xf32>
    %291 = arith.maximumf %289, %290 : vector<32x384xf32>
    %292 = arith.addf %281, %291 : vector<32x384xf32>
    %293 = arith.addf %292, %286 : vector<32x384xf32>
    %294 = vector.extract_strided_slice %110 {offsets = [14, 0], sizes = [1, 384], strides = [1, 1]} : vector<16x384xf32> to vector<1x384xf32>
    %c14_154 = arith.constant 14 : index
    %c0_155 = arith.constant 0 : index
    %c0_156 = arith.constant 0 : index
    %295 = vector.load %arg2[%c14_154, %c0_155, %c0_156] : memref<16x32x384xf32, #tpu.memory_space<vmem>>, vector<1x32x384xf32>
    %296 = vector.shape_cast %295 : vector<1x32x384xf32> to vector<32x384xf32>
    %297 = vector.broadcast %294 : vector<1x384xf32> to vector<32x384xf32>
    %298 = arith.mulf %297, %296 : vector<32x384xf32>
    %299 = vector.extract_strided_slice %124 {offsets = [14, 0], sizes = [1, 384], strides = [1, 1]} : vector<16x384xf32> to vector<1x384xf32>
    %300 = vector.broadcast %299 : vector<1x384xf32> to vector<32x384xf32>
    %301 = arith.mulf %300, %298 : vector<32x384xf32>
    %cst_157 = arith.constant 0.000000e+00 : f32
    %302 = vector.broadcast %cst_157 : f32 to vector<32x384xf32>
    %303 = arith.maximumf %301, %302 : vector<32x384xf32>
    %304 = arith.addf %293, %303 : vector<32x384xf32>
    %305 = arith.addf %304, %298 : vector<32x384xf32>
    %306 = vector.extract_strided_slice %110 {offsets = [15, 0], sizes = [1, 384], strides = [1, 1]} : vector<16x384xf32> to vector<1x384xf32>
    %c15_158 = arith.constant 15 : index
    %c0_159 = arith.constant 0 : index
    %c0_160 = arith.constant 0 : index
    %307 = vector.load %arg2[%c15_158, %c0_159, %c0_160] : memref<16x32x384xf32, #tpu.memory_space<vmem>>, vector<1x32x384xf32>
    %308 = vector.shape_cast %307 : vector<1x32x384xf32> to vector<32x384xf32>
    %309 = vector.broadcast %306 : vector<1x384xf32> to vector<32x384xf32>
    %310 = arith.mulf %309, %308 : vector<32x384xf32>
    %311 = vector.extract_strided_slice %124 {offsets = [15, 0], sizes = [1, 384], strides = [1, 1]} : vector<16x384xf32> to vector<1x384xf32>
    %312 = vector.broadcast %311 : vector<1x384xf32> to vector<32x384xf32>
    %313 = arith.mulf %312, %310 : vector<32x384xf32>
    %cst_161 = arith.constant 0.000000e+00 : f32
    %314 = vector.broadcast %cst_161 : f32 to vector<32x384xf32>
    %315 = arith.maximumf %313, %314 : vector<32x384xf32>
    %316 = arith.addf %305, %315 : vector<32x384xf32>
    %317 = arith.addf %316, %310 : vector<32x384xf32>
    %c0_162 = arith.constant 0 : index
    %c0_163 = arith.constant 0 : index
    %318 = vector.load %arg4[%c0_162, %c0_163] : memref<32x32xf32, #tpu.memory_space<vmem>>, vector<32x32xf32>
    %cst_164 = arith.constant dense<0.000000e+00> : vector<32x384xf32>
    %319 = tpu.matmul %318, %317, %cst_164 {dimension_numbers = #tpu.dot_dimension_numbers<[1], [0], [0], [1], [0, 0, 1, 1], [], []>} : vector<32x32xf32>, vector<32x384xf32>, vector<32x384xf32> -> vector<32x384xf32>
    %c0_165 = arith.constant 0 : index
    %c0_166 = arith.constant 0 : index
    %320 = vector.load %arg5[%c0_165, %c0_166] : memref<32x32xf32, #tpu.memory_space<vmem>>, vector<32x32xf32>
    %cst_167 = arith.constant dense<0.000000e+00> : vector<32x384xf32>
    %321 = tpu.matmul %320, %2, %cst_167 {dimension_numbers = #tpu.dot_dimension_numbers<[1], [0], [0], [1], [0, 0, 1, 1], [], []>} : vector<32x32xf32>, vector<32x384xf32>, vector<32x384xf32> -> vector<32x384xf32>
    %322 = arith.addf %319, %321 : vector<32x384xf32>
    %323 = math.tanh %322 : vector<32x384xf32>
    %c0_168 = arith.constant 0 : index
    %c0_169 = arith.constant 0 : index
    %324 = vector.load %arg7[%c0_168, %c0_169] : memref<32x384xf32, #tpu.memory_space<vmem>>, vector<32x384xf32>
    tpu.vector_store %arg7[%c0_168, %c0_169], %323 {strides = array<i32>} : memref<32x384xf32, #tpu.memory_space<vmem>>, vector<32x384xf32>,
    return
  }
  func.func @transform_0(%arg0: i32) -> (i32, i32) {
    %c0_i32 = arith.constant 0 : i32
    %c0_i32_0 = arith.constant 0 : i32
    return %c0_i32, %arg0 : i32, i32
  }
  func.func @transform_1(%arg0: i32) -> (i32, i32, i32) {
    %c0_i32 = arith.constant 0 : i32
    %c0_i32_0 = arith.constant 0 : i32
    %c0_i32_1 = arith.constant 0 : i32
    return %c0_i32, %c0_i32_0, %arg0 : i32, i32, i32
  }
  func.func @transform_2(%arg0: i32) -> (i32, i32) {
    %c0_i32 = arith.constant 0 : i32
    %c0_i32_0 = arith.constant 0 : i32
    %c0_i32_1 = arith.constant 0 : i32
    return %c0_i32, %c0_i32_0 : i32, i32
  }
  func.func @transform_3(%arg0: i32) -> (i32, i32) {
    %c0_i32 = arith.constant 0 : i32
    %c0_i32_0 = arith.constant 0 : i32
    %c0_i32_1 = arith.constant 0 : i32
    return %c0_i32, %c0_i32_0 : i32, i32
  }
  func.func @transform_4(%arg0: i32) -> (i32, i32) {
    %c0_i32 = arith.constant 0 : i32
    %c0_i32_0 = arith.constant 0 : i32
    %c0_i32_1 = arith.constant 0 : i32
    return %c0_i32, %c0_i32_0 : i32, i32
  }
  func.func @transform_5(%arg0: i32) -> (i32, i32) {
    %c0_i32 = arith.constant 0 : i32
    %c0_i32_0 = arith.constant 0 : i32
    return %c0_i32, %arg0 : i32, i32
  }
  func.func @transform_6(%arg0: i32) -> (i32, i32) {
    %c0_i32 = arith.constant 0 : i32
    %c0_i32_0 = arith.constant 0 : i32
    return %c0_i32, %arg0 : i32, i32
  }
  func.func @transform_7(%arg0: i32) -> (i32, i32) {
    %c0_i32 = arith.constant 0 : i32
    %c0_i32_0 = arith.constant 0 : i32
    return %c0_i32, %arg0 : i32, i32
  }
}

</mosaic_0001>

<llo_original>
// kernel: tpu_custom_call.1
$region0: #{tpu_custom_call.1}
  #allocation0 [shape = 'u32[]', space=smem, size = 0x4, offset = 0x4, fixed_abs, tag = 'smem constant byte address 0x4 - core index']
  #allocation1 [shape = 'u32[144,128]{1,0:T(1,128)}', space=vmem, size = 0x12000, scoped, tag = 'internal scratch']
  #allocation2 [shape = 'f32[16,384]{1,0:T(8,128)}', space=vmem, size = 0x6000, scoped, tag = 'scratch operand']
  %s0 = inlined_call_operand.hbm [shape: f32[32,1152], index: 0, kind: input, shape index: {}]
  %s1 = inlined_call_operand.hbm [shape: f32[16,32,1152], index: 1, kind: input, shape index: {}]
  %s2 = inlined_call_operand.hbm [shape: f32[32,32], index: 2, kind: input, shape index: {}]
  %s3 = inlined_call_operand.hbm [shape: f32[32,32], index: 3, kind: input, shape index: {}]
  %s4 = inlined_call_operand.hbm [shape: f32[32,32], index: 4, kind: input, shape index: {}]
  %s5 = inlined_call_operand.hbm [shape: f32[8,1152], index: 5, kind: input, shape index: {}]
  %s6 = inlined_call_operand.hbm [shape: f32[32,1152], index: 6, kind: output, shape index: {0}]
  %s7 = inlined_call_operand.hbm [shape: f32[16,1152], index: 7, kind: output, shape index: {1}]
  %8 = xla_tuple %s6, %s7
  %s9 = sld [smem:[#allocation0]]
  $region89: #{tpu_custom_call.1} parent=0
    _
  %s11 = ssub.s32 1, %s9
  %s12 = scalar_select 0, %s11, %s9
  $region1: #{tpu_custom_call.1} parent=0
    #allocation3 [shape = 'u8[98304]{0}', space=vmem, size = 0x18000, scoped, tag = 'input window, operand 0']
    #allocation4 [shape = 's32[2]{0}', space=sflag, size = 0x8, scoped, tag = 'scoped memory for tpu_custom_call.1']
    #allocation5 [shape = 's32[2]{0}', space=sflag, size = 0x8, scoped, tag = 'scoped memory for tpu_custom_call.1']
    #allocation6 [shape = 'u8[1572864]{0}', space=vmem, size = 0x180000, scoped, tag = 'input window, operand 1']
    #allocation7 [shape = 's32[2]{0}', space=sflag, size = 0x8, scoped, tag = 'scoped memory for tpu_custom_call.1']
    #allocation8 [shape = 'u8[16384]{0}', space=vmem, size = 0x4000, scoped, tag = 'input window, operand 2, single buffered']
    #allocation9 [shape = 'u8[16384]{0}', space=vmem, size = 0x4000, scoped, tag = 'input window, operand 3, single buffered']
    #allocation10 [shape = 's32[1]{0}', space=sflag, size = 0x4, scoped, tag = 'scoped memory for tpu_custom_call.1']
    #allocation11 [shape = 'u8[16384]{0}', space=vmem, size = 0x4000, scoped, tag = 'input window, operand 4, single buffered']
    #allocation12 [shape = 'u8[24576]{0}', space=vmem, size = 0x6000, scoped, tag = 'input window, operand 5']
    #allocation13 [shape = 's32[2]{0}', space=sflag, size = 0x8, scoped, tag = 'scoped memory for tpu_custom_call.1']
    #allocation14 [shape = 'u8[98304]{0}', space=vmem, size = 0x18000, scoped, tag = 'output window, operand 0']
    #allocation15 [shape = 'u8[49152]{0}', space=vmem, size = 0xc000, scoped, tag = 'output window, operand 1']
    #allocation16 [shape = 's32[2]{0}', space=sflag, size = 0x8, scoped, tag = 'scoped memory for tpu_custom_call.1']
    %13 = vsyncpa [#allocation4], 0
    %s14 = scalar_lea.sflag [#allocation4], 1
    %15 = vsyncpa %s14, 0
    %16 = vsyncpa [#allocation7], 0
    %s17 = scalar_lea.sflag [#allocation7], 1
    %18 = vsyncpa %s17, 0
    %19 = vsyncpa [#allocation10], 0
    %20 = vsyncpa [#allocation13], 0
    %s21 = scalar_lea.sflag [#allocation13], 1
    %22 = vsyncpa %s21, 0
    %23 = vsyncpa [#allocation5], 0
    %s24 = scalar_lea.sflag [#allocation5], 1
    %25 = vsyncpa %s24, 0
    %26 = vsyncpa [#allocation16], 0
    %s27 = scalar_lea.sflag [#allocation16], 1
    %28 = vsyncpa %s27, 0
    loop: start=0, step=1, limit=5
    $region2: #{tpu_custom_call.1} parent=1 // loop_pre_header
      _
    $region3: #{tpu_custom_call.1} parent=1 // loop_header
      %s30 = sphi 0, %s34
      %p31 = scmp.ge.s32.totalorder %s30, 5
      %s40 = sphi 0, %s42
      %s43 = sphi 0, %s40
      %s44 = sphi 0, %s43
      %s60 = sphi 0, %s44
      %s66 = sphi 0, %s68
      %s69 = sphi 0, %s66
      %s70 = sphi 0, %s69
      %s86 = sphi 0, %s70
      %s90 = sphi 0, %s90
      %s92 = sphi 0, %s90
      %s93 = sphi 0, %s92
      %s107 = sphi 0, %s93
      %s111 = sphi 0, %s111
      %s113 = sphi 0, %s111
      %s114 = sphi 0, %s113
      %s128 = sphi 0, %s114
      %s132 = sphi 0, %s132
      %s134 = sphi 0, %s132
      %s135 = sphi 0, %s134
      %s149 = sphi 0, %s135
      %s155 = sphi 0, %s157
      %s158 = sphi 0, %s155
      %s159 = sphi 0, %s158
      %s175 = sphi 0, %s159
      %s181 = sphi 0, %s183
      %s184 = sphi 0, %s181
      %s185 = sphi 0, %s184
      %s201 = sphi 0, %s185
      %s207 = sphi 0, %s209
      %s210 = sphi 0, %s207
      %s211 = sphi 0, %s210
      %s227 = sphi 0, %s211
    $region4: #{tpu_custom_call.1} parent=1 // loop_header_branch
      %33 = sbr.rel (%p31) target = $region8
    $region5: #{tpu_custom_call.1} parent=1 // loop_body
      %s35 = ssub.s32 %s30, 1
      %s36 = ssub.s32 %s30, 2
      %s37 = sadd.s32 %s30, 1
      %s38 = ssub.s32 %s30, %s37
      %p39 = scmp.eq.s32.totalorder %s38, 0
      %s41 = sadd.s32 %s40, 1
      %s42 = scalar_select %p39, %s40, %s41
      %p45 = pneg %p39
      %p46 = scmp.eq.s32.totalorder %s30, 2
      %p47 = por %p45, %p46
      %p48 = scmp.ne.s32.totalorder %s40, %s43
      %p49 = scmp.eq.s32.totalorder %s30, 0
      %p50 = por %p48, %p49
      %p51 = scmp.ne.s32.totalorder %s40, %s43
      %p52 = scmp.eq.s32.totalorder %s35, 2
      %p53 = por %p51, %p52
      %p54 = scmp.ne.s32.totalorder %s43, %s44
      %p55 = scmp.eq.s32.totalorder %s35, 0
      %p56 = por %p54, %p55
      %p57 = scmp.ne.s32.totalorder %s43, %s44
      %p58 = scmp.eq.s32.totalorder %s36, 2
      %p59 = por %p57, %p58
      %p61 = scmp.ne.s32.totalorder %s44, %s60
      %p62 = scmp.eq.s32.totalorder %s36, 0
      %p63 = por %p61, %p62
      %s64 = ssub.s32 %s30, %s37
      %p65 = scmp.eq.s32.totalorder %s64, 0
      %s67 = sadd.s32 %s66, 1
      %s68 = scalar_select %p65, %s66, %s67
      %p71 = pneg %p65
      %p72 = scmp.eq.s32.totalorder %s30, 2
      %p73 = por %p71, %p72
      %p74 = scmp.ne.s32.totalorder %s66, %s69
      %p75 = scmp.eq.s32.totalorder %s30, 0
      %p76 = por %p74, %p75
      %p77 = scmp.ne.s32.totalorder %s66, %s69
      %p78 = scmp.eq.s32.totalorder %s35, 2
      %p79 = por %p77, %p78
      %p80 = scmp.ne.s32.totalorder %s69, %s70
      %p81 = scmp.eq.s32.totalorder %s35, 0
      %p82 = por %p80, %p81
      %p83 = scmp.ne.s32.totalorder %s69, %s70
      %p84 = scmp.eq.s32.totalorder %s36, 2
      %p85 = por %p83, %p84
      %p87 = scmp.ne.s32.totalorder %s70, %s86
      %p88 = scmp.eq.s32.totalorder %s36, 0
      %p89 = por %p87, %p88
      %s91 = sadd.s32 %s90, 1
      %p94 = scmp.eq.s32.totalorder %s30, 2
      %p95 = scmp.ne.s32.totalorder %s90, %s92
      %p96 = scmp.eq.s32.totalorder %s30, 0
      %p97 = por %p95, %p96
      %p98 = scmp.ne.s32.totalorder %s90, %s92
      %p99 = scmp.eq.s32.totalorder %s35, 2
      %p100 = por %p98, %p99
      %p101 = scmp.ne.s32.totalorder %s92, %s93
      %p102 = scmp.eq.s32.totalorder %s35, 0
      %p103 = por %p101, %p102
      %p104 = scmp.ne.s32.totalorder %s92, %s93
      %p105 = scmp.eq.s32.totalorder %s36, 2
      %p106 = por %p104, %p105
      %p108 = scmp.ne.s32.totalorder %s93, %s107
      %p109 = scmp.eq.s32.totalorder %s36, 0
      %p110 = por %p108, %p109
      %s112 = sadd.s32 %s111, 1
      %p115 = scmp.eq.s32.totalorder %s30, 2
      %p116 = scmp.ne.s32.totalorder %s111, %s113
      %p117 = scmp.eq.s32.totalorder %s30, 0
      %p118 = por %p116, %p117
      %p119 = scmp.ne.s32.totalorder %s111, %s113
      %p120 = scmp.eq.s32.totalorder %s35, 2
      %p121 = por %p119, %p120
      %p122 = scmp.ne.s32.totalorder %s113, %s114
      %p123 = scmp.eq.s32.totalorder %s35, 0
      %p124 = por %p122, %p123
      %p125 = scmp.ne.s32.totalorder %s113, %s114
      %p126 = scmp.eq.s32.totalorder %s36, 2
      %p127 = por %p125, %p126
      %p129 = scmp.ne.s32.totalorder %s114, %s128
      %p130 = scmp.eq.s32.totalorder %s36, 0
      %p131 = por %p129, %p130
      %s133 = sadd.s32 %s132, 1
      %p136 = scmp.eq.s32.totalorder %s30, 2
      %p137 = scmp.ne.s32.totalorder %s132, %s134
      %p138 = scmp.eq.s32.totalorder %s30, 0
      %p139 = por %p137, %p138
      %p140 = scmp.ne.s32.totalorder %s132, %s134
      %p141 = scmp.eq.s32.totalorder %s35, 2
      %p142 = por %p140, %p141
      %p143 = scmp.ne.s32.totalorder %s134, %s135
      %p144 = scmp.eq.s32.totalorder %s35, 0
      %p145 = por %p143, %p144
      %p146 = scmp.ne.s32.totalorder %s134, %s135
      %p147 = scmp.eq.s32.totalorder %s36, 2
      %p148 = por %p146, %p147
      %p150 = scmp.ne.s32.totalorder %s135, %s149
      %p151 = scmp.eq.s32.totalorder %s36, 0
      %p152 = por %p150, %p151
      %s153 = ssub.s32 %s30, %s37
      %p154 = scmp.eq.s32.totalorder %s153, 0
      %s156 = sadd.s32 %s155, 1
      %s157 = scalar_select %p154, %s155, %s156
      %p160 = pneg %p154
      %p161 = scmp.eq.s32.totalorder %s30, 2
      %p162 = por %p160, %p161
      %p163 = scmp.ne.s32.totalorder %s155, %s158
      %p164 = scmp.eq.s32.totalorder %s30, 0
      %p165 = por %p163, %p164
      %p166 = scmp.ne.s32.totalorder %s155, %s158
      %p167 = scmp.eq.s32.totalorder %s35, 2
      %p168 = por %p166, %p167
      %p169 = scmp.ne.s32.totalorder %s158, %s159
      %p170 = scmp.eq.s32.totalorder %s35, 0
      %p171 = por %p169, %p170
      %p172 = scmp.ne.s32.totalorder %s158, %s159
      %p173 = scmp.eq.s32.totalorder %s36, 2
      %p174 = por %p172, %p173
      %p176 = scmp.ne.s32.totalorder %s159, %s175
      %p177 = scmp.eq.s32.totalorder %s36, 0
      %p178 = por %p176, %p177
      %s179 = ssub.s32 %s30, %s37
      %p180 = scmp.eq.s32.totalorder %s179, 0
      %s182 = sadd.s32 %s181, 1
      %s183 = scalar_select %p180, %s181, %s182
      %p186 = pneg %p180
      %p187 = scmp.eq.s32.totalorder %s30, 2
      %p188 = por %p186, %p187
      %p189 = scmp.ne.s32.totalorder %s181, %s184
      %p190 = scmp.eq.s32.totalorder %s30, 0
      %p191 = por %p189, %p190
      %p192 = scmp.ne.s32.totalorder %s181, %s184
      %p193 = scmp.eq.s32.totalorder %s35, 2
      %p194 = por %p192, %p193
      %p195 = scmp.ne.s32.totalorder %s184, %s185
      %p196 = scmp.eq.s32.totalorder %s35, 0
      %p197 = por %p195, %p196
      %p198 = scmp.ne.s32.totalorder %s184, %s185
      %p199 = scmp.eq.s32.totalorder %s36, 2
      %p200 = por %p198, %p199
      %p202 = scmp.ne.s32.totalorder %s185, %s201
      %p203 = scmp.eq.s32.totalorder %s36, 0
      %p204 = por %p202, %p203
      %s205 = ssub.s32 %s30, %s37
      %p206 = scmp.eq.s32.totalorder %s205, 0
      %s208 = sadd.s32 %s207, 1
      %s209 = scalar_select %p206, %s207, %s208
      %p212 = pneg %p206
      %p213 = scmp.eq.s32.totalorder %s30, 2
      %p214 = por %p212, %p213
      %p215 = scmp.ne.s32.totalorder %s207, %s210
      %p216 = scmp.eq.s32.totalorder %s30, 0
      %p217 = por %p215, %p216
      %p218 = scmp.ne.s32.totalorder %s207, %s210
      %p219 = scmp.eq.s32.totalorder %s35, 2
      %p220 = por %p218, %p219
      %p221 = scmp.ne.s32.totalorder %s210, %s211
      %p222 = scmp.eq.s32.totalorder %s35, 0
      %p223 = por %p221, %p222
      %p224 = scmp.ne.s32.totalorder %s210, %s211
      %p225 = scmp.eq.s32.totalorder %s36, 2
      %p226 = por %p224, %p225
      %p228 = scmp.ne.s32.totalorder %s211, %s227
      %p229 = scmp.eq.s32.totalorder %s36, 0
      %p230 = por %p228, %p229
      %p231 = scmp.le.s32.totalorder 1, %s30
      %p232 = scmp.lt.s32.totalorder %s30, 4
      %p233 = pnand %p231, %p232
      %p234 = pneg %p233
      // Predicated region
      $region9: #{tpu_custom_call.1} parent=5 // pred_check
        _
      $region10: #{tpu_custom_call.1} parent=5 // pred_check_branch
        %236 = sbr.rel (%p233) target = $region12
      $region11: #{tpu_custom_call.1} parent=5 // pred_region
        %s237 = ssub.s32 %s30, 1
        // Predicated region
        $region13: #{tpu_custom_call.1} parent=11 // pred_check
          %p238 = pneg %p103
        $region14: #{tpu_custom_call.1} parent=11 // pred_check_branch
          %240 = sbr.rel (%p238) target = $region16
        $region15: #{tpu_custom_call.1} parent=11 // pred_region
          %s242 = ssub.s32 512, 512
          %243 = vsyncadd [#allocation7], %s242
          %s244 = sshll.u32 [#allocation8], 4
          %s245 = int_to_ptr.vmem [resolvable:$true] %s244
          %250 = dma.hbm_to_vmem [thread:$0]  %s2, 512, %s245, [#allocation7], 128, 128, 8
        $region16: #{tpu_custom_call.1} parent=11 // pred_fallthru
          _
        // Predicated region
        $region17: #{tpu_custom_call.1} parent=11 // pred_check
          %p251 = pneg %p124
        $region18: #{tpu_custom_call.1} parent=11 // pred_check_branch
          %253 = sbr.rel (%p251) target = $region20
        $region19: #{tpu_custom_call.1} parent=11 // pred_region
          %s255 = ssub.s32 512, 512
          %256 = vsyncadd [#allocation10], %s255
          %s257 = sshll.u32 [#allocation9], 4
          %s258 = int_to_ptr.vmem [resolvable:$true] %s257
          %263 = dma.hbm_to_vmem [thread:$0]  %s3, 512, %s258, [#allocation10], 128, 128, 8
        $region20: #{tpu_custom_call.1} parent=11 // pred_fallthru
          _
        // Predicated region
        $region21: #{tpu_custom_call.1} parent=11 // pred_check
          %p264 = pneg %p145
        $region22: #{tpu_custom_call.1} parent=11 // pred_check_branch
          %266 = sbr.rel (%p264) target = $region24
        $region23: #{tpu_custom_call.1} parent=11 // pred_region
          %s268 = ssub.s32 512, 512
          %269 = vsyncadd [#allocation10], %s268
          %s270 = sshll.u32 [#allocation11], 4
          %s271 = int_to_ptr.vmem [resolvable:$true] %s270
          %276 = dma.hbm_to_vmem [thread:$0]  %s4, 512, %s271, [#allocation10], 128, 128, 8
        $region24: #{tpu_custom_call.1} parent=11 // pred_fallthru
          _
      $region12: #{tpu_custom_call.1} parent=5 // pred_fallthru
        _
      %p277 = scmp.lt.s32.totalorder %s30, 3
      // Predicated region
      $region25: #{tpu_custom_call.1} parent=5 // pred_check
        %p278 = pneg %p277
      $region26: #{tpu_custom_call.1} parent=5 // pred_check_branch
        %280 = sbr.rel (%p278) target = $region28
      $region27: #{tpu_custom_call.1} parent=5 // pred_region
        // Predicated region
        $region29: #{tpu_custom_call.1} parent=27 // pred_check
          %p281 = pneg %p50
        $region30: #{tpu_custom_call.1} parent=27 // pred_check_branch
          %283 = sbr.rel (%p281) target = $region32
        $region31: #{tpu_custom_call.1} parent=27 // pred_region
          %s284 = sand.u32 %s40, 1
          %s285 = scalar_lea.sflag [#allocation4], %s284
          %s286 = sand.u32 %s40, 1
          %s287 = smul.addr %s286, 96
          %s288 = scalar_lea.vmem [#allocation3], %s287
          %s289 = smul.u32 3, %s30
          %s291 = ssub.s32 1536, 1536
          %292 = vsyncadd %s285, %s291
          %s293 = smul.addr %s289, 128
          %s294 = scalar_lea.hbm %s0, %s293
          %s295 = sshll.u32 %s288, 4
          %s296 = int_to_ptr.vmem [resolvable:$true] %s295
          %301 = dma.hbm_to_vmem [thread:$0]  %s294, 1536, %s296, %s285, 1152, 384, 24
        $region32: #{tpu_custom_call.1} parent=27 // pred_fallthru
          _
        // Predicated region
        $region33: #{tpu_custom_call.1} parent=27 // pred_check
          %p302 = pneg %p76
        $region34: #{tpu_custom_call.1} parent=27 // pred_check_branch
          %304 = sbr.rel (%p302) target = $region36
        $region35: #{tpu_custom_call.1} parent=27 // pred_region
          %s305 = sand.u32 %s30, 1
          %s306 = scalar_lea.sflag [#allocation7], %s305
          %s307 = sand.u32 %s66, 1
          %s308 = smul.addr %s307, 1536
          %s309 = scalar_lea.vmem [#allocation6], %s308
          %s310 = smul.u32 3, %s30
          %s312 = ssub.s32 24576, 24576
          %313 = vsyncadd %s306, %s312
          %s314 = smul.addr %s310, 128
          %s315 = scalar_lea.hbm %s1, %s314
          %s316 = sshll.u32 %s309, 4
          %s317 = int_to_ptr.vmem [resolvable:$true] %s316
          %322 = dma.hbm_to_vmem [thread:$0]  %s315, 24576, %s317, %s306, 1152, 384, 24
        $region36: #{tpu_custom_call.1} parent=27 // pred_fallthru
          _
        // Predicated region
        $region37: #{tpu_custom_call.1} parent=27 // pred_check
          %p323 = pneg %p165
        $region38: #{tpu_custom_call.1} parent=27 // pred_check_branch
          %325 = sbr.rel (%p323) target = $region40
        $region39: #{tpu_custom_call.1} parent=27 // pred_region
          %s326 = sand.u32 %s155, 1
          %s327 = scalar_lea.sflag [#allocation13], %s326
          %s328 = sand.u32 %s155, 1
          %s329 = smul.addr %s328, 24
          %s330 = scalar_lea.vmem [#allocation12], %s329
          %s331 = smul.u32 3, %s30
          %s333 = ssub.s32 384, 384
          %334 = vsyncadd %s327, %s333
          %s335 = smul.addr %s331, 128
          %s336 = scalar_lea.hbm %s5, %s335
          %s338 = sshll.u32 %s330, 4
          %s339 = int_to_ptr.vmem [resolvable:$true] %s338
          %341 = dma.hbm_to_vmem [thread:$0]  %s336, 384, %s339, %s327
        $region40: #{tpu_custom_call.1} parent=27 // pred_fallthru
          _
      $region28: #{tpu_custom_call.1} parent=5 // pred_fallthru
        _
      %p342 = scmp.le.s32.totalorder 1, %s30
      %p343 = scmp.lt.s32.totalorder %s30, 4
      %p344 = pnand %p342, %p343
      %p345 = pneg %p344
      // Predicated region
      $region41: #{tpu_custom_call.1} parent=5 // pred_check
        _
      $region42: #{tpu_custom_call.1} parent=5 // pred_check_branch
        %347 = sbr.rel (%p344) target = $region44
      $region43: #{tpu_custom_call.1} parent=5 // pred_region
        %s348 = ssub.s32 %s30, 1
        %s349 = sand.u32 %s43, 1
        %s350 = scalar_lea.sflag [#allocation4], %s349
        %s351 = sand.u32 %s43, 1
        %s352 = smul.addr %s351, 96
        %s353 = scalar_lea.vmem [#allocation3], %s352
        // Predicated region
        $region45: #{tpu_custom_call.1} parent=43 // pred_check
          %p354 = pneg %p56
        $region46: #{tpu_custom_call.1} parent=43 // pred_check_branch
          %356 = sbr.rel (%p354) target = $region48
        $region47: #{tpu_custom_call.1} parent=43 // pred_region
          %357 = dma.done %s350, 1536
        $region48: #{tpu_custom_call.1} parent=43 // pred_fallthru
          _
        %s358 = sand.u32 %s35, 1
        %s359 = scalar_lea.sflag [#allocation7], %s358
        %s360 = sand.u32 %s69, 1
        %s361 = smul.addr %s360, 1536
        %s362 = scalar_lea.vmem [#allocation6], %s361
        // Predicated region
        $region49: #{tpu_custom_call.1} parent=43 // pred_check
          %p363 = pneg %p82
        $region50: #{tpu_custom_call.1} parent=43 // pred_check_branch
          %365 = sbr.rel (%p363) target = $region52
        $region51: #{tpu_custom_call.1} parent=43 // pred_region
          %366 = dma.done %s359, 24576
        $region52: #{tpu_custom_call.1} parent=43 // pred_fallthru
          _
        // Predicated region
        $region53: #{tpu_custom_call.1} parent=43 // pred_check
          %p367 = pneg %p103
        $region54: #{tpu_custom_call.1} parent=43 // pred_check_branch
          %369 = sbr.rel (%p367) target = $region56
        $region55: #{tpu_custom_call.1} parent=43 // pred_region
          %370 = dma.done [#allocation7], 512
        $region56: #{tpu_custom_call.1} parent=43 // pred_fallthru
          _
        // Predicated region
        $region57: #{tpu_custom_call.1} parent=43 // pred_check
          %p371 = pneg %p124
        $region58: #{tpu_custom_call.1} parent=43 // pred_check_branch
          %373 = sbr.rel (%p371) target = $region60
        $region59: #{tpu_custom_call.1} parent=43 // pred_region
          %374 = dma.done [#allocation10], 512
        $region60: #{tpu_custom_call.1} parent=43 // pred_fallthru
          _
        // Predicated region
        $region61: #{tpu_custom_call.1} parent=43 // pred_check
          %p375 = pneg %p145
        $region62: #{tpu_custom_call.1} parent=43 // pred_check_branch
          %377 = sbr.rel (%p375) target = $region64
        $region63: #{tpu_custom_call.1} parent=43 // pred_region
          %378 = dma.done [#allocation10], 512
        $region64: #{tpu_custom_call.1} parent=43 // pred_fallthru
          _
        %s379 = sand.u32 %s158, 1
        %s380 = scalar_lea.sflag [#allocation13], %s379
        %s381 = sand.u32 %s158, 1
        %s382 = smul.addr %s381, 24
        %s383 = scalar_lea.vmem [#allocation12], %s382
        // Predicated region
        $region65: #{tpu_custom_call.1} parent=43 // pred_check
          %p384 = pneg %p171
        $region66: #{tpu_custom_call.1} parent=43 // pred_check_branch
          %386 = sbr.rel (%p384) target = $region68
        $region67: #{tpu_custom_call.1} parent=43 // pred_region
          %387 = dma.done %s380, 384
        $region68: #{tpu_custom_call.1} parent=43 // pred_fallthru
          _
        %s388 = sand.u32 %s43, 1
        %s389 = scalar_lea.sflag [#allocation4], %s388
        %s390 = sand.u32 %s43, 1
        %s391 = smul.addr %s390, 96
        %s392 = scalar_lea.vmem [#allocation3], %s391
        %p393 = pneg %p56
        %p394 = pneg %p53
        %s395 = sand.u32 %s35, 1
        %s396 = scalar_lea.sflag [#allocation7], %s395
        %s397 = sand.u32 %s69, 1
        %s398 = smul.addr %s397, 1536
        %s399 = scalar_lea.vmem [#allocation6], %s398
        %p400 = pneg %p82
        %p401 = pneg %p79
        %p402 = pneg %p103
        %p403 = pneg %p100
        %p404 = pneg %p124
        %p405 = pneg %p121
        %p406 = pneg %p145
        %p407 = pneg %p142
        %s408 = sand.u32 %s158, 1
        %s409 = scalar_lea.sflag [#allocation13], %s408
        %s410 = sand.u32 %s158, 1
        %s411 = smul.addr %s410, 24
        %s412 = scalar_lea.vmem [#allocation12], %s411
        %p413 = pneg %p171
        %p414 = pneg %p168
        %p415 = pneg %p197
        %p416 = pneg %p194
        %s417 = sand.u32 %s184, 1
        %s418 = scalar_lea.sflag [#allocation5], %s417
        %s419 = sand.u32 %s184, 1
        %s420 = smul.addr %s419, 96
        %s421 = scalar_lea.vmem [#allocation14], %s420
        %p422 = pneg %p223
        %p423 = pneg %p220
        %s424 = sand.u32 %s210, 1
        %s425 = scalar_lea.sflag [#allocation16], %s424
        %s426 = sand.u32 %s210, 1
        %s427 = smul.addr %s426, 48
        %s428 = scalar_lea.vmem [#allocation15], %s427
        %s429 = smul.u32 3, %s35
        %s430 = smul.u32 3, %s35
        %s431 = smul.u32 3, %s35
        %s432 = smul.u32 3, %s35
        %s433 = smul.u32 3, %s35
        %v434 = vld [vmem:[#allocation8] sm:$0xff]
        %v435 = vld [vmem:[#allocation8 + $0x8] sm:$0xff]
        %v436 = vld [vmem:[#allocation8 + $0x10] sm:$0xff]
        %v437 = vld [vmem:[#allocation8 + $0x18] sm:$0xff]
        %v438 = vld [vmem:[%s353] sm:$0xff]
        %v439 = vld [vmem:[%s353 + $0x8] sm:$0xff]
        %v440 = vld [vmem:[%s353 + $0x10] sm:$0xff]
        %v441 = vld [vmem:[%s353 + $0x18] sm:$0xff]
        %v442 = vld [vmem:[%s353 + $0x20] sm:$0xff]
        %v443 = vld [vmem:[%s353 + $0x28] sm:$0xff]
        %v444 = vld [vmem:[%s353 + $0x30] sm:$0xff]
        %v445 = vld [vmem:[%s353 + $0x38] sm:$0xff]
        %v446 = vld [vmem:[%s353 + $0x40] sm:$0xff]
        %v447 = vld [vmem:[%s353 + $0x48] sm:$0xff]
        %v448 = vld [vmem:[%s353 + $0x50] sm:$0xff]
        %v449 = vld [vmem:[%s353 + $0x58] sm:$0xff]
        %vm450 = vcmask 261120
        %v452 = vsel %vm450, %v434, 0
        %v455 = vsel %vm450, %v435, 0
        %v458 = vsel %vm450, %v436, 0
        %v461 = vsel %vm450, %v437, 0
        %463 = vmatprep.subr.mxu0 %v439
        %464 = vmatpush1.msra.mxu0 %v438
        %465 = vmatprep.subr.mxu0 %v442
        %466 = vmatpush1.msra.mxu0 %v441
        %467 = vmatprep.subr.mxu0 %v445
        %468 = vmatpush1.msra.mxu0 %v444
        %469 = vmatprep.subr.mxu0 %v448
        %470 = vmatpush1.msra.mxu0 %v447
        %471 = vmatprep.subr.mxu0 0.0
        %472 = vmatpush1.msra.mxu0 0.0
        %473 = vmatprep.subr.mxu0 0.0
        %474 = vmatpush1.msra.mxu0 0.0
        %475 = vmatprep.subr.mxu0 0.0
        %476 = vmatpush1.msra.mxu0 0.0
        %477 = vmatprep.subr.mxu0 0.0
        %478 = vmatpush1.msra.mxu0 0.0
        %479 = vmatprep.subr.mxu0 0.0
        %480 = vmatpush1.msra.mxu0 0.0
        %481 = vmatprep.subr.mxu0 0.0
        %482 = vmatpush1.msra.mxu0 0.0
        %483 = vmatprep.subr.mxu0 0.0
        %484 = vmatpush1.msra.mxu0 0.0
        %485 = vmatprep.subr.mxu0 0.0
        %486 = vmatpush1.msra.mxu0 0.0
        %487 = vmatprep.subr.mxu0 0.0
        %488 = vmatpush1.msra.mxu0 0.0
        %489 = vmatprep.subr.mxu0 0.0
        %490 = vmatpush1.msra.mxu0 0.0
        %491 = vmatprep.subr.mxu0 0.0
        %492 = vmatpush1.msra.mxu0 0.0
        %493 = vmatprep.subr.mxu0 0.0
        %494 = vmatpush1.msra.mxu0 0.0
        %495 = vmatprep.subr.mxu0 0.0
        %496 = vmatpush1.msra.mxu0 0.0
        %497 = vmatprep.subr.mxu0 0.0
        %498 = vmatpush1.msra.mxu0 0.0
        %499 = vmatprep.subr.mxu0 0.0
        %500 = vmatpush1.msra.mxu0 0.0
        %501 = vmatprep.subr.mxu0 0.0
        %502 = vmatpush1.msra.mxu0 0.0
        %503 = vmatprep.subr.mxu0 0.0
        %504 = vmatpush1.msra.mxu0 0.0
        %505 = vmatprep.subr.mxu0 0.0
        %506 = vmatpush1.msra.mxu0 0.0
        %507 = vmatprep.subr.mxu0 0.0
        %508 = vmatpush1.msra.mxu0 0.0
        %509 = vmatprep.subr.mxu0 0.0
        %510 = vmatpush1.msra.mxu0 0.0
        %511 = vmatprep.subr.mxu0 0.0
        %512 = vmatpush1.msra.mxu0 0.0
        %513 = vmatprep.subr.mxu0 0.0
        %514 = vmatpush1.msra.mxu0 0.0
        %515 = vmatprep.subr.mxu0 0.0
        %516 = vmatpush1.msra.mxu0 0.0
        %517 = vmatprep.subr.mxu0 0.0
        %518 = vmatpush1.msra.mxu0 0.0
        %519 = vmatprep.subr.mxu0 0.0
        %520 = vmatpush1.msra.mxu0 0.0
        %521 = vmatprep.subr.mxu0 0.0
        %522 = vmatpush1.msra.mxu0 0.0
        %523 = vmatprep.subr.mxu0 0.0
        %524 = vmatpush1.msra.mxu0 0.0
        %525 = vmatprep.subr.mxu0 0.0
        %526 = vmatpush1.msra.mxu0 0.0
        %527 = vmatprep.mubr.f32.mxu0 0.0
        %528 = vmatmul.mubr.f32.gmra.mrb[0].mxu0 %v452
        %v529 = vpop.f32.mrb[0].mxu0
        %v530 = vadd.f32 0.0, %v529
        %v531 = vpop.f32.mrb[0].mxu0
        %v532 = vadd.f32 0.0, %v531
        %533 = vmatprep.mubr.f32.mxu0 0.0
        %534 = vmatmul.mubr.f32.gmra.mrb[0].mxu0 %v455
        %v535 = vpop.f32.mrb[0].mxu0
        %v536 = vadd.f32 0.0, %v535
        %v537 = vpop.f32.mrb[0].mxu0
        %v538 = vadd.f32 0.0, %v537
        %539 = vmatprep.mubr.f32.mxu0 0.0
        %540 = vmatmul.mubr.f32.gmra.mrb[0].mxu0 %v458
        %v541 = vpop.f32.mrb[0].mxu0
        %v542 = vadd.f32 0.0, %v541
        %v543 = vpop.f32.mrb[0].mxu0
        %v544 = vadd.f32 0.0, %v543
        %545 = vmatprep.mubr.f32.mxu0 0.0
        %546 = vmatmul.mubr.f32.gmra.mrb[0].mxu0 %v461
        %v547 = vpop.f32.mrb[0].mxu0
        %v548 = vadd.f32 0.0, %v547
        %v549 = vpop.f32.mrb[0].mxu0
        %v550 = vadd.f32 0.0, %v549
        %551 = vdwg.mxu0
        %552 = vmatprep.subr.mxu0 0.0
        %553 = vmatpush1.msra.mxu0 %v440
        %554 = vmatprep.subr.mxu0 0.0
        %555 = vmatpush1.msra.mxu0 %v443
        %556 = vmatprep.subr.mxu0 0.0
        %557 = vmatpush1.msra.mxu0 %v446
        %558 = vmatprep.subr.mxu0 0.0
        %559 = vmatpush1.msra.mxu0 %v449
        %560 = vmatprep.subr.mxu0 0.0
        %561 = vmatpush1.msra.mxu0 0.0
        %562 = vmatprep.subr.mxu0 0.0
        %563 = vmatpush1.msra.mxu0 0.0
        %564 = vmatprep.subr.mxu0 0.0
        %565 = vmatpush1.msra.mxu0 0.0
        %566 = vmatprep.subr.mxu0 0.0
        %567 = vmatpush1.msra.mxu0 0.0
        %568 = vmatprep.subr.mxu0 0.0
        %569 = vmatpush1.msra.mxu0 0.0
        %570 = vmatprep.subr.mxu0 0.0
        %571 = vmatpush1.msra.mxu0 0.0
        %572 = vmatprep.subr.mxu0 0.0
        %573 = vmatpush1.msra.mxu0 0.0
        %574 = vmatprep.subr.mxu0 0.0
        %575 = vmatpush1.msra.mxu0 0.0
        %576 = vmatprep.subr.mxu0 0.0
        %577 = vmatpush1.msra.mxu0 0.0
        %578 = vmatprep.subr.mxu0 0.0
        %579 = vmatpush1.msra.mxu0 0.0
        %580 = vmatprep.subr.mxu0 0.0
        %581 = vmatpush1.msra.mxu0 0.0
        %582 = vmatprep.subr.mxu0 0.0
        %583 = vmatpush1.msra.mxu0 0.0
        %584 = vmatprep.subr.mxu0 0.0
        %585 = vmatpush1.msra.mxu0 0.0
        %586 = vmatprep.subr.mxu0 0.0
        %587 = vmatpush1.msra.mxu0 0.0
        %588 = vmatprep.subr.mxu0 0.0
        %589 = vmatpush1.msra.mxu0 0.0
        %590 = vmatprep.subr.mxu0 0.0
        %591 = vmatpush1.msra.mxu0 0.0
        %592 = vmatprep.subr.mxu0 0.0
        %593 = vmatpush1.msra.mxu0 0.0
        %594 = vmatprep.subr.mxu0 0.0
        %595 = vmatpush1.msra.mxu0 0.0
        %596 = vmatprep.subr.mxu0 0.0
        %597 = vmatpush1.msra.mxu0 0.0
        %598 = vmatprep.subr.mxu0 0.0
        %599 = vmatpush1.msra.mxu0 0.0
        %600 = vmatprep.subr.mxu0 0.0
        %601 = vmatpush1.msra.mxu0 0.0
        %602 = vmatprep.subr.mxu0 0.0
        %603 = vmatpush1.msra.mxu0 0.0
        %604 = vmatprep.subr.mxu0 0.0
        %605 = vmatpush1.msra.mxu0 0.0
        %606 = vmatprep.subr.mxu0 0.0
        %607 = vmatpush1.msra.mxu0 0.0
        %608 = vmatprep.subr.mxu0 0.0
        %609 = vmatpush1.msra.mxu0 0.0
        %610 = vmatprep.subr.mxu0 0.0
        %611 = vmatpush1.msra.mxu0 0.0
        %612 = vmatprep.subr.mxu0 0.0
        %613 = vmatpush1.msra.mxu0 0.0
        %614 = vmatprep.subr.mxu0 0.0
        %615 = vmatpush1.msra.mxu0 0.0
        %616 = vmatprep.mubr.f32.mxu0 0.0
        %617 = vmatmul.mubr.f32.gmra.mrb[0].mxu0 %v452
        %v618 = vpop.f32.mrb[0].mxu0
        %v619 = vadd.f32 0.0, %v618
        %v620 = vpop.f32.mrb[0].mxu0
        %621 = vmatprep.mubr.f32.mxu0 0.0
        %622 = vmatmul.mubr.f32.gmra.mrb[0].mxu0 %v455
        %v623 = vpop.f32.mrb[0].mxu0
        %v624 = vadd.f32 0.0, %v623
        %v625 = vpop.f32.mrb[0].mxu0
        %626 = vmatprep.mubr.f32.mxu0 0.0
        %627 = vmatmul.mubr.f32.gmra.mrb[0].mxu0 %v458
        %v628 = vpop.f32.mrb[0].mxu0
        %v629 = vadd.f32 0.0, %v628
        %v630 = vpop.f32.mrb[0].mxu0
        %631 = vmatprep.mubr.f32.mxu0 0.0
        %632 = vmatmul.mubr.f32.gmra.mrb[0].mxu0 %v461
        %v633 = vpop.f32.mrb[0].mxu0
        %v634 = vadd.f32 0.0, %v633
        %v635 = vpop.f32.mrb[0].mxu0
        %636 = vdwg.mxu0
        %v637 = vld [vmem:[%s362] sm:$0xff]
        %v638 = vld [vmem:[%s362 + $0x8] sm:$0xff]
        %v639 = vld [vmem:[%s362 + $0x10] sm:$0xff]
        %v640 = vld [vmem:[%s362 + $0x18] sm:$0xff]
        %v641 = vld [vmem:[%s362 + $0x20] sm:$0xff]
        %v642 = vld [vmem:[%s362 + $0x28] sm:$0xff]
        %v643 = vld [vmem:[%s362 + $0x30] sm:$0xff]
        %v644 = vld [vmem:[%s362 + $0x38] sm:$0xff]
        %v645 = vld [vmem:[%s362 + $0x40] sm:$0xff]
        %v646 = vld [vmem:[%s362 + $0x48] sm:$0xff]
        %v647 = vld [vmem:[%s362 + $0x50] sm:$0xff]
        %v648 = vld [vmem:[%s362 + $0x58] sm:$0xff]
        %v649 = vmul.f32 %v530, %v637
        %v650 = vmul.f32 %v532, %v638
        %v651 = vmul.f32 %v619, %v639
        %v652 = vmul.f32 %v536, %v640
        %v653 = vmul.f32 %v538, %v641
        %v654 = vmul.f32 %v624, %v642
        %v655 = vmul.f32 %v542, %v643
        %v656 = vmul.f32 %v544, %v644
        %v657 = vmul.f32 %v629, %v645
        %v658 = vmul.f32 %v548, %v646
        %v659 = vmul.f32 %v550, %v647
        %v660 = vmul.f32 %v634, %v648
        %v661 = vadd.f32 %v649, %v652
        %v662 = vadd.f32 %v661, %v655
        %v663 = vadd.f32 %v662, %v658
        %v664 = vrot.slane %v663, 4
        %v665 = vadd.f32 %v663, %v664
        %v666 = vrot.slane %v665, 2
        %v667 = vadd.f32 %v665, %v666
        %v668 = vrot.slane %v667, 1
        %v669 = vadd.f32 %v667, %v668
        %v670 = vadd.f32 %v650, %v653
        %v671 = vadd.f32 %v670, %v656
        %v672 = vadd.f32 %v671, %v659
        %v673 = vrot.slane %v672, 4
        %v674 = vadd.f32 %v672, %v673
        %v675 = vrot.slane %v674, 2
        %v676 = vadd.f32 %v674, %v675
        %v677 = vrot.slane %v676, 1
        %v678 = vadd.f32 %v676, %v677
        %v679 = vadd.f32 %v651, %v654
        %v680 = vadd.f32 %v679, %v657
        %v681 = vadd.f32 %v680, %v660
        %v682 = vrot.slane %v681, 4
        %v683 = vadd.f32 %v681, %v682
        %v684 = vrot.slane %v683, 2
        %v685 = vadd.f32 %v683, %v684
        %v686 = vrot.slane %v685, 1
        %v687 = vadd.f32 %v685, %v686
        %v691 = vcombine.low %v669, %v678
        %v693 = vunpack.c.l.s4 1966171168
        %v694 = vunpack.c.0.s8 %v693
        %v695 = vlaneseq
        %v696 = vshrl.u32 %v695, 7
        %v697 = vsub.s32 %v694, %v696
        %v698 = vrot.slane %v691, %v697
        %v700 = vunpack.c.l.s4 1966171168
        %v701 = vunpack.c.0.s8 %v700
        %v702 = vlaneseq
        %v703 = vshrl.u32 %v702, 7
        %v704 = vsub.s32 %v701, %v703
        %v705 = vrot.slane %v687, %v704
        %v706 = vcombine.low %v698, %v705
        %v708 = vunpack.c.l.s4 1966171168
        %v709 = vunpack.c.0.s8 %v708
        %v710 = vlaneseq
        %v711 = vshrl.u32 %v710, 7
        %v712 = vsub.s32 %v709, %v711
        %v713 = vrot.slane %v706, %v712
        %v715 = vlaneseq
        %vm716 = vcmp.ge.s32.totalorder %v715, 0
        %vm717 = vcmp.lt.s32.totalorder %v715, 384
        %vm718 = vmand %vm716, %vm717
        %719 = vst.msk [vmem:[#allocation2] ss:$8 sm:$0x7] %vm718, %v713
        %720 = vst.msk [vmem:[#allocation2] ss:$8 sm:$0x0] %vm718, %v713
        %s721 = scalar_lea.vmem %s362, 96 [#allocation6]
        %v722 = vld [vmem:[%s721] sm:$0xff]
        %v723 = vld [vmem:[%s721 + $0x8] sm:$0xff]
        %v724 = vld [vmem:[%s721 + $0x10] sm:$0xff]
        %v725 = vld [vmem:[%s721 + $0x18] sm:$0xff]
        %v726 = vld [vmem:[%s721 + $0x20] sm:$0xff]
        %v727 = vld [vmem:[%s721 + $0x28] sm:$0xff]
        %v728 = vld [vmem:[%s721 + $0x30] sm:$0xff]
        %v729 = vld [vmem:[%s721 + $0x38] sm:$0xff]
        %v730 = vld [vmem:[%s721 + $0x40] sm:$0xff]
        %v731 = vld [vmem:[%s721 + $0x48] sm:$0xff]
        %v732 = vld [vmem:[%s721 + $0x50] sm:$0xff]
        %v733 = vld [vmem:[%s721 + $0x58] sm:$0xff]
        %v734 = vmul.f32 %v530, %v722
        %v735 = vmul.f32 %v532, %v723
        %v736 = vmul.f32 %v619, %v724
        %v737 = vmul.f32 %v536, %v725
        %v738 = vmul.f32 %v538, %v726
        %v739 = vmul.f32 %v624, %v727
        %v740 = vmul.f32 %v542, %v728
        %v741 = vmul.f32 %v544, %v729
        %v742 = vmul.f32 %v629, %v730
        %v743 = vmul.f32 %v548, %v731
        %v744 = vmul.f32 %v550, %v732
        %v745 = vmul.f32 %v634, %v733
        %v746 = vadd.f32 %v734, %v737
        %v747 = vadd.f32 %v746, %v740
        %v748 = vadd.f32 %v747, %v743
        %v749 = vrot.slane %v748, 4
        %v750 = vadd.f32 %v748, %v749
        %v751 = vrot.slane %v750, 2
        %v752 = vadd.f32 %v750, %v751
        %v753 = vrot.slane %v752, 1
        %v754 = vadd.f32 %v752, %v753
        %v755 = vadd.f32 %v735, %v738
        %v756 = vadd.f32 %v755, %v741
        %v757 = vadd.f32 %v756, %v744
        %v758 = vrot.slane %v757, 4
        %v759 = vadd.f32 %v757, %v758
        %v760 = vrot.slane %v759, 2
        %v761 = vadd.f32 %v759, %v760
        %v762 = vrot.slane %v761, 1
        %v763 = vadd.f32 %v761, %v762
        %v764 = vadd.f32 %v736, %v739
        %v765 = vadd.f32 %v764, %v742
        %v766 = vadd.f32 %v765, %v745
        %v767 = vrot.slane %v766, 4
        %v768 = vadd.f32 %v766, %v767
        %v769 = vrot.slane %v768, 2
        %v770 = vadd.f32 %v768, %v769
        %v771 = vrot.slane %v770, 1
        %v772 = vadd.f32 %v770, %v771
        %v776 = vcombine.low %v754, %v763
        %v778 = vunpack.c.l.s4 1966171168
        %v779 = vunpack.c.0.s8 %v778
        %v780 = vlaneseq
        %v781 = vshrl.u32 %v780, 7
        %v782 = vsub.s32 %v779, %v781
        %v783 = vrot.slane %v776, %v782
        %v785 = vunpack.c.l.s4 1966171168
        %v786 = vunpack.c.0.s8 %v785
        %v787 = vlaneseq
        %v788 = vshrl.u32 %v787, 7
        %v789 = vsub.s32 %v786, %v788
        %v790 = vrot.slane %v772, %v789
        %v791 = vcombine.low %v783, %v790
        %v793 = vunpack.c.l.s4 1966171168
        %v794 = vunpack.c.0.s8 %v793
        %v795 = vlaneseq
        %v796 = vshrl.u32 %v795, 7
        %v797 = vsub.s32 %v794, %v796
        %v798 = vrot.slane %v791, %v797
        %s800 = scalar_lea.vmem [#allocation2], 1
        %801 = vst.msk [vmem:[%s800] ss:$8 sm:$0x7] %vm718, %v798
        %802 = vst.msk [vmem:[%s800] ss:$8 sm:$0x0] %vm718, %v798
        %s803 = scalar_lea.vmem %s362, 192 [#allocation6]
        %v804 = vld [vmem:[%s803] sm:$0xff]
        %v805 = vld [vmem:[%s803 + $0x8] sm:$0xff]
        %v806 = vld [vmem:[%s803 + $0x10] sm:$0xff]
        %v807 = vld [vmem:[%s803 + $0x18] sm:$0xff]
        %v808 = vld [vmem:[%s803 + $0x20] sm:$0xff]
        %v809 = vld [vmem:[%s803 + $0x28] sm:$0xff]
        %v810 = vld [vmem:[%s803 + $0x30] sm:$0xff]
        %v811 = vld [vmem:[%s803 + $0x38] sm:$0xff]
        %v812 = vld [vmem:[%s803 + $0x40] sm:$0xff]
        %v813 = vld [vmem:[%s803 + $0x48] sm:$0xff]
        %v814 = vld [vmem:[%s803 + $0x50] sm:$0xff]
        %v815 = vld [vmem:[%s803 + $0x58] sm:$0xff]
        %v816 = vmul.f32 %v530, %v804
        %v817 = vmul.f32 %v532, %v805
        %v818 = vmul.f32 %v619, %v806
        %v819 = vmul.f32 %v536, %v807
        %v820 = vmul.f32 %v538, %v808
        %v821 = vmul.f32 %v624, %v809
        %v822 = vmul.f32 %v542, %v810
        %v823 = vmul.f32 %v544, %v811
        %v824 = vmul.f32 %v629, %v812
        %v825 = vmul.f32 %v548, %v813
        %v826 = vmul.f32 %v550, %v814
        %v827 = vmul.f32 %v634, %v815
        %v828 = vadd.f32 %v816, %v819
        %v829 = vadd.f32 %v828, %v822
        %v830 = vadd.f32 %v829, %v825
        %v831 = vrot.slane %v830, 4
        %v832 = vadd.f32 %v830, %v831
        %v833 = vrot.slane %v832, 2
        %v834 = vadd.f32 %v832, %v833
        %v835 = vrot.slane %v834, 1
        %v836 = vadd.f32 %v834, %v835
        %v837 = vadd.f32 %v817, %v820
        %v838 = vadd.f32 %v837, %v823
        %v839 = vadd.f32 %v838, %v826
        %v840 = vrot.slane %v839, 4
        %v841 = vadd.f32 %v839, %v840
        %v842 = vrot.slane %v841, 2
        %v843 = vadd.f32 %v841, %v842
        %v844 = vrot.slane %v843, 1
        %v845 = vadd.f32 %v843, %v844
        %v846 = vadd.f32 %v818, %v821
        %v847 = vadd.f32 %v846, %v824
        %v848 = vadd.f32 %v847, %v827
        %v849 = vrot.slane %v848, 4
        %v850 = vadd.f32 %v848, %v849
        %v851 = vrot.slane %v850, 2
        %v852 = vadd.f32 %v850, %v851
        %v853 = vrot.slane %v852, 1
        %v854 = vadd.f32 %v852, %v853
        %v858 = vcombine.low %v836, %v845
        %v860 = vunpack.c.l.s4 1966171168
        %v861 = vunpack.c.0.s8 %v860
        %v862 = vlaneseq
        %v863 = vshrl.u32 %v862, 7
        %v864 = vsub.s32 %v861, %v863
        %v865 = vrot.slane %v858, %v864
        %v867 = vunpack.c.l.s4 1966171168
        %v868 = vunpack.c.0.s8 %v867
        %v869 = vlaneseq
        %v870 = vshrl.u32 %v869, 7
        %v871 = vsub.s32 %v868, %v870
        %v872 = vrot.slane %v854, %v871
        %v873 = vcombine.low %v865, %v872
        %v875 = vunpack.c.l.s4 1966171168
        %v876 = vunpack.c.0.s8 %v875
        %v877 = vlaneseq
        %v878 = vshrl.u32 %v877, 7
        %v879 = vsub.s32 %v876, %v878
        %v880 = vrot.slane %v873, %v879
        %s882 = scalar_lea.vmem [#allocation2], 2
        %883 = vst.msk [vmem:[%s882] ss:$8 sm:$0x7] %vm718, %v880
        %884 = vst.msk [vmem:[%s882] ss:$8 sm:$0x0] %vm718, %v880
        %s885 = scalar_lea.vmem %s362, 288 [#allocation6]
        %v886 = vld [vmem:[%s885] sm:$0xff]
        %v887 = vld [vmem:[%s885 + $0x8] sm:$0xff]
        %v888 = vld [vmem:[%s885 + $0x10] sm:$0xff]
        %v889 = vld [vmem:[%s885 + $0x18] sm:$0xff]
        %v890 = vld [vmem:[%s885 + $0x20] sm:$0xff]
        %v891 = vld [vmem:[%s885 + $0x28] sm:$0xff]
        %v892 = vld [vmem:[%s885 + $0x30] sm:$0xff]
        %v893 = vld [vmem:[%s885 + $0x38] sm:$0xff]
        %v894 = vld [vmem:[%s885 + $0x40] sm:$0xff]
        %v895 = vld [vmem:[%s885 + $0x48] sm:$0xff]
        %v896 = vld [vmem:[%s885 + $0x50] sm:$0xff]
        %v897 = vld [vmem:[%s885 + $0x58] sm:$0xff]
        %v898 = vmul.f32 %v530, %v886
        %v899 = vmul.f32 %v532, %v887
        %v900 = vmul.f32 %v619, %v888
        %v901 = vmul.f32 %v536, %v889
        %v902 = vmul.f32 %v538, %v890
        %v903 = vmul.f32 %v624, %v891
        %v904 = vmul.f32 %v542, %v892
        %v905 = vmul.f32 %v544, %v893
        %v906 = vmul.f32 %v629, %v894
        %v907 = vmul.f32 %v548, %v895
        %v908 = vmul.f32 %v550, %v896
        %v909 = vmul.f32 %v634, %v897
        %v910 = vadd.f32 %v898, %v901
        %v911 = vadd.f32 %v910, %v904
        %v912 = vadd.f32 %v911, %v907
        %v913 = vrot.slane %v912, 4
        %v914 = vadd.f32 %v912, %v913
        %v915 = vrot.slane %v914, 2
        %v916 = vadd.f32 %v914, %v915
        %v917 = vrot.slane %v916, 1
        %v918 = vadd.f32 %v916, %v917
        %v919 = vadd.f32 %v899, %v902
        %v920 = vadd.f32 %v919, %v905
        %v921 = vadd.f32 %v920, %v908
        %v922 = vrot.slane %v921, 4
        %v923 = vadd.f32 %v921, %v922
        %v924 = vrot.slane %v923, 2
        %v925 = vadd.f32 %v923, %v924
        %v926 = vrot.slane %v925, 1
        %v927 = vadd.f32 %v925, %v926
        %v928 = vadd.f32 %v900, %v903
        %v929 = vadd.f32 %v928, %v906
        %v930 = vadd.f32 %v929, %v909
        %v931 = vrot.slane %v930, 4
        %v932 = vadd.f32 %v930, %v931
        %v933 = vrot.slane %v932, 2
        %v934 = vadd.f32 %v932, %v933
        %v935 = vrot.slane %v934, 1
        %v936 = vadd.f32 %v934, %v935
        %v940 = vcombine.low %v918, %v927
        %v942 = vunpack.c.l.s4 1966171168
        %v943 = vunpack.c.0.s8 %v942
        %v944 = vlaneseq
        %v945 = vshrl.u32 %v944, 7
        %v946 = vsub.s32 %v943, %v945
        %v947 = vrot.slane %v940, %v946
        %v949 = vunpack.c.l.s4 1966171168
        %v950 = vunpack.c.0.s8 %v949
        %v951 = vlaneseq
        %v952 = vshrl.u32 %v951, 7
        %v953 = vsub.s32 %v950, %v952
        %v954 = vrot.slane %v936, %v953
        %v955 = vcombine.low %v947, %v954
        %v957 = vunpack.c.l.s4 1966171168
        %v958 = vunpack.c.0.s8 %v957
        %v959 = vlaneseq
        %v960 = vshrl.u32 %v959, 7
        %v961 = vsub.s32 %v958, %v960
        %v962 = vrot.slane %v955, %v961
        %s964 = scalar_lea.vmem [#allocation2], 3
        %965 = vst.msk [vmem:[%s964] ss:$8 sm:$0x7] %vm718, %v962
        %966 = vst.msk [vmem:[%s964] ss:$8 sm:$0x0] %vm718, %v962
        %s967 = scalar_lea.vmem %s362, 384 [#allocation6]
        %v968 = vld [vmem:[%s967] sm:$0xff]
        %v969 = vld [vmem:[%s967 + $0x8] sm:$0xff]
        %v970 = vld [vmem:[%s967 + $0x10] sm:$0xff]
        %v971 = vld [vmem:[%s967 + $0x18] sm:$0xff]
        %v972 = vld [vmem:[%s967 + $0x20] sm:$0xff]
        %v973 = vld [vmem:[%s967 + $0x28] sm:$0xff]
        %v974 = vld [vmem:[%s967 + $0x30] sm:$0xff]
        %v975 = vld [vmem:[%s967 + $0x38] sm:$0xff]
        %v976 = vld [vmem:[%s967 + $0x40] sm:$0xff]
        %v977 = vld [vmem:[%s967 + $0x48] sm:$0xff]
        %v978 = vld [vmem:[%s967 + $0x50] sm:$0xff]
        %v979 = vld [vmem:[%s967 + $0x58] sm:$0xff]
        %v980 = vmul.f32 %v530, %v968
        %v981 = vmul.f32 %v532, %v969
        %v982 = vmul.f32 %v619, %v970
        %v983 = vmul.f32 %v536, %v971
        %v984 = vmul.f32 %v538, %v972
        %v985 = vmul.f32 %v624, %v973
        %v986 = vmul.f32 %v542, %v974
        %v987 = vmul.f32 %v544, %v975
        %v988 = vmul.f32 %v629, %v976
        %v989 = vmul.f32 %v548, %v977
        %v990 = vmul.f32 %v550, %v978
        %v991 = vmul.f32 %v634, %v979
        %v992 = vadd.f32 %v980, %v983
        %v993 = vadd.f32 %v992, %v986
        %v994 = vadd.f32 %v993, %v989
        %v995 = vrot.slane %v994, 4
        %v996 = vadd.f32 %v994, %v995
        %v997 = vrot.slane %v996, 2
        %v998 = vadd.f32 %v996, %v997
        %v999 = vrot.slane %v998, 1
        %v1000 = vadd.f32 %v998, %v999
        %v1001 = vadd.f32 %v981, %v984
        %v1002 = vadd.f32 %v1001, %v987
        %v1003 = vadd.f32 %v1002, %v990
        %v1004 = vrot.slane %v1003, 4
        %v1005 = vadd.f32 %v1003, %v1004
        %v1006 = vrot.slane %v1005, 2
        %v1007 = vadd.f32 %v1005, %v1006
        %v1008 = vrot.slane %v1007, 1
        %v1009 = vadd.f32 %v1007, %v1008
        %v1010 = vadd.f32 %v982, %v985
        %v1011 = vadd.f32 %v1010, %v988
        %v1012 = vadd.f32 %v1011, %v991
        %v1013 = vrot.slane %v1012, 4
        %v1014 = vadd.f32 %v1012, %v1013
        %v1015 = vrot.slane %v1014, 2
        %v1016 = vadd.f32 %v1014, %v1015
        %v1017 = vrot.slane %v1016, 1
        %v1018 = vadd.f32 %v1016, %v1017
        %v1022 = vcombine.low %v1000, %v1009
        %v1024 = vunpack.c.l.s4 1966171168
        %v1025 = vunpack.c.0.s8 %v1024
        %v1026 = vlaneseq
        %v1027 = vshrl.u32 %v1026, 7
        %v1028 = vsub.s32 %v1025, %v1027
        %v1029 = vrot.slane %v1022, %v1028
        %v1031 = vunpack.c.l.s4 1966171168
        %v1032 = vunpack.c.0.s8 %v1031
        %v1033 = vlaneseq
        %v1034 = vshrl.u32 %v1033, 7
        %v1035 = vsub.s32 %v1032, %v1034
        %v1036 = vrot.slane %v1018, %v1035
        %v1037 = vcombine.low %v1029, %v1036
        %v1039 = vunpack.c.l.s4 1966171168
        %v1040 = vunpack.c.0.s8 %v1039
        %v1041 = vlaneseq
        %v1042 = vshrl.u32 %v1041, 7
        %v1043 = vsub.s32 %v1040, %v1042
        %v1044 = vrot.slane %v1037, %v1043
        %s1046 = scalar_lea.vmem [#allocation2], 4
        %1047 = vst.msk [vmem:[%s1046] ss:$8 sm:$0x7] %vm718, %v1044
        %1048 = vst.msk [vmem:[%s1046] ss:$8 sm:$0x0] %vm718, %v1044
        %s1049 = scalar_lea.vmem %s362, 480 [#allocation6]
        %v1050 = vld [vmem:[%s1049] sm:$0xff]
        %v1051 = vld [vmem:[%s1049 + $0x8] sm:$0xff]
        %v1052 = vld [vmem:[%s1049 + $0x10] sm:$0xff]
        %v1053 = vld [vmem:[%s1049 + $0x18] sm:$0xff]
        %v1054 = vld [vmem:[%s1049 + $0x20] sm:$0xff]
        %v1055 = vld [vmem:[%s1049 + $0x28] sm:$0xff]
        %v1056 = vld [vmem:[%s1049 + $0x30] sm:$0xff]
        %v1057 = vld [vmem:[%s1049 + $0x38] sm:$0xff]
        %v1058 = vld [vmem:[%s1049 + $0x40] sm:$0xff]
        %v1059 = vld [vmem:[%s1049 + $0x48] sm:$0xff]
        %v1060 = vld [vmem:[%s1049 + $0x50] sm:$0xff]
        %v1061 = vld [vmem:[%s1049 + $0x58] sm:$0xff]
        %v1062 = vmul.f32 %v530, %v1050
        %v1063 = vmul.f32 %v532, %v1051
        %v1064 = vmul.f32 %v619, %v1052
        %v1065 = vmul.f32 %v536, %v1053
        %v1066 = vmul.f32 %v538, %v1054
        %v1067 = vmul.f32 %v624, %v1055
        %v1068 = vmul.f32 %v542, %v1056
        %v1069 = vmul.f32 %v544, %v1057
        %v1070 = vmul.f32 %v629, %v1058
        %v1071 = vmul.f32 %v548, %v1059
        %v1072 = vmul.f32 %v550, %v1060
        %v1073 = vmul.f32 %v634, %v1061
        %v1074 = vadd.f32 %v1062, %v1065
        %v1075 = vadd.f32 %v1074, %v1068
        %v1076 = vadd.f32 %v1075, %v1071
        %v1077 = vrot.slane %v1076, 4
        %v1078 = vadd.f32 %v1076, %v1077
        %v1079 = vrot.slane %v1078, 2
        %v1080 = vadd.f32 %v1078, %v1079
        %v1081 = vrot.slane %v1080, 1
        %v1082 = vadd.f32 %v1080, %v1081
        %v1083 = vadd.f32 %v1063, %v1066
        %v1084 = vadd.f32 %v1083, %v1069
        %v1085 = vadd.f32 %v1084, %v1072
        %v1086 = vrot.slane %v1085, 4
        %v1087 = vadd.f32 %v1085, %v1086
        %v1088 = vrot.slane %v1087, 2
        %v1089 = vadd.f32 %v1087, %v1088
        %v1090 = vrot.slane %v1089, 1
        %v1091 = vadd.f32 %v1089, %v1090
        %v1092 = vadd.f32 %v1064, %v1067
        %v1093 = vadd.f32 %v1092, %v1070
        %v1094 = vadd.f32 %v1093, %v1073
        %v1095 = vrot.slane %v1094, 4
        %v1096 = vadd.f32 %v1094, %v1095
        %v1097 = vrot.slane %v1096, 2
        %v1098 = vadd.f32 %v1096, %v1097
        %v1099 = vrot.slane %v1098, 1
        %v1100 = vadd.f32 %v1098, %v1099
        %v1104 = vcombine.low %v1082, %v1091
        %v1106 = vunpack.c.l.s4 1966171168
        %v1107 = vunpack.c.0.s8 %v1106
        %v1108 = vlaneseq
        %v1109 = vshrl.u32 %v1108, 7
        %v1110 = vsub.s32 %v1107, %v1109
        %v1111 = vrot.slane %v1104, %v1110
        %v1113 = vunpack.c.l.s4 1966171168
        %v1114 = vunpack.c.0.s8 %v1113
        %v1115 = vlaneseq
        %v1116 = vshrl.u32 %v1115, 7
        %v1117 = vsub.s32 %v1114, %v1116
        %v1118 = vrot.slane %v1100, %v1117
        %v1119 = vcombine.low %v1111, %v1118
        %v1121 = vunpack.c.l.s4 1966171168
        %v1122 = vunpack.c.0.s8 %v1121
        %v1123 = vlaneseq
        %v1124 = vshrl.u32 %v1123, 7
        %v1125 = vsub.s32 %v1122, %v1124
        %v1126 = vrot.slane %v1119, %v1125
        %s1128 = scalar_lea.vmem [#allocation2], 5
        %1129 = vst.msk [vmem:[%s1128] ss:$8 sm:$0x7] %vm718, %v1126
        %1130 = vst.msk [vmem:[%s1128] ss:$8 sm:$0x0] %vm718, %v1126
        %s1131 = scalar_lea.vmem %s362, 576 [#allocation6]
        %v1132 = vld [vmem:[%s1131] sm:$0xff]
        %v1133 = vld [vmem:[%s1131 + $0x8] sm:$0xff]
        %v1134 = vld [vmem:[%s1131 + $0x10] sm:$0xff]
        %v1135 = vld [vmem:[%s1131 + $0x18] sm:$0xff]
        %v1136 = vld [vmem:[%s1131 + $0x20] sm:$0xff]
        %v1137 = vld [vmem:[%s1131 + $0x28] sm:$0xff]
        %v1138 = vld [vmem:[%s1131 + $0x30] sm:$0xff]
        %v1139 = vld [vmem:[%s1131 + $0x38] sm:$0xff]
        %v1140 = vld [vmem:[%s1131 + $0x40] sm:$0xff]
        %v1141 = vld [vmem:[%s1131 + $0x48] sm:$0xff]
        %v1142 = vld [vmem:[%s1131 + $0x50] sm:$0xff]
        %v1143 = vld [vmem:[%s1131 + $0x58] sm:$0xff]
        %v1144 = vmul.f32 %v530, %v1132
        %v1145 = vmul.f32 %v532, %v1133
        %v1146 = vmul.f32 %v619, %v1134
        %v1147 = vmul.f32 %v536, %v1135
        %v1148 = vmul.f32 %v538, %v1136
        %v1149 = vmul.f32 %v624, %v1137
        %v1150 = vmul.f32 %v542, %v1138
        %v1151 = vmul.f32 %v544, %v1139
        %v1152 = vmul.f32 %v629, %v1140
        %v1153 = vmul.f32 %v548, %v1141
        %v1154 = vmul.f32 %v550, %v1142
        %v1155 = vmul.f32 %v634, %v1143
        %v1156 = vadd.f32 %v1144, %v1147
        %v1157 = vadd.f32 %v1156, %v1150
        %v1158 = vadd.f32 %v1157, %v1153
        %v1159 = vrot.slane %v1158, 4
        %v1160 = vadd.f32 %v1158, %v1159
        %v1161 = vrot.slane %v1160, 2
        %v1162 = vadd.f32 %v1160, %v1161
        %v1163 = vrot.slane %v1162, 1
        %v1164 = vadd.f32 %v1162, %v1163
        %v1165 = vadd.f32 %v1145, %v1148
        %v1166 = vadd.f32 %v1165, %v1151
        %v1167 = vadd.f32 %v1166, %v1154
        %v1168 = vrot.slane %v1167, 4
        %v1169 = vadd.f32 %v1167, %v1168
        %v1170 = vrot.slane %v1169, 2
        %v1171 = vadd.f32 %v1169, %v1170
        %v1172 = vrot.slane %v1171, 1
        %v1173 = vadd.f32 %v1171, %v1172
        %v1174 = vadd.f32 %v1146, %v1149
        %v1175 = vadd.f32 %v1174, %v1152
        %v1176 = vadd.f32 %v1175, %v1155
        %v1177 = vrot.slane %v1176, 4
        %v1178 = vadd.f32 %v1176, %v1177
        %v1179 = vrot.slane %v1178, 2
        %v1180 = vadd.f32 %v1178, %v1179
        %v1181 = vrot.slane %v1180, 1
        %v1182 = vadd.f32 %v1180, %v1181
        %v1186 = vcombine.low %v1164, %v1173
        %v1188 = vunpack.c.l.s4 1966171168
        %v1189 = vunpack.c.0.s8 %v1188
        %v1190 = vlaneseq
        %v1191 = vshrl.u32 %v1190, 7
        %v1192 = vsub.s32 %v1189, %v1191
        %v1193 = vrot.slane %v1186, %v1192
        %v1195 = vunpack.c.l.s4 1966171168
        %v1196 = vunpack.c.0.s8 %v1195
        %v1197 = vlaneseq
        %v1198 = vshrl.u32 %v1197, 7
        %v1199 = vsub.s32 %v1196, %v1198
        %v1200 = vrot.slane %v1182, %v1199
        %v1201 = vcombine.low %v1193, %v1200
        %v1203 = vunpack.c.l.s4 1966171168
        %v1204 = vunpack.c.0.s8 %v1203
        %v1205 = vlaneseq
        %v1206 = vshrl.u32 %v1205, 7
        %v1207 = vsub.s32 %v1204, %v1206
        %v1208 = vrot.slane %v1201, %v1207
        %s1210 = scalar_lea.vmem [#allocation2], 6
        %1211 = vst.msk [vmem:[%s1210] ss:$8 sm:$0x7] %vm718, %v1208
        %1212 = vst.msk [vmem:[%s1210] ss:$8 sm:$0x0] %vm718, %v1208
        %s1213 = scalar_lea.vmem %s362, 672 [#allocation6]
        %v1214 = vld [vmem:[%s1213] sm:$0xff]
        %v1215 = vld [vmem:[%s1213 + $0x8] sm:$0xff]
        %v1216 = vld [vmem:[%s1213 + $0x10] sm:$0xff]
        %v1217 = vld [vmem:[%s1213 + $0x18] sm:$0xff]
        %v1218 = vld [vmem:[%s1213 + $0x20] sm:$0xff]
        %v1219 = vld [vmem:[%s1213 + $0x28] sm:$0xff]
        %v1220 = vld [vmem:[%s1213 + $0x30] sm:$0xff]
        %v1221 = vld [vmem:[%s1213 + $0x38] sm:$0xff]
        %v1222 = vld [vmem:[%s1213 + $0x40] sm:$0xff]
        %v1223 = vld [vmem:[%s1213 + $0x48] sm:$0xff]
        %v1224 = vld [vmem:[%s1213 + $0x50] sm:$0xff]
        %v1225 = vld [vmem:[%s1213 + $0x58] sm:$0xff]
        %v1226 = vmul.f32 %v530, %v1214
        %v1227 = vmul.f32 %v532, %v1215
        %v1228 = vmul.f32 %v619, %v1216
        %v1229 = vmul.f32 %v536, %v1217
        %v1230 = vmul.f32 %v538, %v1218
        %v1231 = vmul.f32 %v624, %v1219
        %v1232 = vmul.f32 %v542, %v1220
        %v1233 = vmul.f32 %v544, %v1221
        %v1234 = vmul.f32 %v629, %v1222
        %v1235 = vmul.f32 %v548, %v1223
        %v1236 = vmul.f32 %v550, %v1224
        %v1237 = vmul.f32 %v634, %v1225
        %v1238 = vadd.f32 %v1226, %v1229
        %v1239 = vadd.f32 %v1238, %v1232
        %v1240 = vadd.f32 %v1239, %v1235
        %v1241 = vrot.slane %v1240, 4
        %v1242 = vadd.f32 %v1240, %v1241
        %v1243 = vrot.slane %v1242, 2
        %v1244 = vadd.f32 %v1242, %v1243
        %v1245 = vrot.slane %v1244, 1
        %v1246 = vadd.f32 %v1244, %v1245
        %v1247 = vadd.f32 %v1227, %v1230
        %v1248 = vadd.f32 %v1247, %v1233
        %v1249 = vadd.f32 %v1248, %v1236
        %v1250 = vrot.slane %v1249, 4
        %v1251 = vadd.f32 %v1249, %v1250
        %v1252 = vrot.slane %v1251, 2
        %v1253 = vadd.f32 %v1251, %v1252
        %v1254 = vrot.slane %v1253, 1
        %v1255 = vadd.f32 %v1253, %v1254
        %v1256 = vadd.f32 %v1228, %v1231
        %v1257 = vadd.f32 %v1256, %v1234
        %v1258 = vadd.f32 %v1257, %v1237
        %v1259 = vrot.slane %v1258, 4
        %v1260 = vadd.f32 %v1258, %v1259
        %v1261 = vrot.slane %v1260, 2
        %v1262 = vadd.f32 %v1260, %v1261
        %v1263 = vrot.slane %v1262, 1
        %v1264 = vadd.f32 %v1262, %v1263
        %v1268 = vcombine.low %v1246, %v1255
        %v1270 = vunpack.c.l.s4 1966171168
        %v1271 = vunpack.c.0.s8 %v1270
        %v1272 = vlaneseq
        %v1273 = vshrl.u32 %v1272, 7
        %v1274 = vsub.s32 %v1271, %v1273
        %v1275 = vrot.slane %v1268, %v1274
        %v1277 = vunpack.c.l.s4 1966171168
        %v1278 = vunpack.c.0.s8 %v1277
        %v1279 = vlaneseq
        %v1280 = vshrl.u32 %v1279, 7
        %v1281 = vsub.s32 %v1278, %v1280
        %v1282 = vrot.slane %v1264, %v1281
        %v1283 = vcombine.low %v1275, %v1282
        %v1285 = vunpack.c.l.s4 1966171168
        %v1286 = vunpack.c.0.s8 %v1285
        %v1287 = vlaneseq
        %v1288 = vshrl.u32 %v1287, 7
        %v1289 = vsub.s32 %v1286, %v1288
        %v1290 = vrot.slane %v1283, %v1289
        %s1292 = scalar_lea.vmem [#allocation2], 7
        %1293 = vst.msk [vmem:[%s1292] ss:$8 sm:$0x7] %vm718, %v1290
        %1294 = vst.msk [vmem:[%s1292] ss:$8 sm:$0x0] %vm718, %v1290
        %s1295 = scalar_lea.vmem %s362, 768 [#allocation6]
        %v1296 = vld [vmem:[%s1295] sm:$0xff]
        %v1297 = vld [vmem:[%s1295 + $0x8] sm:$0xff]
        %v1298 = vld [vmem:[%s1295 + $0x10] sm:$0xff]
        %v1299 = vld [vmem:[%s1295 + $0x18] sm:$0xff]
        %v1300 = vld [vmem:[%s1295 + $0x20] sm:$0xff]
        %v1301 = vld [vmem:[%s1295 + $0x28] sm:$0xff]
        %v1302 = vld [vmem:[%s1295 + $0x30] sm:$0xff]
        %v1303 = vld [vmem:[%s1295 + $0x38] sm:$0xff]
        %v1304 = vld [vmem:[%s1295 + $0x40] sm:$0xff]
        %v1305 = vld [vmem:[%s1295 + $0x48] sm:$0xff]
        %v1306 = vld [vmem:[%s1295 + $0x50] sm:$0xff]
        %v1307 = vld [vmem:[%s1295 + $0x58] sm:$0xff]
        %v1308 = vmul.f32 %v530, %v1296
        %v1309 = vmul.f32 %v532, %v1297
        %v1310 = vmul.f32 %v619, %v1298
        %v1311 = vmul.f32 %v536, %v1299
        %v1312 = vmul.f32 %v538, %v1300
        %v1313 = vmul.f32 %v624, %v1301
        %v1314 = vmul.f32 %v542, %v1302
        %v1315 = vmul.f32 %v544, %v1303
        %v1316 = vmul.f32 %v629, %v1304
        %v1317 = vmul.f32 %v548, %v1305
        %v1318 = vmul.f32 %v550, %v1306
        %v1319 = vmul.f32 %v634, %v1307
        %v1320 = vadd.f32 %v1308, %v1311
        %v1321 = vadd.f32 %v1320, %v1314
        %v1322 = vadd.f32 %v1321, %v1317
        %v1323 = vrot.slane %v1322, 4
        %v1324 = vadd.f32 %v1322, %v1323
        %v1325 = vrot.slane %v1324, 2
        %v1326 = vadd.f32 %v1324, %v1325
        %v1327 = vrot.slane %v1326, 1
        %v1328 = vadd.f32 %v1326, %v1327
        %v1329 = vadd.f32 %v1309, %v1312
        %v1330 = vadd.f32 %v1329, %v1315
        %v1331 = vadd.f32 %v1330, %v1318
        %v1332 = vrot.slane %v1331, 4
        %v1333 = vadd.f32 %v1331, %v1332
        %v1334 = vrot.slane %v1333, 2
        %v1335 = vadd.f32 %v1333, %v1334
        %v1336 = vrot.slane %v1335, 1
        %v1337 = vadd.f32 %v1335, %v1336
        %v1338 = vadd.f32 %v1310, %v1313
        %v1339 = vadd.f32 %v1338, %v1316
        %v1340 = vadd.f32 %v1339, %v1319
        %v1341 = vrot.slane %v1340, 4
        %v1342 = vadd.f32 %v1340, %v1341
        %v1343 = vrot.slane %v1342, 2
        %v1344 = vadd.f32 %v1342, %v1343
        %v1345 = vrot.slane %v1344, 1
        %v1346 = vadd.f32 %v1344, %v1345
        %v1350 = vcombine.low %v1328, %v1337
        %v1352 = vunpack.c.l.s4 1966171168
        %v1353 = vunpack.c.0.s8 %v1352
        %v1354 = vlaneseq
        %v1355 = vshrl.u32 %v1354, 7
        %v1356 = vsub.s32 %v1353, %v1355
        %v1357 = vrot.slane %v1350, %v1356
        %v1359 = vunpack.c.l.s4 1966171168
        %v1360 = vunpack.c.0.s8 %v1359
        %v1361 = vlaneseq
        %v1362 = vshrl.u32 %v1361, 7
        %v1363 = vsub.s32 %v1360, %v1362
        %v1364 = vrot.slane %v1346, %v1363
        %v1365 = vcombine.low %v1357, %v1364
        %v1367 = vunpack.c.l.s4 1966171168
        %v1368 = vunpack.c.0.s8 %v1367
        %v1369 = vlaneseq
        %v1370 = vshrl.u32 %v1369, 7
        %v1371 = vsub.s32 %v1368, %v1370
        %v1372 = vrot.slane %v1365, %v1371
        %s1374 = scalar_lea.vmem [#allocation2], 24
        %1375 = vst.msk [vmem:[%s1374] ss:$8 sm:$0x7] %vm718, %v1372
        %1376 = vst.msk [vmem:[%s1374] ss:$8 sm:$0x0] %vm718, %v1372
        %s1377 = scalar_lea.vmem %s362, 864 [#allocation6]
        %v1378 = vld [vmem:[%s1377] sm:$0xff]
        %v1379 = vld [vmem:[%s1377 + $0x8] sm:$0xff]
        %v1380 = vld [vmem:[%s1377 + $0x10] sm:$0xff]
        %v1381 = vld [vmem:[%s1377 + $0x18] sm:$0xff]
        %v1382 = vld [vmem:[%s1377 + $0x20] sm:$0xff]
        %v1383 = vld [vmem:[%s1377 + $0x28] sm:$0xff]
        %v1384 = vld [vmem:[%s1377 + $0x30] sm:$0xff]
        %v1385 = vld [vmem:[%s1377 + $0x38] sm:$0xff]
        %v1386 = vld [vmem:[%s1377 + $0x40] sm:$0xff]
        %v1387 = vld [vmem:[%s1377 + $0x48] sm:$0xff]
        %v1388 = vld [vmem:[%s1377 + $0x50] sm:$0xff]
        %v1389 = vld [vmem:[%s1377 + $0x58] sm:$0xff]
        %v1390 = vmul.f32 %v530, %v1378
        %v1391 = vmul.f32 %v532, %v1379
        %v1392 = vmul.f32 %v619, %v1380
        %v1393 = vmul.f32 %v536, %v1381
        %v1394 = vmul.f32 %v538, %v1382
        %v1395 = vmul.f32 %v624, %v1383
        %v1396 = vmul.f32 %v542, %v1384
        %v1397 = vmul.f32 %v544, %v1385
        %v1398 = vmul.f32 %v629, %v1386
        %v1399 = vmul.f32 %v548, %v1387
        %v1400 = vmul.f32 %v550, %v1388
        %v1401 = vmul.f32 %v634, %v1389
        %v1402 = vadd.f32 %v1390, %v1393
        %v1403 = vadd.f32 %v1402, %v1396
        %v1404 = vadd.f32 %v1403, %v1399
        %v1405 = vrot.slane %v1404, 4
        %v1406 = vadd.f32 %v1404, %v1405
        %v1407 = vrot.slane %v1406, 2
        %v1408 = vadd.f32 %v1406, %v1407
        %v1409 = vrot.slane %v1408, 1
        %v1410 = vadd.f32 %v1408, %v1409
        %v1411 = vadd.f32 %v1391, %v1394
        %v1412 = vadd.f32 %v1411, %v1397
        %v1413 = vadd.f32 %v1412, %v1400
        %v1414 = vrot.slane %v1413, 4
        %v1415 = vadd.f32 %v1413, %v1414
        %v1416 = vrot.slane %v1415, 2
        %v1417 = vadd.f32 %v1415, %v1416
        %v1418 = vrot.slane %v1417, 1
        %v1419 = vadd.f32 %v1417, %v1418
        %v1420 = vadd.f32 %v1392, %v1395
        %v1421 = vadd.f32 %v1420, %v1398
        %v1422 = vadd.f32 %v1421, %v1401
        %v1423 = vrot.slane %v1422, 4
        %v1424 = vadd.f32 %v1422, %v1423
        %v1425 = vrot.slane %v1424, 2
        %v1426 = vadd.f32 %v1424, %v1425
        %v1427 = vrot.slane %v1426, 1
        %v1428 = vadd.f32 %v1426, %v1427
        %v1432 = vcombine.low %v1410, %v1419
        %v1434 = vunpack.c.l.s4 1966171168
        %v1435 = vunpack.c.0.s8 %v1434
        %v1436 = vlaneseq
        %v1437 = vshrl.u32 %v1436, 7
        %v1438 = vsub.s32 %v1435, %v1437
        %v1439 = vrot.slane %v1432, %v1438
        %v1441 = vunpack.c.l.s4 1966171168
        %v1442 = vunpack.c.0.s8 %v1441
        %v1443 = vlaneseq
        %v1444 = vshrl.u32 %v1443, 7
        %v1445 = vsub.s32 %v1442, %v1444
        %v1446 = vrot.slane %v1428, %v1445
        %v1447 = vcombine.low %v1439, %v1446
        %v1449 = vunpack.c.l.s4 1966171168
        %v1450 = vunpack.c.0.s8 %v1449
        %v1451 = vlaneseq
        %v1452 = vshrl.u32 %v1451, 7
        %v1453 = vsub.s32 %v1450, %v1452
        %v1454 = vrot.slane %v1447, %v1453
        %s1456 = scalar_lea.vmem [#allocation2], 25
        %1457 = vst.msk [vmem:[%s1456] ss:$8 sm:$0x7] %vm718, %v1454
        %1458 = vst.msk [vmem:[%s1456] ss:$8 sm:$0x0] %vm718, %v1454
        %s1459 = scalar_lea.vmem %s362, 960 [#allocation6]
        %v1460 = vld [vmem:[%s1459] sm:$0xff]
        %v1461 = vld [vmem:[%s1459 + $0x8] sm:$0xff]
        %v1462 = vld [vmem:[%s1459 + $0x10] sm:$0xff]
        %v1463 = vld [vmem:[%s1459 + $0x18] sm:$0xff]
        %v1464 = vld [vmem:[%s1459 + $0x20] sm:$0xff]
        %v1465 = vld [vmem:[%s1459 + $0x28] sm:$0xff]
        %v1466 = vld [vmem:[%s1459 + $0x30] sm:$0xff]
        %v1467 = vld [vmem:[%s1459 + $0x38] sm:$0xff]
        %v1468 = vld [vmem:[%s1459 + $0x40] sm:$0xff]
        %v1469 = vld [vmem:[%s1459 + $0x48] sm:$0xff]
        %v1470 = vld [vmem:[%s1459 + $0x50] sm:$0xff]
        %v1471 = vld [vmem:[%s1459 + $0x58] sm:$0xff]
        %v1472 = vmul.f32 %v530, %v1460
        %v1473 = vmul.f32 %v532, %v1461
        %v1474 = vmul.f32 %v619, %v1462
        %v1475 = vmul.f32 %v536, %v1463
        %v1476 = vmul.f32 %v538, %v1464
        %v1477 = vmul.f32 %v624, %v1465
        %v1478 = vmul.f32 %v542, %v1466
        %v1479 = vmul.f32 %v544, %v1467
        %v1480 = vmul.f32 %v629, %v1468
        %v1481 = vmul.f32 %v548, %v1469
        %v1482 = vmul.f32 %v550, %v1470
        %v1483 = vmul.f32 %v634, %v1471
        %v1484 = vadd.f32 %v1472, %v1475
        %v1485 = vadd.f32 %v1484, %v1478
        %v1486 = vadd.f32 %v1485, %v1481
        %v1487 = vrot.slane %v1486, 4
        %v1488 = vadd.f32 %v1486, %v1487
        %v1489 = vrot.slane %v1488, 2
        %v1490 = vadd.f32 %v1488, %v1489
        %v1491 = vrot.slane %v1490, 1
        %v1492 = vadd.f32 %v1490, %v1491
        %v1493 = vadd.f32 %v1473, %v1476
        %v1494 = vadd.f32 %v1493, %v1479
        %v1495 = vadd.f32 %v1494, %v1482
        %v1496 = vrot.slane %v1495, 4
        %v1497 = vadd.f32 %v1495, %v1496
        %v1498 = vrot.slane %v1497, 2
        %v1499 = vadd.f32 %v1497, %v1498
        %v1500 = vrot.slane %v1499, 1
        %v1501 = vadd.f32 %v1499, %v1500
        %v1502 = vadd.f32 %v1474, %v1477
        %v1503 = vadd.f32 %v1502, %v1480
        %v1504 = vadd.f32 %v1503, %v1483
        %v1505 = vrot.slane %v1504, 4
        %v1506 = vadd.f32 %v1504, %v1505
        %v1507 = vrot.slane %v1506, 2
        %v1508 = vadd.f32 %v1506, %v1507
        %v1509 = vrot.slane %v1508, 1
        %v1510 = vadd.f32 %v1508, %v1509
        %v1514 = vcombine.low %v1492, %v1501
        %v1516 = vunpack.c.l.s4 1966171168
        %v1517 = vunpack.c.0.s8 %v1516
        %v1518 = vlaneseq
        %v1519 = vshrl.u32 %v1518, 7
        %v1520 = vsub.s32 %v1517, %v1519
        %v1521 = vrot.slane %v1514, %v1520
        %v1523 = vunpack.c.l.s4 1966171168
        %v1524 = vunpack.c.0.s8 %v1523
        %v1525 = vlaneseq
        %v1526 = vshrl.u32 %v1525, 7
        %v1527 = vsub.s32 %v1524, %v1526
        %v1528 = vrot.slane %v1510, %v1527
        %v1529 = vcombine.low %v1521, %v1528
        %v1531 = vunpack.c.l.s4 1966171168
        %v1532 = vunpack.c.0.s8 %v1531
        %v1533 = vlaneseq
        %v1534 = vshrl.u32 %v1533, 7
        %v1535 = vsub.s32 %v1532, %v1534
        %v1536 = vrot.slane %v1529, %v1535
        %s1538 = scalar_lea.vmem [#allocation2], 26
        %1539 = vst.msk [vmem:[%s1538] ss:$8 sm:$0x7] %vm718, %v1536
        %1540 = vst.msk [vmem:[%s1538] ss:$8 sm:$0x0] %vm718, %v1536
        %s1541 = scalar_lea.vmem %s362, 1056 [#allocation6]
        %v1542 = vld [vmem:[%s1541] sm:$0xff]
        %v1543 = vld [vmem:[%s1541 + $0x8] sm:$0xff]
        %v1544 = vld [vmem:[%s1541 + $0x10] sm:$0xff]
        %v1545 = vld [vmem:[%s1541 + $0x18] sm:$0xff]
        %v1546 = vld [vmem:[%s1541 + $0x20] sm:$0xff]
        %v1547 = vld [vmem:[%s1541 + $0x28] sm:$0xff]
        %v1548 = vld [vmem:[%s1541 + $0x30] sm:$0xff]
        %v1549 = vld [vmem:[%s1541 + $0x38] sm:$0xff]
        %v1550 = vld [vmem:[%s1541 + $0x40] sm:$0xff]
        %v1551 = vld [vmem:[%s1541 + $0x48] sm:$0xff]
        %v1552 = vld [vmem:[%s1541 + $0x50] sm:$0xff]
        %v1553 = vld [vmem:[%s1541 + $0x58] sm:$0xff]
        %v1554 = vmul.f32 %v530, %v1542
        %v1555 = vmul.f32 %v532, %v1543
        %v1556 = vmul.f32 %v619, %v1544
        %v1557 = vmul.f32 %v536, %v1545
        %v1558 = vmul.f32 %v538, %v1546
        %v1559 = vmul.f32 %v624, %v1547
        %v1560 = vmul.f32 %v542, %v1548
        %v1561 = vmul.f32 %v544, %v1549
        %v1562 = vmul.f32 %v629, %v1550
        %v1563 = vmul.f32 %v548, %v1551
        %v1564 = vmul.f32 %v550, %v1552
        %v1565 = vmul.f32 %v634, %v1553
        %v1566 = vadd.f32 %v1554, %v1557
        %v1567 = vadd.f32 %v1566, %v1560
        %v1568 = vadd.f32 %v1567, %v1563
        %v1569 = vrot.slane %v1568, 4
        %v1570 = vadd.f32 %v1568, %v1569
        %v1571 = vrot.slane %v1570, 2
        %v1572 = vadd.f32 %v1570, %v1571
        %v1573 = vrot.slane %v1572, 1
        %v1574 = vadd.f32 %v1572, %v1573
        %v1575 = vadd.f32 %v1555, %v1558
        %v1576 = vadd.f32 %v1575, %v1561
        %v1577 = vadd.f32 %v1576, %v1564
        %v1578 = vrot.slane %v1577, 4
        %v1579 = vadd.f32 %v1577, %v1578
        %v1580 = vrot.slane %v1579, 2
        %v1581 = vadd.f32 %v1579, %v1580
        %v1582 = vrot.slane %v1581, 1
        %v1583 = vadd.f32 %v1581, %v1582
        %v1584 = vadd.f32 %v1556, %v1559
        %v1585 = vadd.f32 %v1584, %v1562
        %v1586 = vadd.f32 %v1585, %v1565
        %v1587 = vrot.slane %v1586, 4
        %v1588 = vadd.f32 %v1586, %v1587
        %v1589 = vrot.slane %v1588, 2
        %v1590 = vadd.f32 %v1588, %v1589
        %v1591 = vrot.slane %v1590, 1
        %v1592 = vadd.f32 %v1590, %v1591
        %v1596 = vcombine.low %v1574, %v1583
        %v1598 = vunpack.c.l.s4 1966171168
        %v1599 = vunpack.c.0.s8 %v1598
        %v1600 = vlaneseq
        %v1601 = vshrl.u32 %v1600, 7
        %v1602 = vsub.s32 %v1599, %v1601
        %v1603 = vrot.slane %v1596, %v1602
        %v1605 = vunpack.c.l.s4 1966171168
        %v1606 = vunpack.c.0.s8 %v1605
        %v1607 = vlaneseq
        %v1608 = vshrl.u32 %v1607, 7
        %v1609 = vsub.s32 %v1606, %v1608
        %v1610 = vrot.slane %v1592, %v1609
        %v1611 = vcombine.low %v1603, %v1610
        %v1613 = vunpack.c.l.s4 1966171168
        %v1614 = vunpack.c.0.s8 %v1613
        %v1615 = vlaneseq
        %v1616 = vshrl.u32 %v1615, 7
        %v1617 = vsub.s32 %v1614, %v1616
        %v1618 = vrot.slane %v1611, %v1617
        %s1620 = scalar_lea.vmem [#allocation2], 27
        %1621 = vst.msk [vmem:[%s1620] ss:$8 sm:$0x7] %vm718, %v1618
        %1622 = vst.msk [vmem:[%s1620] ss:$8 sm:$0x0] %vm718, %v1618
        %s1623 = scalar_lea.vmem %s362, 1152 [#allocation6]
        %v1624 = vld [vmem:[%s1623] sm:$0xff]
        %v1625 = vld [vmem:[%s1623 + $0x8] sm:$0xff]
        %v1626 = vld [vmem:[%s1623 + $0x10] sm:$0xff]
        %v1627 = vld [vmem:[%s1623 + $0x18] sm:$0xff]
        %v1628 = vld [vmem:[%s1623 + $0x20] sm:$0xff]
        %v1629 = vld [vmem:[%s1623 + $0x28] sm:$0xff]
        %v1630 = vld [vmem:[%s1623 + $0x30] sm:$0xff]
        %v1631 = vld [vmem:[%s1623 + $0x38] sm:$0xff]
        %v1632 = vld [vmem:[%s1623 + $0x40] sm:$0xff]
        %v1633 = vld [vmem:[%s1623 + $0x48] sm:$0xff]
        %v1634 = vld [vmem:[%s1623 + $0x50] sm:$0xff]
        %v1635 = vld [vmem:[%s1623 + $0x58] sm:$0xff]
        %v1636 = vmul.f32 %v530, %v1624
        %v1637 = vmul.f32 %v532, %v1625
        %v1638 = vmul.f32 %v619, %v1626
        %v1639 = vmul.f32 %v536, %v1627
        %v1640 = vmul.f32 %v538, %v1628
        %v1641 = vmul.f32 %v624, %v1629
        %v1642 = vmul.f32 %v542, %v1630
        %v1643 = vmul.f32 %v544, %v1631
        %v1644 = vmul.f32 %v629, %v1632
        %v1645 = vmul.f32 %v548, %v1633
        %v1646 = vmul.f32 %v550, %v1634
        %v1647 = vmul.f32 %v634, %v1635
        %v1648 = vadd.f32 %v1636, %v1639
        %v1649 = vadd.f32 %v1648, %v1642
        %v1650 = vadd.f32 %v1649, %v1645
        %v1651 = vrot.slane %v1650, 4
        %v1652 = vadd.f32 %v1650, %v1651
        %v1653 = vrot.slane %v1652, 2
        %v1654 = vadd.f32 %v1652, %v1653
        %v1655 = vrot.slane %v1654, 1
        %v1656 = vadd.f32 %v1654, %v1655
        %v1657 = vadd.f32 %v1637, %v1640
        %v1658 = vadd.f32 %v1657, %v1643
        %v1659 = vadd.f32 %v1658, %v1646
        %v1660 = vrot.slane %v1659, 4
        %v1661 = vadd.f32 %v1659, %v1660
        %v1662 = vrot.slane %v1661, 2
        %v1663 = vadd.f32 %v1661, %v1662
        %v1664 = vrot.slane %v1663, 1
        %v1665 = vadd.f32 %v1663, %v1664
        %v1666 = vadd.f32 %v1638, %v1641
        %v1667 = vadd.f32 %v1666, %v1644
        %v1668 = vadd.f32 %v1667, %v1647
        %v1669 = vrot.slane %v1668, 4
        %v1670 = vadd.f32 %v1668, %v1669
        %v1671 = vrot.slane %v1670, 2
        %v1672 = vadd.f32 %v1670, %v1671
        %v1673 = vrot.slane %v1672, 1
        %v1674 = vadd.f32 %v1672, %v1673
        %v1678 = vcombine.low %v1656, %v1665
        %v1680 = vunpack.c.l.s4 1966171168
        %v1681 = vunpack.c.0.s8 %v1680
        %v1682 = vlaneseq
        %v1683 = vshrl.u32 %v1682, 7
        %v1684 = vsub.s32 %v1681, %v1683
        %v1685 = vrot.slane %v1678, %v1684
        %v1687 = vunpack.c.l.s4 1966171168
        %v1688 = vunpack.c.0.s8 %v1687
        %v1689 = vlaneseq
        %v1690 = vshrl.u32 %v1689, 7
        %v1691 = vsub.s32 %v1688, %v1690
        %v1692 = vrot.slane %v1674, %v1691
        %v1693 = vcombine.low %v1685, %v1692
        %v1695 = vunpack.c.l.s4 1966171168
        %v1696 = vunpack.c.0.s8 %v1695
        %v1697 = vlaneseq
        %v1698 = vshrl.u32 %v1697, 7
        %v1699 = vsub.s32 %v1696, %v1698
        %v1700 = vrot.slane %v1693, %v1699
        %s1702 = scalar_lea.vmem [#allocation2], 28
        %1703 = vst.msk [vmem:[%s1702] ss:$8 sm:$0x7] %vm718, %v1700
        %1704 = vst.msk [vmem:[%s1702] ss:$8 sm:$0x0] %vm718, %v1700
        %s1705 = scalar_lea.vmem %s362, 1248 [#allocation6]
        %v1706 = vld [vmem:[%s1705] sm:$0xff]
        %v1707 = vld [vmem:[%s1705 + $0x8] sm:$0xff]
        %v1708 = vld [vmem:[%s1705 + $0x10] sm:$0xff]
        %v1709 = vld [vmem:[%s1705 + $0x18] sm:$0xff]
        %v1710 = vld [vmem:[%s1705 + $0x20] sm:$0xff]
        %v1711 = vld [vmem:[%s1705 + $0x28] sm:$0xff]
        %v1712 = vld [vmem:[%s1705 + $0x30] sm:$0xff]
        %v1713 = vld [vmem:[%s1705 + $0x38] sm:$0xff]
        %v1714 = vld [vmem:[%s1705 + $0x40] sm:$0xff]
        %v1715 = vld [vmem:[%s1705 + $0x48] sm:$0xff]
        %v1716 = vld [vmem:[%s1705 + $0x50] sm:$0xff]
        %v1717 = vld [vmem:[%s1705 + $0x58] sm:$0xff]
        %v1718 = vmul.f32 %v530, %v1706
        %v1719 = vmul.f32 %v532, %v1707
        %v1720 = vmul.f32 %v619, %v1708
        %v1721 = vmul.f32 %v536, %v1709
        %v1722 = vmul.f32 %v538, %v1710
        %v1723 = vmul.f32 %v624, %v1711
        %v1724 = vmul.f32 %v542, %v1712
        %v1725 = vmul.f32 %v544, %v1713
        %v1726 = vmul.f32 %v629, %v1714
        %v1727 = vmul.f32 %v548, %v1715
        %v1728 = vmul.f32 %v550, %v1716
        %v1729 = vmul.f32 %v634, %v1717
        %v1730 = vadd.f32 %v1718, %v1721
        %v1731 = vadd.f32 %v1730, %v1724
        %v1732 = vadd.f32 %v1731, %v1727
        %v1733 = vrot.slane %v1732, 4
        %v1734 = vadd.f32 %v1732, %v1733
        %v1735 = vrot.slane %v1734, 2
        %v1736 = vadd.f32 %v1734, %v1735
        %v1737 = vrot.slane %v1736, 1
        %v1738 = vadd.f32 %v1736, %v1737
        %v1739 = vadd.f32 %v1719, %v1722
        %v1740 = vadd.f32 %v1739, %v1725
        %v1741 = vadd.f32 %v1740, %v1728
        %v1742 = vrot.slane %v1741, 4
        %v1743 = vadd.f32 %v1741, %v1742
        %v1744 = vrot.slane %v1743, 2
        %v1745 = vadd.f32 %v1743, %v1744
        %v1746 = vrot.slane %v1745, 1
        %v1747 = vadd.f32 %v1745, %v1746
        %v1748 = vadd.f32 %v1720, %v1723
        %v1749 = vadd.f32 %v1748, %v1726
        %v1750 = vadd.f32 %v1749, %v1729
        %v1751 = vrot.slane %v1750, 4
        %v1752 = vadd.f32 %v1750, %v1751
        %v1753 = vrot.slane %v1752, 2
        %v1754 = vadd.f32 %v1752, %v1753
        %v1755 = vrot.slane %v1754, 1
        %v1756 = vadd.f32 %v1754, %v1755
        %v1760 = vcombine.low %v1738, %v1747
        %v1762 = vunpack.c.l.s4 1966171168
        %v1763 = vunpack.c.0.s8 %v1762
        %v1764 = vlaneseq
        %v1765 = vshrl.u32 %v1764, 7
        %v1766 = vsub.s32 %v1763, %v1765
        %v1767 = vrot.slane %v1760, %v1766
        %v1769 = vunpack.c.l.s4 1966171168
        %v1770 = vunpack.c.0.s8 %v1769
        %v1771 = vlaneseq
        %v1772 = vshrl.u32 %v1771, 7
        %v1773 = vsub.s32 %v1770, %v1772
        %v1774 = vrot.slane %v1756, %v1773
        %v1775 = vcombine.low %v1767, %v1774
        %v1777 = vunpack.c.l.s4 1966171168
        %v1778 = vunpack.c.0.s8 %v1777
        %v1779 = vlaneseq
        %v1780 = vshrl.u32 %v1779, 7
        %v1781 = vsub.s32 %v1778, %v1780
        %v1782 = vrot.slane %v1775, %v1781
        %s1784 = scalar_lea.vmem [#allocation2], 29
        %1785 = vst.msk [vmem:[%s1784] ss:$8 sm:$0x7] %vm718, %v1782
        %1786 = vst.msk [vmem:[%s1784] ss:$8 sm:$0x0] %vm718, %v1782
        %s1787 = scalar_lea.vmem %s362, 1344 [#allocation6]
        %v1788 = vld [vmem:[%s1787] sm:$0xff]
        %v1789 = vld [vmem:[%s1787 + $0x8] sm:$0xff]
        %v1790 = vld [vmem:[%s1787 + $0x10] sm:$0xff]
        %v1791 = vld [vmem:[%s1787 + $0x18] sm:$0xff]
        %v1792 = vld [vmem:[%s1787 + $0x20] sm:$0xff]
        %v1793 = vld [vmem:[%s1787 + $0x28] sm:$0xff]
        %v1794 = vld [vmem:[%s1787 + $0x30] sm:$0xff]
        %v1795 = vld [vmem:[%s1787 + $0x38] sm:$0xff]
        %v1796 = vld [vmem:[%s1787 + $0x40] sm:$0xff]
        %v1797 = vld [vmem:[%s1787 + $0x48] sm:$0xff]
        %v1798 = vld [vmem:[%s1787 + $0x50] sm:$0xff]
        %v1799 = vld [vmem:[%s1787 + $0x58] sm:$0xff]
        %v1800 = vmul.f32 %v530, %v1788
        %v1801 = vmul.f32 %v532, %v1789
        %v1802 = vmul.f32 %v619, %v1790
        %v1803 = vmul.f32 %v536, %v1791
        %v1804 = vmul.f32 %v538, %v1792
        %v1805 = vmul.f32 %v624, %v1793
        %v1806 = vmul.f32 %v542, %v1794
        %v1807 = vmul.f32 %v544, %v1795
        %v1808 = vmul.f32 %v629, %v1796
        %v1809 = vmul.f32 %v548, %v1797
        %v1810 = vmul.f32 %v550, %v1798
        %v1811 = vmul.f32 %v634, %v1799
        %v1812 = vadd.f32 %v1800, %v1803
        %v1813 = vadd.f32 %v1812, %v1806
        %v1814 = vadd.f32 %v1813, %v1809
        %v1815 = vrot.slane %v1814, 4
        %v1816 = vadd.f32 %v1814, %v1815
        %v1817 = vrot.slane %v1816, 2
        %v1818 = vadd.f32 %v1816, %v1817
        %v1819 = vrot.slane %v1818, 1
        %v1820 = vadd.f32 %v1818, %v1819
        %v1821 = vadd.f32 %v1801, %v1804
        %v1822 = vadd.f32 %v1821, %v1807
        %v1823 = vadd.f32 %v1822, %v1810
        %v1824 = vrot.slane %v1823, 4
        %v1825 = vadd.f32 %v1823, %v1824
        %v1826 = vrot.slane %v1825, 2
        %v1827 = vadd.f32 %v1825, %v1826
        %v1828 = vrot.slane %v1827, 1
        %v1829 = vadd.f32 %v1827, %v1828
        %v1830 = vadd.f32 %v1802, %v1805
        %v1831 = vadd.f32 %v1830, %v1808
        %v1832 = vadd.f32 %v1831, %v1811
        %v1833 = vrot.slane %v1832, 4
        %v1834 = vadd.f32 %v1832, %v1833
        %v1835 = vrot.slane %v1834, 2
        %v1836 = vadd.f32 %v1834, %v1835
        %v1837 = vrot.slane %v1836, 1
        %v1838 = vadd.f32 %v1836, %v1837
        %v1842 = vcombine.low %v1820, %v1829
        %v1844 = vunpack.c.l.s4 1966171168
        %v1845 = vunpack.c.0.s8 %v1844
        %v1846 = vlaneseq
        %v1847 = vshrl.u32 %v1846, 7
        %v1848 = vsub.s32 %v1845, %v1847
        %v1849 = vrot.slane %v1842, %v1848
        %v1851 = vunpack.c.l.s4 1966171168
        %v1852 = vunpack.c.0.s8 %v1851
        %v1853 = vlaneseq
        %v1854 = vshrl.u32 %v1853, 7
        %v1855 = vsub.s32 %v1852, %v1854
        %v1856 = vrot.slane %v1838, %v1855
        %v1857 = vcombine.low %v1849, %v1856
        %v1859 = vunpack.c.l.s4 1966171168
        %v1860 = vunpack.c.0.s8 %v1859
        %v1861 = vlaneseq
        %v1862 = vshrl.u32 %v1861, 7
        %v1863 = vsub.s32 %v1860, %v1862
        %v1864 = vrot.slane %v1857, %v1863
        %s1866 = scalar_lea.vmem [#allocation2], 30
        %1867 = vst.msk [vmem:[%s1866] ss:$8 sm:$0x7] %vm718, %v1864
        %1868 = vst.msk [vmem:[%s1866] ss:$8 sm:$0x0] %vm718, %v1864
        %s1869 = scalar_lea.vmem %s362, 1440 [#allocation6]
        %v1870 = vld [vmem:[%s1869] sm:$0xff]
        %v1871 = vld [vmem:[%s1869 + $0x8] sm:$0xff]
        %v1872 = vld [vmem:[%s1869 + $0x10] sm:$0xff]
        %v1873 = vld [vmem:[%s1869 + $0x18] sm:$0xff]
        %v1874 = vld [vmem:[%s1869 + $0x20] sm:$0xff]
        %v1875 = vld [vmem:[%s1869 + $0x28] sm:$0xff]
        %v1876 = vld [vmem:[%s1869 + $0x30] sm:$0xff]
        %v1877 = vld [vmem:[%s1869 + $0x38] sm:$0xff]
        %v1878 = vld [vmem:[%s1869 + $0x40] sm:$0xff]
        %v1879 = vld [vmem:[%s1869 + $0x48] sm:$0xff]
        %v1880 = vld [vmem:[%s1869 + $0x50] sm:$0xff]
        %v1881 = vld [vmem:[%s1869 + $0x58] sm:$0xff]
        %v1882 = vmul.f32 %v530, %v1870
        %v1883 = vmul.f32 %v532, %v1871
        %v1884 = vmul.f32 %v619, %v1872
        %v1885 = vmul.f32 %v536, %v1873
        %v1886 = vmul.f32 %v538, %v1874
        %v1887 = vmul.f32 %v624, %v1875
        %v1888 = vmul.f32 %v542, %v1876
        %v1889 = vmul.f32 %v544, %v1877
        %v1890 = vmul.f32 %v629, %v1878
        %v1891 = vmul.f32 %v548, %v1879
        %v1892 = vmul.f32 %v550, %v1880
        %v1893 = vmul.f32 %v634, %v1881
        %v1894 = vadd.f32 %v1882, %v1885
        %v1895 = vadd.f32 %v1894, %v1888
        %v1896 = vadd.f32 %v1895, %v1891
        %v1897 = vrot.slane %v1896, 4
        %v1898 = vadd.f32 %v1896, %v1897
        %v1899 = vrot.slane %v1898, 2
        %v1900 = vadd.f32 %v1898, %v1899
        %v1901 = vrot.slane %v1900, 1
        %v1902 = vadd.f32 %v1900, %v1901
        %v1903 = vadd.f32 %v1883, %v1886
        %v1904 = vadd.f32 %v1903, %v1889
        %v1905 = vadd.f32 %v1904, %v1892
        %v1906 = vrot.slane %v1905, 4
        %v1907 = vadd.f32 %v1905, %v1906
        %v1908 = vrot.slane %v1907, 2
        %v1909 = vadd.f32 %v1907, %v1908
        %v1910 = vrot.slane %v1909, 1
        %v1911 = vadd.f32 %v1909, %v1910
        %v1912 = vadd.f32 %v1884, %v1887
        %v1913 = vadd.f32 %v1912, %v1890
        %v1914 = vadd.f32 %v1913, %v1893
        %v1915 = vrot.slane %v1914, 4
        %v1916 = vadd.f32 %v1914, %v1915
        %v1917 = vrot.slane %v1916, 2
        %v1918 = vadd.f32 %v1916, %v1917
        %v1919 = vrot.slane %v1918, 1
        %v1920 = vadd.f32 %v1918, %v1919
        %v1924 = vcombine.low %v1902, %v1911
        %v1926 = vunpack.c.l.s4 1966171168
        %v1927 = vunpack.c.0.s8 %v1926
        %v1928 = vlaneseq
        %v1929 = vshrl.u32 %v1928, 7
        %v1930 = vsub.s32 %v1927, %v1929
        %v1931 = vrot.slane %v1924, %v1930
        %v1933 = vunpack.c.l.s4 1966171168
        %v1934 = vunpack.c.0.s8 %v1933
        %v1935 = vlaneseq
        %v1936 = vshrl.u32 %v1935, 7
        %v1937 = vsub.s32 %v1934, %v1936
        %v1938 = vrot.slane %v1920, %v1937
        %v1939 = vcombine.low %v1931, %v1938
        %v1941 = vunpack.c.l.s4 1966171168
        %v1942 = vunpack.c.0.s8 %v1941
        %v1943 = vlaneseq
        %v1944 = vshrl.u32 %v1943, 7
        %v1945 = vsub.s32 %v1942, %v1944
        %v1946 = vrot.slane %v1939, %v1945
        %s1948 = scalar_lea.vmem [#allocation2], 31
        %1949 = vst.msk [vmem:[%s1948] ss:$8 sm:$0x7] %vm718, %v1946
        %1950 = vst.msk [vmem:[%s1948] ss:$8 sm:$0x0] %vm718, %v1946
        %v1951 = vld [vmem:[#allocation2] sm:$0xff]
        %v1952 = vld [vmem:[#allocation2 + $0x8] sm:$0xff]
        %v1953 = vld [vmem:[#allocation2 + $0x10] sm:$0xff]
        %v1954 = vld [vmem:[#allocation2 + $0x18] sm:$0xff]
        %v1955 = vld [vmem:[#allocation2 + $0x20] sm:$0xff]
        %v1956 = vld [vmem:[#allocation2 + $0x28] sm:$0xff]
        %v1957 = vmax.f32 %v1951, %v1954
        %v1958 = vrot.slane %v1957, 4
        %v1959 = vmax.f32 %v1957, %v1958
        %v1960 = vrot.slane %v1959, 2
        %v1961 = vmax.f32 %v1959, %v1960
        %v1962 = vrot.slane %v1961, 1
        %v1963 = vmax.f32 %v1961, %v1962
        %v1964 = vmax.f32 %v1952, %v1955
        %v1965 = vrot.slane %v1964, 4
        %v1966 = vmax.f32 %v1964, %v1965
        %v1967 = vrot.slane %v1966, 2
        %v1968 = vmax.f32 %v1966, %v1967
        %v1969 = vrot.slane %v1968, 1
        %v1970 = vmax.f32 %v1968, %v1969
        %v1971 = vmax.f32 %v1953, %v1956
        %v1972 = vrot.slane %v1971, 4
        %v1973 = vmax.f32 %v1971, %v1972
        %v1974 = vrot.slane %v1973, 2
        %v1975 = vmax.f32 %v1973, %v1974
        %v1976 = vrot.slane %v1975, 1
        %v1977 = vmax.f32 %v1975, %v1976
        %v1978 = vsub.f32 %v1951, %v1963
        %v1979 = vsub.f32 %v1952, %v1970
        %v1980 = vsub.f32 %v1953, %v1977
        %v1981 = vsub.f32 %v1954, %v1963
        %v1982 = vsub.f32 %v1955, %v1970
        %v1983 = vsub.f32 %v1956, %v1977
        %v1984 = vmul.f32 %v1978, 1.442695
        %v1985 = vpow.pop %v1984
        %v1986 = vmul.f32 %v1979, 1.442695
        %v1987 = vpow.pop %v1986
        %v1988 = vmul.f32 %v1980, 1.442695
        %v1989 = vpow.pop %v1988
        %v1990 = vmul.f32 %v1981, 1.442695
        %v1991 = vpow.pop %v1990
        %v1992 = vmul.f32 %v1982, 1.442695
        %v1993 = vpow.pop %v1992
        %v1994 = vmul.f32 %v1983, 1.442695
        %v1995 = vpow.pop %v1994
        %v1996 = vadd.f32 %v1985, %v1991
        %v1997 = vrot.slane %v1996, 4
        %v1998 = vadd.f32 %v1996, %v1997
        %v1999 = vrot.slane %v1998, 2
        %v2000 = vadd.f32 %v1998, %v1999
        %v2001 = vrot.slane %v2000, 1
        %v2002 = vadd.f32 %v2000, %v2001
        %v2003 = vadd.f32 %v1987, %v1993
        %v2004 = vrot.slane %v2003, 4
        %v2005 = vadd.f32 %v2003, %v2004
        %v2006 = vrot.slane %v2005, 2
        %v2007 = vadd.f32 %v2005, %v2006
        %v2008 = vrot.slane %v2007, 1
        %v2009 = vadd.f32 %v2007, %v2008
        %v2010 = vadd.f32 %v1989, %v1995
        %v2011 = vrot.slane %v2010, 4
        %v2012 = vadd.f32 %v2010, %v2011
        %v2013 = vrot.slane %v2012, 2
        %v2014 = vadd.f32 %v2012, %v2013
        %v2015 = vrot.slane %v2014, 1
        %v2016 = vadd.f32 %v2014, %v2015
        %v2017 = vrcp.pop %v2002
        %v2018 = vmul.f32 1.0, %v2017
        %v2019 = vrcp.pop %v2009
        %v2020 = vmul.f32 1.0, %v2019
        %v2021 = vrcp.pop %v2016
        %v2022 = vmul.f32 1.0, %v2021
        %v2023 = vmul.f32 %v1985, %v2018
        %v2024 = vmul.f32 %v1987, %v2020
        %v2025 = vmul.f32 %v1989, %v2022
        %v2026 = vmul.f32 %v1991, %v2018
        %v2027 = vmul.f32 %v1993, %v2020
        %v2028 = vmul.f32 %v1995, %v2022
        %2029 = vst [vmem:[%s428] sm:$0xff] %v2023
        %2030 = vst [vmem:[%s428 + $0x8] sm:$0xff] %v2024
        %2031 = vst [vmem:[%s428 + $0x10] sm:$0xff] %v2025
        %2032 = vst [vmem:[%s428 + $0x18] sm:$0xff] %v2026
        %2033 = vst [vmem:[%s428 + $0x20] sm:$0xff] %v2027
        %2034 = vst [vmem:[%s428 + $0x28] sm:$0xff] %v2028
        %v2035 = vld [vmem:[%s383] ss:$8 sm:$0x7]
        %s2036 = scalar_lea.vmem %s383, 1 [#allocation12]
        %v2037 = vld [vmem:[%s2036] ss:$8 sm:$0x7]
        %v2038 = vlaneseq
        %v2039 = vshrl.u32 %v2038, 7
        %v2040 = vadd.s32 %v2039, 8
        %v2041 = vcvt.s32.f32 %v2039
        %v2042 = vcvt.s32.f32 %v2040
        %v2043 = vsub.f32 15.0, %v2041
        %v2044 = vsub.f32 15.0, %v2042
        %v2045 = vsub.f32 0.0, %v2037
        %v2047 = vlaneseq
        %v2048 = vshrl.u32 %v2047, 7
        %v2049 = vsub.s32 0, %v2048
        %v2050 = vrot.slane %v2045, %v2049
        %v2051 = vlaneseq
        %v2052 = vshrl.u32 %v2051, 7
        %v2053 = vsub.s32 1, %v2052
        %v2054 = vrot.slane %v2045, %v2053
        %v2055 = vlaneseq
        %v2056 = vshrl.u32 %v2055, 7
        %v2057 = vsub.s32 2, %v2056
        %v2058 = vrot.slane %v2045, %v2057
        %v2062 = vmul.f32 %v2050, %v2043
        %v2063 = vmul.f32 %v2054, %v2043
        %v2064 = vmul.f32 %v2058, %v2043
        %v2065 = vmul.f32 %v2050, %v2044
        %v2066 = vmul.f32 %v2054, %v2044
        %v2067 = vmul.f32 %v2058, %v2044
        %v2068 = vmul.f32 %v2062, 1.442695
        %v2069 = vpow.pop %v2068
        %v2070 = vmul.f32 %v2063, 1.442695
        %v2071 = vpow.pop %v2070
        %v2072 = vmul.f32 %v2064, 1.442695
        %v2073 = vpow.pop %v2072
        %v2074 = vmul.f32 %v2065, 1.442695
        %v2075 = vpow.pop %v2074
        %v2076 = vmul.f32 %v2066, 1.442695
        %v2077 = vpow.pop %v2076
        %v2078 = vmul.f32 %v2067, 1.442695
        %v2079 = vpow.pop %v2078
        %v2081 = vlaneseq
        %v2082 = vshrl.u32 %v2081, 7
        %v2083 = vsub.s32 0, %v2082
        %v2084 = vrot.slane %v2035, %v2083
        %v2085 = vlaneseq
        %v2086 = vshrl.u32 %v2085, 7
        %v2087 = vsub.s32 1, %v2086
        %v2088 = vrot.slane %v2035, %v2087
        %v2089 = vlaneseq
        %v2090 = vshrl.u32 %v2089, 7
        %v2091 = vsub.s32 2, %v2090
        %v2092 = vrot.slane %v2035, %v2091
        %v2096 = vmul.f32 %v2084, %v2069
        %v2097 = vmul.f32 %v2088, %v2071
        %v2098 = vmul.f32 %v2092, %v2073
        %v2099 = vmul.f32 %v2084, %v2075
        %v2100 = vmul.f32 %v2088, %v2077
        %v2101 = vmul.f32 %v2092, %v2079
        %v2102 = vld [vmem:[%s362] sm:$0xff]
        %v2103 = vld [vmem:[%s362 + $0x8] sm:$0xff]
        %v2104 = vld [vmem:[%s362 + $0x10] sm:$0xff]
        %v2105 = vld [vmem:[%s362 + $0x18] sm:$0xff]
        %v2106 = vld [vmem:[%s362 + $0x20] sm:$0xff]
        %v2107 = vld [vmem:[%s362 + $0x28] sm:$0xff]
        %v2108 = vld [vmem:[%s362 + $0x30] sm:$0xff]
        %v2109 = vld [vmem:[%s362 + $0x38] sm:$0xff]
        %v2110 = vld [vmem:[%s362 + $0x40] sm:$0xff]
        %v2111 = vld [vmem:[%s362 + $0x48] sm:$0xff]
        %v2112 = vld [vmem:[%s362 + $0x50] sm:$0xff]
        %v2113 = vld [vmem:[%s362 + $0x58] sm:$0xff]
        %v2114 = vlaneseq
        %v2115 = vshrl.u32 %v2114, 7
        %v2116 = vsub.s32 0, %v2115
        %v2117 = vrot.slane %v2023, %v2116
        %v2118 = vlaneseq
        %v2119 = vshrl.u32 %v2118, 7
        %v2120 = vsub.s32 0, %v2119
        %v2121 = vrot.slane %v2024, %v2120
        %v2122 = vlaneseq
        %v2123 = vshrl.u32 %v2122, 7
        %v2124 = vsub.s32 0, %v2123
        %v2125 = vrot.slane %v2025, %v2124
        %v2126 = vmul.f32 %v2117, %v2102
        %v2127 = vmul.f32 %v2121, %v2103
        %v2128 = vmul.f32 %v2125, %v2104
        %v2129 = vmul.f32 %v2117, %v2105
        %v2130 = vmul.f32 %v2121, %v2106
        %v2131 = vmul.f32 %v2125, %v2107
        %v2132 = vmul.f32 %v2117, %v2108
        %v2133 = vmul.f32 %v2121, %v2109
        %v2134 = vmul.f32 %v2125, %v2110
        %v2135 = vmul.f32 %v2117, %v2111
        %v2136 = vmul.f32 %v2121, %v2112
        %v2137 = vmul.f32 %v2125, %v2113
        %v2138 = vlaneseq
        %v2139 = vshrl.u32 %v2138, 7
        %v2140 = vsub.s32 0, %v2139
        %v2141 = vrot.slane %v2096, %v2140
        %v2142 = vlaneseq
        %v2143 = vshrl.u32 %v2142, 7
        %v2144 = vsub.s32 0, %v2143
        %v2145 = vrot.slane %v2097, %v2144
        %v2146 = vlaneseq
        %v2147 = vshrl.u32 %v2146, 7
        %v2148 = vsub.s32 0, %v2147
        %v2149 = vrot.slane %v2098, %v2148
        %v2150 = vmul.f32 %v2141, %v2126
        %v2151 = vmul.f32 %v2145, %v2127
        %v2152 = vmul.f32 %v2149, %v2128
        %v2153 = vmul.f32 %v2141, %v2129
        %v2154 = vmul.f32 %v2145, %v2130
        %v2155 = vmul.f32 %v2149, %v2131
        %v2156 = vmul.f32 %v2141, %v2132
        %v2157 = vmul.f32 %v2145, %v2133
        %v2158 = vmul.f32 %v2149, %v2134
        %v2159 = vmul.f32 %v2141, %v2135
        %v2160 = vmul.f32 %v2145, %v2136
        %v2161 = vmul.f32 %v2149, %v2137
        %v2162 = vmax.f32 %v2150, 0.0
        %v2163 = vmax.f32 %v2151, 0.0
        %v2164 = vmax.f32 %v2152, 0.0
        %v2165 = vmax.f32 %v2153, 0.0
        %v2166 = vmax.f32 %v2154, 0.0
        %v2167 = vmax.f32 %v2155, 0.0
        %v2168 = vmax.f32 %v2156, 0.0
        %v2169 = vmax.f32 %v2157, 0.0
        %v2170 = vmax.f32 %v2158, 0.0
        %v2171 = vmax.f32 %v2159, 0.0
        %v2172 = vmax.f32 %v2160, 0.0
        %v2173 = vmax.f32 %v2161, 0.0
        %v2174 = vadd.f32 %v2162, 0.0
        %v2175 = vadd.f32 %v2163, 0.0
        %v2176 = vadd.f32 %v2164, 0.0
        %v2177 = vadd.f32 %v2165, 0.0
        %v2178 = vadd.f32 %v2166, 0.0
        %v2179 = vadd.f32 %v2167, 0.0
        %v2180 = vadd.f32 %v2168, 0.0
        %v2181 = vadd.f32 %v2169, 0.0
        %v2182 = vadd.f32 %v2170, 0.0
        %v2183 = vadd.f32 %v2171, 0.0
        %v2184 = vadd.f32 %v2172, 0.0
        %v2185 = vadd.f32 %v2173, 0.0
        %v2186 = vadd.f32 %v2174, %v2126
        %v2187 = vadd.f32 %v2175, %v2127
        %v2188 = vadd.f32 %v2176, %v2128
        %v2189 = vadd.f32 %v2177, %v2129
        %v2190 = vadd.f32 %v2178, %v2130
        %v2191 = vadd.f32 %v2179, %v2131
        %v2192 = vadd.f32 %v2180, %v2132
        %v2193 = vadd.f32 %v2181, %v2133
        %v2194 = vadd.f32 %v2182, %v2134
        %v2195 = vadd.f32 %v2183, %v2135
        %v2196 = vadd.f32 %v2184, %v2136
        %v2197 = vadd.f32 %v2185, %v2137
        %v2198 = vld [vmem:[%s721] sm:$0xff]
        %v2199 = vld [vmem:[%s721 + $0x8] sm:$0xff]
        %v2200 = vld [vmem:[%s721 + $0x10] sm:$0xff]
        %v2201 = vld [vmem:[%s721 + $0x18] sm:$0xff]
        %v2202 = vld [vmem:[%s721 + $0x20] sm:$0xff]
        %v2203 = vld [vmem:[%s721 + $0x28] sm:$0xff]
        %v2204 = vld [vmem:[%s721 + $0x30] sm:$0xff]
        %v2205 = vld [vmem:[%s721 + $0x38] sm:$0xff]
        %v2206 = vld [vmem:[%s721 + $0x40] sm:$0xff]
        %v2207 = vld [vmem:[%s721 + $0x48] sm:$0xff]
        %v2208 = vld [vmem:[%s721 + $0x50] sm:$0xff]
        %v2209 = vld [vmem:[%s721 + $0x58] sm:$0xff]
        %v2210 = vlaneseq
        %v2211 = vshrl.u32 %v2210, 7
        %v2212 = vsub.s32 1, %v2211
        %v2213 = vrot.slane %v2023, %v2212
        %v2214 = vlaneseq
        %v2215 = vshrl.u32 %v2214, 7
        %v2216 = vsub.s32 1, %v2215
        %v2217 = vrot.slane %v2024, %v2216
        %v2218 = vlaneseq
        %v2219 = vshrl.u32 %v2218, 7
        %v2220 = vsub.s32 1, %v2219
        %v2221 = vrot.slane %v2025, %v2220
        %v2222 = vmul.f32 %v2213, %v2198
        %v2223 = vmul.f32 %v2217, %v2199
        %v2224 = vmul.f32 %v2221, %v2200
        %v2225 = vmul.f32 %v2213, %v2201
        %v2226 = vmul.f32 %v2217, %v2202
        %v2227 = vmul.f32 %v2221, %v2203
        %v2228 = vmul.f32 %v2213, %v2204
        %v2229 = vmul.f32 %v2217, %v2205
        %v2230 = vmul.f32 %v2221, %v2206
        %v2231 = vmul.f32 %v2213, %v2207
        %v2232 = vmul.f32 %v2217, %v2208
        %v2233 = vmul.f32 %v2221, %v2209
        %v2234 = vlaneseq
        %v2235 = vshrl.u32 %v2234, 7
        %v2236 = vsub.s32 1, %v2235
        %v2237 = vrot.slane %v2096, %v2236
        %v2238 = vlaneseq
        %v2239 = vshrl.u32 %v2238, 7
        %v2240 = vsub.s32 1, %v2239
        %v2241 = vrot.slane %v2097, %v2240
        %v2242 = vlaneseq
        %v2243 = vshrl.u32 %v2242, 7
        %v2244 = vsub.s32 1, %v2243
        %v2245 = vrot.slane %v2098, %v2244
        %v2246 = vmul.f32 %v2237, %v2222
        %v2247 = vmul.f32 %v2241, %v2223
        %v2248 = vmul.f32 %v2245, %v2224
        %v2249 = vmul.f32 %v2237, %v2225
        %v2250 = vmul.f32 %v2241, %v2226
        %v2251 = vmul.f32 %v2245, %v2227
        %v2252 = vmul.f32 %v2237, %v2228
        %v2253 = vmul.f32 %v2241, %v2229
        %v2254 = vmul.f32 %v2245, %v2230
        %v2255 = vmul.f32 %v2237, %v2231
        %v2256 = vmul.f32 %v2241, %v2232
        %v2257 = vmul.f32 %v2245, %v2233
        %v2258 = vmax.f32 %v2246, 0.0
        %v2259 = vmax.f32 %v2247, 0.0
        %v2260 = vmax.f32 %v2248, 0.0
        %v2261 = vmax.f32 %v2249, 0.0
        %v2262 = vmax.f32 %v2250, 0.0
        %v2263 = vmax.f32 %v2251, 0.0
        %v2264 = vmax.f32 %v2252, 0.0
        %v2265 = vmax.f32 %v2253, 0.0
        %v2266 = vmax.f32 %v2254, 0.0
        %v2267 = vmax.f32 %v2255, 0.0
        %v2268 = vmax.f32 %v2256, 0.0
        %v2269 = vmax.f32 %v2257, 0.0
        %v2270 = vadd.f32 %v2186, %v2258
        %v2271 = vadd.f32 %v2187, %v2259
        %v2272 = vadd.f32 %v2188, %v2260
        %v2273 = vadd.f32 %v2189, %v2261
        %v2274 = vadd.f32 %v2190, %v2262
        %v2275 = vadd.f32 %v2191, %v2263
        %v2276 = vadd.f32 %v2192, %v2264
        %v2277 = vadd.f32 %v2193, %v2265
        %v2278 = vadd.f32 %v2194, %v2266
        %v2279 = vadd.f32 %v2195, %v2267
        %v2280 = vadd.f32 %v2196, %v2268
        %v2281 = vadd.f32 %v2197, %v2269
        %v2282 = vadd.f32 %v2270, %v2222
        %v2283 = vadd.f32 %v2271, %v2223
        %v2284 = vadd.f32 %v2272, %v2224
        %v2285 = vadd.f32 %v2273, %v2225
        %v2286 = vadd.f32 %v2274, %v2226
        %v2287 = vadd.f32 %v2275, %v2227
        %v2288 = vadd.f32 %v2276, %v2228
        %v2289 = vadd.f32 %v2277, %v2229
        %v2290 = vadd.f32 %v2278, %v2230
        %v2291 = vadd.f32 %v2279, %v2231
        %v2292 = vadd.f32 %v2280, %v2232
        %v2293 = vadd.f32 %v2281, %v2233
        %v2294 = vld [vmem:[%s803] sm:$0xff]
        %v2295 = vld [vmem:[%s803 + $0x8] sm:$0xff]
        %v2296 = vld [vmem:[%s803 + $0x10] sm:$0xff]
        %v2297 = vld [vmem:[%s803 + $0x18] sm:$0xff]
        %v2298 = vld [vmem:[%s803 + $0x20] sm:$0xff]
        %v2299 = vld [vmem:[%s803 + $0x28] sm:$0xff]
        %v2300 = vld [vmem:[%s803 + $0x30] sm:$0xff]
        %v2301 = vld [vmem:[%s803 + $0x38] sm:$0xff]
        %v2302 = vld [vmem:[%s803 + $0x40] sm:$0xff]
        %v2303 = vld [vmem:[%s803 + $0x48] sm:$0xff]
        %v2304 = vld [vmem:[%s803 + $0x50] sm:$0xff]
        %v2305 = vld [vmem:[%s803 + $0x58] sm:$0xff]
        %v2306 = vlaneseq
        %v2307 = vshrl.u32 %v2306, 7
        %v2308 = vsub.s32 2, %v2307
        %v2309 = vrot.slane %v2023, %v2308
        %v2310 = vlaneseq
        %v2311 = vshrl.u32 %v2310, 7
        %v2312 = vsub.s32 2, %v2311
        %v2313 = vrot.slane %v2024, %v2312
        %v2314 = vlaneseq
        %v2315 = vshrl.u32 %v2314, 7
        %v2316 = vsub.s32 2, %v2315
        %v2317 = vrot.slane %v2025, %v2316
        %v2318 = vmul.f32 %v2309, %v2294
        %v2319 = vmul.f32 %v2313, %v2295
        %v2320 = vmul.f32 %v2317, %v2296
        %v2321 = vmul.f32 %v2309, %v2297
        %v2322 = vmul.f32 %v2313, %v2298
        %v2323 = vmul.f32 %v2317, %v2299
        %v2324 = vmul.f32 %v2309, %v2300
        %v2325 = vmul.f32 %v2313, %v2301
        %v2326 = vmul.f32 %v2317, %v2302
        %v2327 = vmul.f32 %v2309, %v2303
        %v2328 = vmul.f32 %v2313, %v2304
        %v2329 = vmul.f32 %v2317, %v2305
        %v2330 = vlaneseq
        %v2331 = vshrl.u32 %v2330, 7
        %v2332 = vsub.s32 2, %v2331
        %v2333 = vrot.slane %v2096, %v2332
        %v2334 = vlaneseq
        %v2335 = vshrl.u32 %v2334, 7
        %v2336 = vsub.s32 2, %v2335
        %v2337 = vrot.slane %v2097, %v2336
        %v2338 = vlaneseq
        %v2339 = vshrl.u32 %v2338, 7
        %v2340 = vsub.s32 2, %v2339
        %v2341 = vrot.slane %v2098, %v2340
        %v2342 = vmul.f32 %v2333, %v2318
        %v2343 = vmul.f32 %v2337, %v2319
        %v2344 = vmul.f32 %v2341, %v2320
        %v2345 = vmul.f32 %v2333, %v2321
        %v2346 = vmul.f32 %v2337, %v2322
        %v2347 = vmul.f32 %v2341, %v2323
        %v2348 = vmul.f32 %v2333, %v2324
        %v2349 = vmul.f32 %v2337, %v2325
        %v2350 = vmul.f32 %v2341, %v2326
        %v2351 = vmul.f32 %v2333, %v2327
        %v2352 = vmul.f32 %v2337, %v2328
        %v2353 = vmul.f32 %v2341, %v2329
        %v2354 = vmax.f32 %v2342, 0.0
        %v2355 = vmax.f32 %v2343, 0.0
        %v2356 = vmax.f32 %v2344, 0.0
        %v2357 = vmax.f32 %v2345, 0.0
        %v2358 = vmax.f32 %v2346, 0.0
        %v2359 = vmax.f32 %v2347, 0.0
        %v2360 = vmax.f32 %v2348, 0.0
        %v2361 = vmax.f32 %v2349, 0.0
        %v2362 = vmax.f32 %v2350, 0.0
        %v2363 = vmax.f32 %v2351, 0.0
        %v2364 = vmax.f32 %v2352, 0.0
        %v2365 = vmax.f32 %v2353, 0.0
        %v2366 = vadd.f32 %v2282, %v2354
        %v2367 = vadd.f32 %v2283, %v2355
        %v2368 = vadd.f32 %v2284, %v2356
        %v2369 = vadd.f32 %v2285, %v2357
        %v2370 = vadd.f32 %v2286, %v2358
        %v2371 = vadd.f32 %v2287, %v2359
        %v2372 = vadd.f32 %v2288, %v2360
        %v2373 = vadd.f32 %v2289, %v2361
        %v2374 = vadd.f32 %v2290, %v2362
        %v2375 = vadd.f32 %v2291, %v2363
        %v2376 = vadd.f32 %v2292, %v2364
        %v2377 = vadd.f32 %v2293, %v2365
        %v2378 = vadd.f32 %v2366, %v2318
        %v2379 = vadd.f32 %v2367, %v2319
        %v2380 = vadd.f32 %v2368, %v2320
        %v2381 = vadd.f32 %v2369, %v2321
        %v2382 = vadd.f32 %v2370, %v2322
        %v2383 = vadd.f32 %v2371, %v2323
        %v2384 = vadd.f32 %v2372, %v2324
        %v2385 = vadd.f32 %v2373, %v2325
        %v2386 = vadd.f32 %v2374, %v2326
        %v2387 = vadd.f32 %v2375, %v2327
        %v2388 = vadd.f32 %v2376, %v2328
        %v2389 = vadd.f32 %v2377, %v2329
        %v2390 = vld [vmem:[%s885] sm:$0xff]
        %v2391 = vld [vmem:[%s885 + $0x8] sm:$0xff]
        %v2392 = vld [vmem:[%s885 + $0x10] sm:$0xff]
        %v2393 = vld [vmem:[%s885 + $0x18] sm:$0xff]
        %v2394 = vld [vmem:[%s885 + $0x20] sm:$0xff]
        %v2395 = vld [vmem:[%s885 + $0x28] sm:$0xff]
        %v2396 = vld [vmem:[%s885 + $0x30] sm:$0xff]
        %v2397 = vld [vmem:[%s885 + $0x38] sm:$0xff]
        %v2398 = vld [vmem:[%s885 + $0x40] sm:$0xff]
        %v2399 = vld [vmem:[%s885 + $0x48] sm:$0xff]
        %v2400 = vld [vmem:[%s885 + $0x50] sm:$0xff]
        %v2401 = vld [vmem:[%s885 + $0x58] sm:$0xff]
        %v2402 = vlaneseq
        %v2403 = vshrl.u32 %v2402, 7
        %v2404 = vsub.s32 3, %v2403
        %v2405 = vrot.slane %v2023, %v2404
        %v2406 = vlaneseq
        %v2407 = vshrl.u32 %v2406, 7
        %v2408 = vsub.s32 3, %v2407
        %v2409 = vrot.slane %v2024, %v2408
        %v2410 = vlaneseq
        %v2411 = vshrl.u32 %v2410, 7
        %v2412 = vsub.s32 3, %v2411
        %v2413 = vrot.slane %v2025, %v2412
        %v2414 = vmul.f32 %v2405, %v2390
        %v2415 = vmul.f32 %v2409, %v2391
        %v2416 = vmul.f32 %v2413, %v2392
        %v2417 = vmul.f32 %v2405, %v2393
        %v2418 = vmul.f32 %v2409, %v2394
        %v2419 = vmul.f32 %v2413, %v2395
        %v2420 = vmul.f32 %v2405, %v2396
        %v2421 = vmul.f32 %v2409, %v2397
        %v2422 = vmul.f32 %v2413, %v2398
        %v2423 = vmul.f32 %v2405, %v2399
        %v2424 = vmul.f32 %v2409, %v2400
        %v2425 = vmul.f32 %v2413, %v2401
        %v2426 = vlaneseq
        %v2427 = vshrl.u32 %v2426, 7
        %v2428 = vsub.s32 3, %v2427
        %v2429 = vrot.slane %v2096, %v2428
        %v2430 = vlaneseq
        %v2431 = vshrl.u32 %v2430, 7
        %v2432 = vsub.s32 3, %v2431
        %v2433 = vrot.slane %v2097, %v2432
        %v2434 = vlaneseq
        %v2435 = vshrl.u32 %v2434, 7
        %v2436 = vsub.s32 3, %v2435
        %v2437 = vrot.slane %v2098, %v2436
        %v2438 = vmul.f32 %v2429, %v2414
        %v2439 = vmul.f32 %v2433, %v2415
        %v2440 = vmul.f32 %v2437, %v2416
        %v2441 = vmul.f32 %v2429, %v2417
        %v2442 = vmul.f32 %v2433, %v2418
        %v2443 = vmul.f32 %v2437, %v2419
        %v2444 = vmul.f32 %v2429, %v2420
        %v2445 = vmul.f32 %v2433, %v2421
        %v2446 = vmul.f32 %v2437, %v2422
        %v2447 = vmul.f32 %v2429, %v2423
        %v2448 = vmul.f32 %v2433, %v2424
        %v2449 = vmul.f32 %v2437, %v2425
        %v2450 = vmax.f32 %v2438, 0.0
        %v2451 = vmax.f32 %v2439, 0.0
        %v2452 = vmax.f32 %v2440, 0.0
        %v2453 = vmax.f32 %v2441, 0.0
        %v2454 = vmax.f32 %v2442, 0.0
        %v2455 = vmax.f32 %v2443, 0.0
        %v2456 = vmax.f32 %v2444, 0.0
        %v2457 = vmax.f32 %v2445, 0.0
        %v2458 = vmax.f32 %v2446, 0.0
        %v2459 = vmax.f32 %v2447, 0.0
        %v2460 = vmax.f32 %v2448, 0.0
        %v2461 = vmax.f32 %v2449, 0.0
        %v2462 = vadd.f32 %v2378, %v2450
        %v2463 = vadd.f32 %v2379, %v2451
        %v2464 = vadd.f32 %v2380, %v2452
        %v2465 = vadd.f32 %v2381, %v2453
        %v2466 = vadd.f32 %v2382, %v2454
        %v2467 = vadd.f32 %v2383, %v2455
        %v2468 = vadd.f32 %v2384, %v2456
        %v2469 = vadd.f32 %v2385, %v2457
        %v2470 = vadd.f32 %v2386, %v2458
        %v2471 = vadd.f32 %v2387, %v2459
        %v2472 = vadd.f32 %v2388, %v2460
        %v2473 = vadd.f32 %v2389, %v2461
        %v2474 = vadd.f32 %v2462, %v2414
        %v2475 = vadd.f32 %v2463, %v2415
        %v2476 = vadd.f32 %v2464, %v2416
        %v2477 = vadd.f32 %v2465, %v2417
        %v2478 = vadd.f32 %v2466, %v2418
        %v2479 = vadd.f32 %v2467, %v2419
        %v2480 = vadd.f32 %v2468, %v2420
        %v2481 = vadd.f32 %v2469, %v2421
        %v2482 = vadd.f32 %v2470, %v2422
        %v2483 = vadd.f32 %v2471, %v2423
        %v2484 = vadd.f32 %v2472, %v2424
        %v2485 = vadd.f32 %v2473, %v2425
        %v2486 = vld [vmem:[%s967] sm:$0xff]
        %v2487 = vld [vmem:[%s967 + $0x8] sm:$0xff]
        %v2488 = vld [vmem:[%s967 + $0x10] sm:$0xff]
        %v2489 = vld [vmem:[%s967 + $0x18] sm:$0xff]
        %v2490 = vld [vmem:[%s967 + $0x20] sm:$0xff]
        %v2491 = vld [vmem:[%s967 + $0x28] sm:$0xff]
        %v2492 = vld [vmem:[%s967 + $0x30] sm:$0xff]
        %v2493 = vld [vmem:[%s967 + $0x38] sm:$0xff]
        %v2494 = vld [vmem:[%s967 + $0x40] sm:$0xff]
        %v2495 = vld [vmem:[%s967 + $0x48] sm:$0xff]
        %v2496 = vld [vmem:[%s967 + $0x50] sm:$0xff]
        %v2497 = vld [vmem:[%s967 + $0x58] sm:$0xff]
        %v2498 = vlaneseq
        %v2499 = vshrl.u32 %v2498, 7
        %v2500 = vsub.s32 4, %v2499
        %v2501 = vrot.slane %v2023, %v2500
        %v2502 = vlaneseq
        %v2503 = vshrl.u32 %v2502, 7
        %v2504 = vsub.s32 4, %v2503
        %v2505 = vrot.slane %v2024, %v2504
        %v2506 = vlaneseq
        %v2507 = vshrl.u32 %v2506, 7
        %v2508 = vsub.s32 4, %v2507
        %v2509 = vrot.slane %v2025, %v2508
        %v2510 = vmul.f32 %v2501, %v2486
        %v2511 = vmul.f32 %v2505, %v2487
        %v2512 = vmul.f32 %v2509, %v2488
        %v2513 = vmul.f32 %v2501, %v2489
        %v2514 = vmul.f32 %v2505, %v2490
        %v2515 = vmul.f32 %v2509, %v2491
        %v2516 = vmul.f32 %v2501, %v2492
        %v2517 = vmul.f32 %v2505, %v2493
        %v2518 = vmul.f32 %v2509, %v2494
        %v2519 = vmul.f32 %v2501, %v2495
        %v2520 = vmul.f32 %v2505, %v2496
        %v2521 = vmul.f32 %v2509, %v2497
        %v2522 = vlaneseq
        %v2523 = vshrl.u32 %v2522, 7
        %v2524 = vsub.s32 4, %v2523
        %v2525 = vrot.slane %v2096, %v2524
        %v2526 = vlaneseq
        %v2527 = vshrl.u32 %v2526, 7
        %v2528 = vsub.s32 4, %v2527
        %v2529 = vrot.slane %v2097, %v2528
        %v2530 = vlaneseq
        %v2531 = vshrl.u32 %v2530, 7
        %v2532 = vsub.s32 4, %v2531
        %v2533 = vrot.slane %v2098, %v2532
        %v2534 = vmul.f32 %v2525, %v2510
        %v2535 = vmul.f32 %v2529, %v2511
        %v2536 = vmul.f32 %v2533, %v2512
        %v2537 = vmul.f32 %v2525, %v2513
        %v2538 = vmul.f32 %v2529, %v2514
        %v2539 = vmul.f32 %v2533, %v2515
        %v2540 = vmul.f32 %v2525, %v2516
        %v2541 = vmul.f32 %v2529, %v2517
        %v2542 = vmul.f32 %v2533, %v2518
        %v2543 = vmul.f32 %v2525, %v2519
        %v2544 = vmul.f32 %v2529, %v2520
        %v2545 = vmul.f32 %v2533, %v2521
        %v2546 = vmax.f32 %v2534, 0.0
        %v2547 = vmax.f32 %v2535, 0.0
        %v2548 = vmax.f32 %v2536, 0.0
        %v2549 = vmax.f32 %v2537, 0.0
        %v2550 = vmax.f32 %v2538, 0.0
        %v2551 = vmax.f32 %v2539, 0.0
        %v2552 = vmax.f32 %v2540, 0.0
        %v2553 = vmax.f32 %v2541, 0.0
        %v2554 = vmax.f32 %v2542, 0.0
        %v2555 = vmax.f32 %v2543, 0.0
        %v2556 = vmax.f32 %v2544, 0.0
        %v2557 = vmax.f32 %v2545, 0.0
        %v2558 = vadd.f32 %v2474, %v2546
        %v2559 = vadd.f32 %v2475, %v2547
        %v2560 = vadd.f32 %v2476, %v2548
        %v2561 = vadd.f32 %v2477, %v2549
        %v2562 = vadd.f32 %v2478, %v2550
        %v2563 = vadd.f32 %v2479, %v2551
        %v2564 = vadd.f32 %v2480, %v2552
        %v2565 = vadd.f32 %v2481, %v2553
        %v2566 = vadd.f32 %v2482, %v2554
        %v2567 = vadd.f32 %v2483, %v2555
        %v2568 = vadd.f32 %v2484, %v2556
        %v2569 = vadd.f32 %v2485, %v2557
        %v2570 = vadd.f32 %v2558, %v2510
        %v2571 = vadd.f32 %v2559, %v2511
        %v2572 = vadd.f32 %v2560, %v2512
        %v2573 = vadd.f32 %v2561, %v2513
        %v2574 = vadd.f32 %v2562, %v2514
        %v2575 = vadd.f32 %v2563, %v2515
        %v2576 = vadd.f32 %v2564, %v2516
        %v2577 = vadd.f32 %v2565, %v2517
        %v2578 = vadd.f32 %v2566, %v2518
        %v2579 = vadd.f32 %v2567, %v2519
        %v2580 = vadd.f32 %v2568, %v2520
        %v2581 = vadd.f32 %v2569, %v2521
        %v2582 = vld [vmem:[%s1049] sm:$0xff]
        %v2583 = vld [vmem:[%s1049 + $0x8] sm:$0xff]
        %v2584 = vld [vmem:[%s1049 + $0x10] sm:$0xff]
        %v2585 = vld [vmem:[%s1049 + $0x18] sm:$0xff]
        %v2586 = vld [vmem:[%s1049 + $0x20] sm:$0xff]
        %v2587 = vld [vmem:[%s1049 + $0x28] sm:$0xff]
        %v2588 = vld [vmem:[%s1049 + $0x30] sm:$0xff]
        %v2589 = vld [vmem:[%s1049 + $0x38] sm:$0xff]
        %v2590 = vld [vmem:[%s1049 + $0x40] sm:$0xff]
        %v2591 = vld [vmem:[%s1049 + $0x48] sm:$0xff]
        %v2592 = vld [vmem:[%s1049 + $0x50] sm:$0xff]
        %v2593 = vld [vmem:[%s1049 + $0x58] sm:$0xff]
        %v2594 = vlaneseq
        %v2595 = vshrl.u32 %v2594, 7
        %v2596 = vsub.s32 5, %v2595
        %v2597 = vrot.slane %v2023, %v2596
        %v2598 = vlaneseq
        %v2599 = vshrl.u32 %v2598, 7
        %v2600 = vsub.s32 5, %v2599
        %v2601 = vrot.slane %v2024, %v2600
        %v2602 = vlaneseq
        %v2603 = vshrl.u32 %v2602, 7
        %v2604 = vsub.s32 5, %v2603
        %v2605 = vrot.slane %v2025, %v2604
        %v2606 = vmul.f32 %v2597, %v2582
        %v2607 = vmul.f32 %v2601, %v2583
        %v2608 = vmul.f32 %v2605, %v2584
        %v2609 = vmul.f32 %v2597, %v2585
        %v2610 = vmul.f32 %v2601, %v2586
        %v2611 = vmul.f32 %v2605, %v2587
        %v2612 = vmul.f32 %v2597, %v2588
        %v2613 = vmul.f32 %v2601, %v2589
        %v2614 = vmul.f32 %v2605, %v2590
        %v2615 = vmul.f32 %v2597, %v2591
        %v2616 = vmul.f32 %v2601, %v2592
        %v2617 = vmul.f32 %v2605, %v2593
        %v2618 = vlaneseq
        %v2619 = vshrl.u32 %v2618, 7
        %v2620 = vsub.s32 5, %v2619
        %v2621 = vrot.slane %v2096, %v2620
        %v2622 = vlaneseq
        %v2623 = vshrl.u32 %v2622, 7
        %v2624 = vsub.s32 5, %v2623
        %v2625 = vrot.slane %v2097, %v2624
        %v2626 = vlaneseq
        %v2627 = vshrl.u32 %v2626, 7
        %v2628 = vsub.s32 5, %v2627
        %v2629 = vrot.slane %v2098, %v2628
        %v2630 = vmul.f32 %v2621, %v2606
        %v2631 = vmul.f32 %v2625, %v2607
        %v2632 = vmul.f32 %v2629, %v2608
        %v2633 = vmul.f32 %v2621, %v2609
        %v2634 = vmul.f32 %v2625, %v2610
        %v2635 = vmul.f32 %v2629, %v2611
        %v2636 = vmul.f32 %v2621, %v2612
        %v2637 = vmul.f32 %v2625, %v2613
        %v2638 = vmul.f32 %v2629, %v2614
        %v2639 = vmul.f32 %v2621, %v2615
        %v2640 = vmul.f32 %v2625, %v2616
        %v2641 = vmul.f32 %v2629, %v2617
        %v2642 = vmax.f32 %v2630, 0.0
        %v2643 = vmax.f32 %v2631, 0.0
        %v2644 = vmax.f32 %v2632, 0.0
        %v2645 = vmax.f32 %v2633, 0.0
        %v2646 = vmax.f32 %v2634, 0.0
        %v2647 = vmax.f32 %v2635, 0.0
        %v2648 = vmax.f32 %v2636, 0.0
        %v2649 = vmax.f32 %v2637, 0.0
        %v2650 = vmax.f32 %v2638, 0.0
        %v2651 = vmax.f32 %v2639, 0.0
        %v2652 = vmax.f32 %v2640, 0.0
        %v2653 = vmax.f32 %v2641, 0.0
        %v2654 = vadd.f32 %v2570, %v2642
        %v2655 = vadd.f32 %v2571, %v2643
        %v2656 = vadd.f32 %v2572, %v2644
        %v2657 = vadd.f32 %v2573, %v2645
        %v2658 = vadd.f32 %v2574, %v2646
        %v2659 = vadd.f32 %v2575, %v2647
        %v2660 = vadd.f32 %v2576, %v2648
        %v2661 = vadd.f32 %v2577, %v2649
        %v2662 = vadd.f32 %v2578, %v2650
        %v2663 = vadd.f32 %v2579, %v2651
        %v2664 = vadd.f32 %v2580, %v2652
        %v2665 = vadd.f32 %v2581, %v2653
        %v2666 = vadd.f32 %v2654, %v2606
        %v2667 = vadd.f32 %v2655, %v2607
        %v2668 = vadd.f32 %v2656, %v2608
        %v2669 = vadd.f32 %v2657, %v2609
        %v2670 = vadd.f32 %v2658, %v2610
        %v2671 = vadd.f32 %v2659, %v2611
        %v2672 = vadd.f32 %v2660, %v2612
        %v2673 = vadd.f32 %v2661, %v2613
        %v2674 = vadd.f32 %v2662, %v2614
        %v2675 = vadd.f32 %v2663, %v2615
        %v2676 = vadd.f32 %v2664, %v2616
        %v2677 = vadd.f32 %v2665, %v2617
        %v2678 = vld [vmem:[%s1131] sm:$0xff]
        %v2679 = vld [vmem:[%s1131 + $0x8] sm:$0xff]
        %v2680 = vld [vmem:[%s1131 + $0x10] sm:$0xff]
        %v2681 = vld [vmem:[%s1131 + $0x18] sm:$0xff]
        %v2682 = vld [vmem:[%s1131 + $0x20] sm:$0xff]
        %v2683 = vld [vmem:[%s1131 + $0x28] sm:$0xff]
        %v2684 = vld [vmem:[%s1131 + $0x30] sm:$0xff]
        %v2685 = vld [vmem:[%s1131 + $0x38] sm:$0xff]
        %v2686 = vld [vmem:[%s1131 + $0x40] sm:$0xff]
        %v2687 = vld [vmem:[%s1131 + $0x48] sm:$0xff]
        %v2688 = vld [vmem:[%s1131 + $0x50] sm:$0xff]
        %v2689 = vld [vmem:[%s1131 + $0x58] sm:$0xff]
        %v2690 = vlaneseq
        %v2691 = vshrl.u32 %v2690, 7
        %v2692 = vsub.s32 6, %v2691
        %v2693 = vrot.slane %v2023, %v2692
        %v2694 = vlaneseq
        %v2695 = vshrl.u32 %v2694, 7
        %v2696 = vsub.s32 6, %v2695
        %v2697 = vrot.slane %v2024, %v2696
        %v2698 = vlaneseq
        %v2699 = vshrl.u32 %v2698, 7
        %v2700 = vsub.s32 6, %v2699
        %v2701 = vrot.slane %v2025, %v2700
        %v2702 = vmul.f32 %v2693, %v2678
        %v2703 = vmul.f32 %v2697, %v2679
        %v2704 = vmul.f32 %v2701, %v2680
        %v2705 = vmul.f32 %v2693, %v2681
        %v2706 = vmul.f32 %v2697, %v2682
        %v2707 = vmul.f32 %v2701, %v2683
        %v2708 = vmul.f32 %v2693, %v2684
        %v2709 = vmul.f32 %v2697, %v2685
        %v2710 = vmul.f32 %v2701, %v2686
        %v2711 = vmul.f32 %v2693, %v2687
        %v2712 = vmul.f32 %v2697, %v2688
        %v2713 = vmul.f32 %v2701, %v2689
        %v2714 = vlaneseq
        %v2715 = vshrl.u32 %v2714, 7
        %v2716 = vsub.s32 6, %v2715
        %v2717 = vrot.slane %v2096, %v2716
        %v2718 = vlaneseq
        %v2719 = vshrl.u32 %v2718, 7
        %v2720 = vsub.s32 6, %v2719
        %v2721 = vrot.slane %v2097, %v2720
        %v2722 = vlaneseq
        %v2723 = vshrl.u32 %v2722, 7
        %v2724 = vsub.s32 6, %v2723
        %v2725 = vrot.slane %v2098, %v2724
        %v2726 = vmul.f32 %v2717, %v2702
        %v2727 = vmul.f32 %v2721, %v2703
        %v2728 = vmul.f32 %v2725, %v2704
        %v2729 = vmul.f32 %v2717, %v2705
        %v2730 = vmul.f32 %v2721, %v2706
        %v2731 = vmul.f32 %v2725, %v2707
        %v2732 = vmul.f32 %v2717, %v2708
        %v2733 = vmul.f32 %v2721, %v2709
        %v2734 = vmul.f32 %v2725, %v2710
        %v2735 = vmul.f32 %v2717, %v2711
        %v2736 = vmul.f32 %v2721, %v2712
        %v2737 = vmul.f32 %v2725, %v2713
        %v2738 = vmax.f32 %v2726, 0.0
        %v2739 = vmax.f32 %v2727, 0.0
        %v2740 = vmax.f32 %v2728, 0.0
        %v2741 = vmax.f32 %v2729, 0.0
        %v2742 = vmax.f32 %v2730, 0.0
        %v2743 = vmax.f32 %v2731, 0.0
        %v2744 = vmax.f32 %v2732, 0.0
        %v2745 = vmax.f32 %v2733, 0.0
        %v2746 = vmax.f32 %v2734, 0.0
        %v2747 = vmax.f32 %v2735, 0.0
        %v2748 = vmax.f32 %v2736, 0.0
        %v2749 = vmax.f32 %v2737, 0.0
        %v2750 = vadd.f32 %v2666, %v2738
        %v2751 = vadd.f32 %v2667, %v2739
        %v2752 = vadd.f32 %v2668, %v2740
        %v2753 = vadd.f32 %v2669, %v2741
        %v2754 = vadd.f32 %v2670, %v2742
        %v2755 = vadd.f32 %v2671, %v2743
        %v2756 = vadd.f32 %v2672, %v2744
        %v2757 = vadd.f32 %v2673, %v2745
        %v2758 = vadd.f32 %v2674, %v2746
        %v2759 = vadd.f32 %v2675, %v2747
        %v2760 = vadd.f32 %v2676, %v2748
        %v2761 = vadd.f32 %v2677, %v2749
        %v2762 = vadd.f32 %v2750, %v2702
        %v2763 = vadd.f32 %v2751, %v2703
        %v2764 = vadd.f32 %v2752, %v2704
        %v2765 = vadd.f32 %v2753, %v2705
        %v2766 = vadd.f32 %v2754, %v2706
        %v2767 = vadd.f32 %v2755, %v2707
        %v2768 = vadd.f32 %v2756, %v2708
        %v2769 = vadd.f32 %v2757, %v2709
        %v2770 = vadd.f32 %v2758, %v2710
        %v2771 = vadd.f32 %v2759, %v2711
        %v2772 = vadd.f32 %v2760, %v2712
        %v2773 = vadd.f32 %v2761, %v2713
        %v2774 = vld [vmem:[%s1213] sm:$0xff]
        %v2775 = vld [vmem:[%s1213 + $0x8] sm:$0xff]
        %v2776 = vld [vmem:[%s1213 + $0x10] sm:$0xff]
        %v2777 = vld [vmem:[%s1213 + $0x18] sm:$0xff]
        %v2778 = vld [vmem:[%s1213 + $0x20] sm:$0xff]
        %v2779 = vld [vmem:[%s1213 + $0x28] sm:$0xff]
        %v2780 = vld [vmem:[%s1213 + $0x30] sm:$0xff]
        %v2781 = vld [vmem:[%s1213 + $0x38] sm:$0xff]
        %v2782 = vld [vmem:[%s1213 + $0x40] sm:$0xff]
        %v2783 = vld [vmem:[%s1213 + $0x48] sm:$0xff]
        %v2784 = vld [vmem:[%s1213 + $0x50] sm:$0xff]
        %v2785 = vld [vmem:[%s1213 + $0x58] sm:$0xff]
        %v2786 = vlaneseq
        %v2787 = vshrl.u32 %v2786, 7
        %v2788 = vsub.s32 7, %v2787
        %v2789 = vrot.slane %v2023, %v2788
        %v2790 = vlaneseq
        %v2791 = vshrl.u32 %v2790, 7
        %v2792 = vsub.s32 7, %v2791
        %v2793 = vrot.slane %v2024, %v2792
        %v2794 = vlaneseq
        %v2795 = vshrl.u32 %v2794, 7
        %v2796 = vsub.s32 7, %v2795
        %v2797 = vrot.slane %v2025, %v2796
        %v2798 = vmul.f32 %v2789, %v2774
        %v2799 = vmul.f32 %v2793, %v2775
        %v2800 = vmul.f32 %v2797, %v2776
        %v2801 = vmul.f32 %v2789, %v2777
        %v2802 = vmul.f32 %v2793, %v2778
        %v2803 = vmul.f32 %v2797, %v2779
        %v2804 = vmul.f32 %v2789, %v2780
        %v2805 = vmul.f32 %v2793, %v2781
        %v2806 = vmul.f32 %v2797, %v2782
        %v2807 = vmul.f32 %v2789, %v2783
        %v2808 = vmul.f32 %v2793, %v2784
        %v2809 = vmul.f32 %v2797, %v2785
        %v2810 = vlaneseq
        %v2811 = vshrl.u32 %v2810, 7
        %v2812 = vsub.s32 7, %v2811
        %v2813 = vrot.slane %v2096, %v2812
        %v2814 = vlaneseq
        %v2815 = vshrl.u32 %v2814, 7
        %v2816 = vsub.s32 7, %v2815
        %v2817 = vrot.slane %v2097, %v2816
        %v2818 = vlaneseq
        %v2819 = vshrl.u32 %v2818, 7
        %v2820 = vsub.s32 7, %v2819
        %v2821 = vrot.slane %v2098, %v2820
        %v2822 = vmul.f32 %v2813, %v2798
        %v2823 = vmul.f32 %v2817, %v2799
        %v2824 = vmul.f32 %v2821, %v2800
        %v2825 = vmul.f32 %v2813, %v2801
        %v2826 = vmul.f32 %v2817, %v2802
        %v2827 = vmul.f32 %v2821, %v2803
        %v2828 = vmul.f32 %v2813, %v2804
        %v2829 = vmul.f32 %v2817, %v2805
        %v2830 = vmul.f32 %v2821, %v2806
        %v2831 = vmul.f32 %v2813, %v2807
        %v2832 = vmul.f32 %v2817, %v2808
        %v2833 = vmul.f32 %v2821, %v2809
        %v2834 = vmax.f32 %v2822, 0.0
        %v2835 = vmax.f32 %v2823, 0.0
        %v2836 = vmax.f32 %v2824, 0.0
        %v2837 = vmax.f32 %v2825, 0.0
        %v2838 = vmax.f32 %v2826, 0.0
        %v2839 = vmax.f32 %v2827, 0.0
        %v2840 = vmax.f32 %v2828, 0.0
        %v2841 = vmax.f32 %v2829, 0.0
        %v2842 = vmax.f32 %v2830, 0.0
        %v2843 = vmax.f32 %v2831, 0.0
        %v2844 = vmax.f32 %v2832, 0.0
        %v2845 = vmax.f32 %v2833, 0.0
        %v2846 = vadd.f32 %v2762, %v2834
        %v2847 = vadd.f32 %v2763, %v2835
        %v2848 = vadd.f32 %v2764, %v2836
        %v2849 = vadd.f32 %v2765, %v2837
        %v2850 = vadd.f32 %v2766, %v2838
        %v2851 = vadd.f32 %v2767, %v2839
        %v2852 = vadd.f32 %v2768, %v2840
        %v2853 = vadd.f32 %v2769, %v2841
        %v2854 = vadd.f32 %v2770, %v2842
        %v2855 = vadd.f32 %v2771, %v2843
        %v2856 = vadd.f32 %v2772, %v2844
        %v2857 = vadd.f32 %v2773, %v2845
        %v2858 = vadd.f32 %v2846, %v2798
        %v2859 = vadd.f32 %v2847, %v2799
        %v2860 = vadd.f32 %v2848, %v2800
        %v2861 = vadd.f32 %v2849, %v2801
        %v2862 = vadd.f32 %v2850, %v2802
        %v2863 = vadd.f32 %v2851, %v2803
        %v2864 = vadd.f32 %v2852, %v2804
        %v2865 = vadd.f32 %v2853, %v2805
        %v2866 = vadd.f32 %v2854, %v2806
        %v2867 = vadd.f32 %v2855, %v2807
        %v2868 = vadd.f32 %v2856, %v2808
        %v2869 = vadd.f32 %v2857, %v2809
        %v2870 = vld [vmem:[%s1295] sm:$0xff]
        %v2871 = vld [vmem:[%s1295 + $0x8] sm:$0xff]
        %v2872 = vld [vmem:[%s1295 + $0x10] sm:$0xff]
        %v2873 = vld [vmem:[%s1295 + $0x18] sm:$0xff]
        %v2874 = vld [vmem:[%s1295 + $0x20] sm:$0xff]
        %v2875 = vld [vmem:[%s1295 + $0x28] sm:$0xff]
        %v2876 = vld [vmem:[%s1295 + $0x30] sm:$0xff]
        %v2877 = vld [vmem:[%s1295 + $0x38] sm:$0xff]
        %v2878 = vld [vmem:[%s1295 + $0x40] sm:$0xff]
        %v2879 = vld [vmem:[%s1295 + $0x48] sm:$0xff]
        %v2880 = vld [vmem:[%s1295 + $0x50] sm:$0xff]
        %v2881 = vld [vmem:[%s1295 + $0x58] sm:$0xff]
        %v2882 = vlaneseq
        %v2883 = vshrl.u32 %v2882, 7
        %v2884 = vsub.s32 0, %v2883
        %v2885 = vrot.slane %v2026, %v2884
        %v2886 = vlaneseq
        %v2887 = vshrl.u32 %v2886, 7
        %v2888 = vsub.s32 0, %v2887
        %v2889 = vrot.slane %v2027, %v2888
        %v2890 = vlaneseq
        %v2891 = vshrl.u32 %v2890, 7
        %v2892 = vsub.s32 0, %v2891
        %v2893 = vrot.slane %v2028, %v2892
        %v2894 = vmul.f32 %v2885, %v2870
        %v2895 = vmul.f32 %v2889, %v2871
        %v2896 = vmul.f32 %v2893, %v2872
        %v2897 = vmul.f32 %v2885, %v2873
        %v2898 = vmul.f32 %v2889, %v2874
        %v2899 = vmul.f32 %v2893, %v2875
        %v2900 = vmul.f32 %v2885, %v2876
        %v2901 = vmul.f32 %v2889, %v2877
        %v2902 = vmul.f32 %v2893, %v2878
        %v2903 = vmul.f32 %v2885, %v2879
        %v2904 = vmul.f32 %v2889, %v2880
        %v2905 = vmul.f32 %v2893, %v2881
        %v2906 = vlaneseq
        %v2907 = vshrl.u32 %v2906, 7
        %v2908 = vsub.s32 0, %v2907
        %v2909 = vrot.slane %v2099, %v2908
        %v2910 = vlaneseq
        %v2911 = vshrl.u32 %v2910, 7
        %v2912 = vsub.s32 0, %v2911
        %v2913 = vrot.slane %v2100, %v2912
        %v2914 = vlaneseq
        %v2915 = vshrl.u32 %v2914, 7
        %v2916 = vsub.s32 0, %v2915
        %v2917 = vrot.slane %v2101, %v2916
        %v2918 = vmul.f32 %v2909, %v2894
        %v2919 = vmul.f32 %v2913, %v2895
        %v2920 = vmul.f32 %v2917, %v2896
        %v2921 = vmul.f32 %v2909, %v2897
        %v2922 = vmul.f32 %v2913, %v2898
        %v2923 = vmul.f32 %v2917, %v2899
        %v2924 = vmul.f32 %v2909, %v2900
        %v2925 = vmul.f32 %v2913, %v2901
        %v2926 = vmul.f32 %v2917, %v2902
        %v2927 = vmul.f32 %v2909, %v2903
        %v2928 = vmul.f32 %v2913, %v2904
        %v2929 = vmul.f32 %v2917, %v2905
        %v2930 = vmax.f32 %v2918, 0.0
        %v2931 = vmax.f32 %v2919, 0.0
        %v2932 = vmax.f32 %v2920, 0.0
        %v2933 = vmax.f32 %v2921, 0.0
        %v2934 = vmax.f32 %v2922, 0.0
        %v2935 = vmax.f32 %v2923, 0.0
        %v2936 = vmax.f32 %v2924, 0.0
        %v2937 = vmax.f32 %v2925, 0.0
        %v2938 = vmax.f32 %v2926, 0.0
        %v2939 = vmax.f32 %v2927, 0.0
        %v2940 = vmax.f32 %v2928, 0.0
        %v2941 = vmax.f32 %v2929, 0.0
        %v2942 = vadd.f32 %v2858, %v2930
        %v2943 = vadd.f32 %v2859, %v2931
        %v2944 = vadd.f32 %v2860, %v2932
        %v2945 = vadd.f32 %v2861, %v2933
        %v2946 = vadd.f32 %v2862, %v2934
        %v2947 = vadd.f32 %v2863, %v2935
        %v2948 = vadd.f32 %v2864, %v2936
        %v2949 = vadd.f32 %v2865, %v2937
        %v2950 = vadd.f32 %v2866, %v2938
        %v2951 = vadd.f32 %v2867, %v2939
        %v2952 = vadd.f32 %v2868, %v2940
        %v2953 = vadd.f32 %v2869, %v2941
        %v2954 = vadd.f32 %v2942, %v2894
        %v2955 = vadd.f32 %v2943, %v2895
        %v2956 = vadd.f32 %v2944, %v2896
        %v2957 = vadd.f32 %v2945, %v2897
        %v2958 = vadd.f32 %v2946, %v2898
        %v2959 = vadd.f32 %v2947, %v2899
        %v2960 = vadd.f32 %v2948, %v2900
        %v2961 = vadd.f32 %v2949, %v2901
        %v2962 = vadd.f32 %v2950, %v2902
        %v2963 = vadd.f32 %v2951, %v2903
        %v2964 = vadd.f32 %v2952, %v2904
        %v2965 = vadd.f32 %v2953, %v2905
        %v2966 = vld [vmem:[%s1377] sm:$0xff]
        %v2967 = vld [vmem:[%s1377 + $0x8] sm:$0xff]
        %v2968 = vld [vmem:[%s1377 + $0x10] sm:$0xff]
        %v2969 = vld [vmem:[%s1377 + $0x18] sm:$0xff]
        %v2970 = vld [vmem:[%s1377 + $0x20] sm:$0xff]
        %v2971 = vld [vmem:[%s1377 + $0x28] sm:$0xff]
        %v2972 = vld [vmem:[%s1377 + $0x30] sm:$0xff]
        %v2973 = vld [vmem:[%s1377 + $0x38] sm:$0xff]
        %v2974 = vld [vmem:[%s1377 + $0x40] sm:$0xff]
        %v2975 = vld [vmem:[%s1377 + $0x48] sm:$0xff]
        %v2976 = vld [vmem:[%s1377 + $0x50] sm:$0xff]
        %v2977 = vld [vmem:[%s1377 + $0x58] sm:$0xff]
        %v2978 = vlaneseq
        %v2979 = vshrl.u32 %v2978, 7
        %v2980 = vsub.s32 1, %v2979
        %v2981 = vrot.slane %v2026, %v2980
        %v2982 = vlaneseq
        %v2983 = vshrl.u32 %v2982, 7
        %v2984 = vsub.s32 1, %v2983
        %v2985 = vrot.slane %v2027, %v2984
        %v2986 = vlaneseq
        %v2987 = vshrl.u32 %v2986, 7
        %v2988 = vsub.s32 1, %v2987
        %v2989 = vrot.slane %v2028, %v2988
        %v2990 = vmul.f32 %v2981, %v2966
        %v2991 = vmul.f32 %v2985, %v2967
        %v2992 = vmul.f32 %v2989, %v2968
        %v2993 = vmul.f32 %v2981, %v2969
        %v2994 = vmul.f32 %v2985, %v2970
        %v2995 = vmul.f32 %v2989, %v2971
        %v2996 = vmul.f32 %v2981, %v2972
        %v2997 = vmul.f32 %v2985, %v2973
        %v2998 = vmul.f32 %v2989, %v2974
        %v2999 = vmul.f32 %v2981, %v2975
        %v3000 = vmul.f32 %v2985, %v2976
        %v3001 = vmul.f32 %v2989, %v2977
        %v3002 = vlaneseq
        %v3003 = vshrl.u32 %v3002, 7
        %v3004 = vsub.s32 1, %v3003
        %v3005 = vrot.slane %v2099, %v3004
        %v3006 = vlaneseq
        %v3007 = vshrl.u32 %v3006, 7
        %v3008 = vsub.s32 1, %v3007
        %v3009 = vrot.slane %v2100, %v3008
        %v3010 = vlaneseq
        %v3011 = vshrl.u32 %v3010, 7
        %v3012 = vsub.s32 1, %v3011
        %v3013 = vrot.slane %v2101, %v3012
        %v3014 = vmul.f32 %v3005, %v2990
        %v3015 = vmul.f32 %v3009, %v2991
        %v3016 = vmul.f32 %v3013, %v2992
        %v3017 = vmul.f32 %v3005, %v2993
        %v3018 = vmul.f32 %v3009, %v2994
        %v3019 = vmul.f32 %v3013, %v2995
        %v3020 = vmul.f32 %v3005, %v2996
        %v3021 = vmul.f32 %v3009, %v2997
        %v3022 = vmul.f32 %v3013, %v2998
        %v3023 = vmul.f32 %v3005, %v2999
        %v3024 = vmul.f32 %v3009, %v3000
        %v3025 = vmul.f32 %v3013, %v3001
        %v3026 = vmax.f32 %v3014, 0.0
        %v3027 = vmax.f32 %v3015, 0.0
        %v3028 = vmax.f32 %v3016, 0.0
        %v3029 = vmax.f32 %v3017, 0.0
        %v3030 = vmax.f32 %v3018, 0.0
        %v3031 = vmax.f32 %v3019, 0.0
        %v3032 = vmax.f32 %v3020, 0.0
        %v3033 = vmax.f32 %v3021, 0.0
        %v3034 = vmax.f32 %v3022, 0.0
        %v3035 = vmax.f32 %v3023, 0.0
        %v3036 = vmax.f32 %v3024, 0.0
        %v3037 = vmax.f32 %v3025, 0.0
        %v3038 = vadd.f32 %v2954, %v3026
        %v3039 = vadd.f32 %v2955, %v3027
        %v3040 = vadd.f32 %v2956, %v3028
        %v3041 = vadd.f32 %v2957, %v3029
        %v3042 = vadd.f32 %v2958, %v3030
        %v3043 = vadd.f32 %v2959, %v3031
        %v3044 = vadd.f32 %v2960, %v3032
        %v3045 = vadd.f32 %v2961, %v3033
        %v3046 = vadd.f32 %v2962, %v3034
        %v3047 = vadd.f32 %v2963, %v3035
        %v3048 = vadd.f32 %v2964, %v3036
        %v3049 = vadd.f32 %v2965, %v3037
        %v3050 = vadd.f32 %v3038, %v2990
        %v3051 = vadd.f32 %v3039, %v2991
        %v3052 = vadd.f32 %v3040, %v2992
        %v3053 = vadd.f32 %v3041, %v2993
        %v3054 = vadd.f32 %v3042, %v2994
        %v3055 = vadd.f32 %v3043, %v2995
        %v3056 = vadd.f32 %v3044, %v2996
        %v3057 = vadd.f32 %v3045, %v2997
        %v3058 = vadd.f32 %v3046, %v2998
        %v3059 = vadd.f32 %v3047, %v2999
        %v3060 = vadd.f32 %v3048, %v3000
        %v3061 = vadd.f32 %v3049, %v3001
        %v3062 = vld [vmem:[%s1459] sm:$0xff]
        %v3063 = vld [vmem:[%s1459 + $0x8] sm:$0xff]
        %v3064 = vld [vmem:[%s1459 + $0x10] sm:$0xff]
        %v3065 = vld [vmem:[%s1459 + $0x18] sm:$0xff]
        %v3066 = vld [vmem:[%s1459 + $0x20] sm:$0xff]
        %v3067 = vld [vmem:[%s1459 + $0x28] sm:$0xff]
        %v3068 = vld [vmem:[%s1459 + $0x30] sm:$0xff]
        %v3069 = vld [vmem:[%s1459 + $0x38] sm:$0xff]
        %v3070 = vld [vmem:[%s1459 + $0x40] sm:$0xff]
        %v3071 = vld [vmem:[%s1459 + $0x48] sm:$0xff]
        %v3072 = vld [vmem:[%s1459 + $0x50] sm:$0xff]
        %v3073 = vld [vmem:[%s1459 + $0x58] sm:$0xff]
        %v3074 = vlaneseq
        %v3075 = vshrl.u32 %v3074, 7
        %v3076 = vsub.s32 2, %v3075
        %v3077 = vrot.slane %v2026, %v3076
        %v3078 = vlaneseq
        %v3079 = vshrl.u32 %v3078, 7
        %v3080 = vsub.s32 2, %v3079
        %v3081 = vrot.slane %v2027, %v3080
        %v3082 = vlaneseq
        %v3083 = vshrl.u32 %v3082, 7
        %v3084 = vsub.s32 2, %v3083
        %v3085 = vrot.slane %v2028, %v3084
        %v3086 = vmul.f32 %v3077, %v3062
        %v3087 = vmul.f32 %v3081, %v3063
        %v3088 = vmul.f32 %v3085, %v3064
        %v3089 = vmul.f32 %v3077, %v3065
        %v3090 = vmul.f32 %v3081, %v3066
        %v3091 = vmul.f32 %v3085, %v3067
        %v3092 = vmul.f32 %v3077, %v3068
        %v3093 = vmul.f32 %v3081, %v3069
        %v3094 = vmul.f32 %v3085, %v3070
        %v3095 = vmul.f32 %v3077, %v3071
        %v3096 = vmul.f32 %v3081, %v3072
        %v3097 = vmul.f32 %v3085, %v3073
        %v3098 = vlaneseq
        %v3099 = vshrl.u32 %v3098, 7
        %v3100 = vsub.s32 2, %v3099
        %v3101 = vrot.slane %v2099, %v3100
        %v3102 = vlaneseq
        %v3103 = vshrl.u32 %v3102, 7
        %v3104 = vsub.s32 2, %v3103
        %v3105 = vrot.slane %v2100, %v3104
        %v3106 = vlaneseq
        %v3107 = vshrl.u32 %v3106, 7
        %v3108 = vsub.s32 2, %v3107
        %v3109 = vrot.slane %v2101, %v3108
        %v3110 = vmul.f32 %v3101, %v3086
        %v3111 = vmul.f32 %v3105, %v3087
        %v3112 = vmul.f32 %v3109, %v3088
        %v3113 = vmul.f32 %v3101, %v3089
        %v3114 = vmul.f32 %v3105, %v3090
        %v3115 = vmul.f32 %v3109, %v3091
        %v3116 = vmul.f32 %v3101, %v3092
        %v3117 = vmul.f32 %v3105, %v3093
        %v3118 = vmul.f32 %v3109, %v3094
        %v3119 = vmul.f32 %v3101, %v3095
        %v3120 = vmul.f32 %v3105, %v3096
        %v3121 = vmul.f32 %v3109, %v3097
        %v3122 = vmax.f32 %v3110, 0.0
        %v3123 = vmax.f32 %v3111, 0.0
        %v3124 = vmax.f32 %v3112, 0.0
        %v3125 = vmax.f32 %v3113, 0.0
        %v3126 = vmax.f32 %v3114, 0.0
        %v3127 = vmax.f32 %v3115, 0.0
        %v3128 = vmax.f32 %v3116, 0.0
        %v3129 = vmax.f32 %v3117, 0.0
        %v3130 = vmax.f32 %v3118, 0.0
        %v3131 = vmax.f32 %v3119, 0.0
        %v3132 = vmax.f32 %v3120, 0.0
        %v3133 = vmax.f32 %v3121, 0.0
        %v3134 = vadd.f32 %v3050, %v3122
        %v3135 = vadd.f32 %v3051, %v3123
        %v3136 = vadd.f32 %v3052, %v3124
        %v3137 = vadd.f32 %v3053, %v3125
        %v3138 = vadd.f32 %v3054, %v3126
        %v3139 = vadd.f32 %v3055, %v3127
        %v3140 = vadd.f32 %v3056, %v3128
        %v3141 = vadd.f32 %v3057, %v3129
        %v3142 = vadd.f32 %v3058, %v3130
        %v3143 = vadd.f32 %v3059, %v3131
        %v3144 = vadd.f32 %v3060, %v3132
        %v3145 = vadd.f32 %v3061, %v3133
        %v3146 = vadd.f32 %v3134, %v3086
        %v3147 = vadd.f32 %v3135, %v3087
        %v3148 = vadd.f32 %v3136, %v3088
        %v3149 = vadd.f32 %v3137, %v3089
        %v3150 = vadd.f32 %v3138, %v3090
        %v3151 = vadd.f32 %v3139, %v3091
        %v3152 = vadd.f32 %v3140, %v3092
        %v3153 = vadd.f32 %v3141, %v3093
        %v3154 = vadd.f32 %v3142, %v3094
        %v3155 = vadd.f32 %v3143, %v3095
        %v3156 = vadd.f32 %v3144, %v3096
        %v3157 = vadd.f32 %v3145, %v3097
        %v3158 = vld [vmem:[%s1541] sm:$0xff]
        %v3159 = vld [vmem:[%s1541 + $0x8] sm:$0xff]
        %v3160 = vld [vmem:[%s1541 + $0x10] sm:$0xff]
        %v3161 = vld [vmem:[%s1541 + $0x18] sm:$0xff]
        %v3162 = vld [vmem:[%s1541 + $0x20] sm:$0xff]
        %v3163 = vld [vmem:[%s1541 + $0x28] sm:$0xff]
        %v3164 = vld [vmem:[%s1541 + $0x30] sm:$0xff]
        %v3165 = vld [vmem:[%s1541 + $0x38] sm:$0xff]
        %v3166 = vld [vmem:[%s1541 + $0x40] sm:$0xff]
        %v3167 = vld [vmem:[%s1541 + $0x48] sm:$0xff]
        %v3168 = vld [vmem:[%s1541 + $0x50] sm:$0xff]
        %v3169 = vld [vmem:[%s1541 + $0x58] sm:$0xff]
        %v3170 = vlaneseq
        %v3171 = vshrl.u32 %v3170, 7
        %v3172 = vsub.s32 3, %v3171
        %v3173 = vrot.slane %v2026, %v3172
        %v3174 = vlaneseq
        %v3175 = vshrl.u32 %v3174, 7
        %v3176 = vsub.s32 3, %v3175
        %v3177 = vrot.slane %v2027, %v3176
        %v3178 = vlaneseq
        %v3179 = vshrl.u32 %v3178, 7
        %v3180 = vsub.s32 3, %v3179
        %v3181 = vrot.slane %v2028, %v3180
        %v3182 = vmul.f32 %v3173, %v3158
        %v3183 = vmul.f32 %v3177, %v3159
        %v3184 = vmul.f32 %v3181, %v3160
        %v3185 = vmul.f32 %v3173, %v3161
        %v3186 = vmul.f32 %v3177, %v3162
        %v3187 = vmul.f32 %v3181, %v3163
        %v3188 = vmul.f32 %v3173, %v3164
        %v3189 = vmul.f32 %v3177, %v3165
        %v3190 = vmul.f32 %v3181, %v3166
        %v3191 = vmul.f32 %v3173, %v3167
        %v3192 = vmul.f32 %v3177, %v3168
        %v3193 = vmul.f32 %v3181, %v3169
        %v3194 = vlaneseq
        %v3195 = vshrl.u32 %v3194, 7
        %v3196 = vsub.s32 3, %v3195
        %v3197 = vrot.slane %v2099, %v3196
        %v3198 = vlaneseq
        %v3199 = vshrl.u32 %v3198, 7
        %v3200 = vsub.s32 3, %v3199
        %v3201 = vrot.slane %v2100, %v3200
        %v3202 = vlaneseq
        %v3203 = vshrl.u32 %v3202, 7
        %v3204 = vsub.s32 3, %v3203
        %v3205 = vrot.slane %v2101, %v3204
        %v3206 = vmul.f32 %v3197, %v3182
        %v3207 = vmul.f32 %v3201, %v3183
        %v3208 = vmul.f32 %v3205, %v3184
        %v3209 = vmul.f32 %v3197, %v3185
        %v3210 = vmul.f32 %v3201, %v3186
        %v3211 = vmul.f32 %v3205, %v3187
        %v3212 = vmul.f32 %v3197, %v3188
        %v3213 = vmul.f32 %v3201, %v3189
        %v3214 = vmul.f32 %v3205, %v3190
        %v3215 = vmul.f32 %v3197, %v3191
        %v3216 = vmul.f32 %v3201, %v3192
        %v3217 = vmul.f32 %v3205, %v3193
        %v3218 = vmax.f32 %v3206, 0.0
        %v3219 = vmax.f32 %v3207, 0.0
        %v3220 = vmax.f32 %v3208, 0.0
        %v3221 = vmax.f32 %v3209, 0.0
        %v3222 = vmax.f32 %v3210, 0.0
        %v3223 = vmax.f32 %v3211, 0.0
        %v3224 = vmax.f32 %v3212, 0.0
        %v3225 = vmax.f32 %v3213, 0.0
        %v3226 = vmax.f32 %v3214, 0.0
        %v3227 = vmax.f32 %v3215, 0.0
        %v3228 = vmax.f32 %v3216, 0.0
        %v3229 = vmax.f32 %v3217, 0.0
        %v3230 = vadd.f32 %v3146, %v3218
        %v3231 = vadd.f32 %v3147, %v3219
        %v3232 = vadd.f32 %v3148, %v3220
        %v3233 = vadd.f32 %v3149, %v3221
        %v3234 = vadd.f32 %v3150, %v3222
        %v3235 = vadd.f32 %v3151, %v3223
        %v3236 = vadd.f32 %v3152, %v3224
        %v3237 = vadd.f32 %v3153, %v3225
        %v3238 = vadd.f32 %v3154, %v3226
        %v3239 = vadd.f32 %v3155, %v3227
        %v3240 = vadd.f32 %v3156, %v3228
        %v3241 = vadd.f32 %v3157, %v3229
        %v3242 = vadd.f32 %v3230, %v3182
        %v3243 = vadd.f32 %v3231, %v3183
        %v3244 = vadd.f32 %v3232, %v3184
        %v3245 = vadd.f32 %v3233, %v3185
        %v3246 = vadd.f32 %v3234, %v3186
        %v3247 = vadd.f32 %v3235, %v3187
        %v3248 = vadd.f32 %v3236, %v3188
        %v3249 = vadd.f32 %v3237, %v3189
        %v3250 = vadd.f32 %v3238, %v3190
        %v3251 = vadd.f32 %v3239, %v3191
        %v3252 = vadd.f32 %v3240, %v3192
        %v3253 = vadd.f32 %v3241, %v3193
        %v3254 = vld [vmem:[%s1623] sm:$0xff]
        %v3255 = vld [vmem:[%s1623 + $0x8] sm:$0xff]
        %v3256 = vld [vmem:[%s1623 + $0x10] sm:$0xff]
        %v3257 = vld [vmem:[%s1623 + $0x18] sm:$0xff]
        %v3258 = vld [vmem:[%s1623 + $0x20] sm:$0xff]
        %v3259 = vld [vmem:[%s1623 + $0x28] sm:$0xff]
        %v3260 = vld [vmem:[%s1623 + $0x30] sm:$0xff]
        %v3261 = vld [vmem:[%s1623 + $0x38] sm:$0xff]
        %v3262 = vld [vmem:[%s1623 + $0x40] sm:$0xff]
        %v3263 = vld [vmem:[%s1623 + $0x48] sm:$0xff]
        %v3264 = vld [vmem:[%s1623 + $0x50] sm:$0xff]
        %v3265 = vld [vmem:[%s1623 + $0x58] sm:$0xff]
        %v3266 = vlaneseq
        %v3267 = vshrl.u32 %v3266, 7
        %v3268 = vsub.s32 4, %v3267
        %v3269 = vrot.slane %v2026, %v3268
        %v3270 = vlaneseq
        %v3271 = vshrl.u32 %v3270, 7
        %v3272 = vsub.s32 4, %v3271
        %v3273 = vrot.slane %v2027, %v3272
        %v3274 = vlaneseq
        %v3275 = vshrl.u32 %v3274, 7
        %v3276 = vsub.s32 4, %v3275
        %v3277 = vrot.slane %v2028, %v3276
        %v3278 = vmul.f32 %v3269, %v3254
        %v3279 = vmul.f32 %v3273, %v3255
        %v3280 = vmul.f32 %v3277, %v3256
        %v3281 = vmul.f32 %v3269, %v3257
        %v3282 = vmul.f32 %v3273, %v3258
        %v3283 = vmul.f32 %v3277, %v3259
        %v3284 = vmul.f32 %v3269, %v3260
        %v3285 = vmul.f32 %v3273, %v3261
        %v3286 = vmul.f32 %v3277, %v3262
        %v3287 = vmul.f32 %v3269, %v3263
        %v3288 = vmul.f32 %v3273, %v3264
        %v3289 = vmul.f32 %v3277, %v3265
        %v3290 = vlaneseq
        %v3291 = vshrl.u32 %v3290, 7
        %v3292 = vsub.s32 4, %v3291
        %v3293 = vrot.slane %v2099, %v3292
        %v3294 = vlaneseq
        %v3295 = vshrl.u32 %v3294, 7
        %v3296 = vsub.s32 4, %v3295
        %v3297 = vrot.slane %v2100, %v3296
        %v3298 = vlaneseq
        %v3299 = vshrl.u32 %v3298, 7
        %v3300 = vsub.s32 4, %v3299
        %v3301 = vrot.slane %v2101, %v3300
        %v3302 = vmul.f32 %v3293, %v3278
        %v3303 = vmul.f32 %v3297, %v3279
        %v3304 = vmul.f32 %v3301, %v3280
        %v3305 = vmul.f32 %v3293, %v3281
        %v3306 = vmul.f32 %v3297, %v3282
        %v3307 = vmul.f32 %v3301, %v3283
        %v3308 = vmul.f32 %v3293, %v3284
        %v3309 = vmul.f32 %v3297, %v3285
        %v3310 = vmul.f32 %v3301, %v3286
        %v3311 = vmul.f32 %v3293, %v3287
        %v3312 = vmul.f32 %v3297, %v3288
        %v3313 = vmul.f32 %v3301, %v3289
        %v3314 = vmax.f32 %v3302, 0.0
        %v3315 = vmax.f32 %v3303, 0.0
        %v3316 = vmax.f32 %v3304, 0.0
        %v3317 = vmax.f32 %v3305, 0.0
        %v3318 = vmax.f32 %v3306, 0.0
        %v3319 = vmax.f32 %v3307, 0.0
        %v3320 = vmax.f32 %v3308, 0.0
        %v3321 = vmax.f32 %v3309, 0.0
        %v3322 = vmax.f32 %v3310, 0.0
        %v3323 = vmax.f32 %v3311, 0.0
        %v3324 = vmax.f32 %v3312, 0.0
        %v3325 = vmax.f32 %v3313, 0.0
        %v3326 = vadd.f32 %v3242, %v3314
        %v3327 = vadd.f32 %v3243, %v3315
        %v3328 = vadd.f32 %v3244, %v3316
        %v3329 = vadd.f32 %v3245, %v3317
        %v3330 = vadd.f32 %v3246, %v3318
        %v3331 = vadd.f32 %v3247, %v3319
        %v3332 = vadd.f32 %v3248, %v3320
        %v3333 = vadd.f32 %v3249, %v3321
        %v3334 = vadd.f32 %v3250, %v3322
        %v3335 = vadd.f32 %v3251, %v3323
        %v3336 = vadd.f32 %v3252, %v3324
        %v3337 = vadd.f32 %v3253, %v3325
        %v3338 = vadd.f32 %v3326, %v3278
        %v3339 = vadd.f32 %v3327, %v3279
        %v3340 = vadd.f32 %v3328, %v3280
        %v3341 = vadd.f32 %v3329, %v3281
        %v3342 = vadd.f32 %v3330, %v3282
        %v3343 = vadd.f32 %v3331, %v3283
        %v3344 = vadd.f32 %v3332, %v3284
        %v3345 = vadd.f32 %v3333, %v3285
        %v3346 = vadd.f32 %v3334, %v3286
        %v3347 = vadd.f32 %v3335, %v3287
        %v3348 = vadd.f32 %v3336, %v3288
        %v3349 = vadd.f32 %v3337, %v3289
        %v3350 = vld [vmem:[%s1705] sm:$0xff]
        %v3351 = vld [vmem:[%s1705 + $0x8] sm:$0xff]
        %v3352 = vld [vmem:[%s1705 + $0x10] sm:$0xff]
        %v3353 = vld [vmem:[%s1705 + $0x18] sm:$0xff]
        %v3354 = vld [vmem:[%s1705 + $0x20] sm:$0xff]
        %v3355 = vld [vmem:[%s1705 + $0x28] sm:$0xff]
        %v3356 = vld [vmem:[%s1705 + $0x30] sm:$0xff]
        %v3357 = vld [vmem:[%s1705 + $0x38] sm:$0xff]
        %v3358 = vld [vmem:[%s1705 + $0x40] sm:$0xff]
        %v3359 = vld [vmem:[%s1705 + $0x48] sm:$0xff]
        %v3360 = vld [vmem:[%s1705 + $0x50] sm:$0xff]
        %v3361 = vld [vmem:[%s1705 + $0x58] sm:$0xff]
        %v3362 = vlaneseq
        %v3363 = vshrl.u32 %v3362, 7
        %v3364 = vsub.s32 5, %v3363
        %v3365 = vrot.slane %v2026, %v3364
        %v3366 = vlaneseq
        %v3367 = vshrl.u32 %v3366, 7
        %v3368 = vsub.s32 5, %v3367
        %v3369 = vrot.slane %v2027, %v3368
        %v3370 = vlaneseq
        %v3371 = vshrl.u32 %v3370, 7
        %v3372 = vsub.s32 5, %v3371
        %v3373 = vrot.slane %v2028, %v3372
        %v3374 = vmul.f32 %v3365, %v3350
        %v3375 = vmul.f32 %v3369, %v3351
        %v3376 = vmul.f32 %v3373, %v3352
        %v3377 = vmul.f32 %v3365, %v3353
        %v3378 = vmul.f32 %v3369, %v3354
        %v3379 = vmul.f32 %v3373, %v3355
        %v3380 = vmul.f32 %v3365, %v3356
        %v3381 = vmul.f32 %v3369, %v3357
        %v3382 = vmul.f32 %v3373, %v3358
        %v3383 = vmul.f32 %v3365, %v3359
        %v3384 = vmul.f32 %v3369, %v3360
        %v3385 = vmul.f32 %v3373, %v3361
        %v3386 = vlaneseq
        %v3387 = vshrl.u32 %v3386, 7
        %v3388 = vsub.s32 5, %v3387
        %v3389 = vrot.slane %v2099, %v3388
        %v3390 = vlaneseq
        %v3391 = vshrl.u32 %v3390, 7
        %v3392 = vsub.s32 5, %v3391
        %v3393 = vrot.slane %v2100, %v3392
        %v3394 = vlaneseq
        %v3395 = vshrl.u32 %v3394, 7
        %v3396 = vsub.s32 5, %v3395
        %v3397 = vrot.slane %v2101, %v3396
        %v3398 = vmul.f32 %v3389, %v3374
        %v3399 = vmul.f32 %v3393, %v3375
        %v3400 = vmul.f32 %v3397, %v3376
        %v3401 = vmul.f32 %v3389, %v3377
        %v3402 = vmul.f32 %v3393, %v3378
        %v3403 = vmul.f32 %v3397, %v3379
        %v3404 = vmul.f32 %v3389, %v3380
        %v3405 = vmul.f32 %v3393, %v3381
        %v3406 = vmul.f32 %v3397, %v3382
        %v3407 = vmul.f32 %v3389, %v3383
        %v3408 = vmul.f32 %v3393, %v3384
        %v3409 = vmul.f32 %v3397, %v3385
        %v3410 = vmax.f32 %v3398, 0.0
        %v3411 = vmax.f32 %v3399, 0.0
        %v3412 = vmax.f32 %v3400, 0.0
        %v3413 = vmax.f32 %v3401, 0.0
        %v3414 = vmax.f32 %v3402, 0.0
        %v3415 = vmax.f32 %v3403, 0.0
        %v3416 = vmax.f32 %v3404, 0.0
        %v3417 = vmax.f32 %v3405, 0.0
        %v3418 = vmax.f32 %v3406, 0.0
        %v3419 = vmax.f32 %v3407, 0.0
        %v3420 = vmax.f32 %v3408, 0.0
        %v3421 = vmax.f32 %v3409, 0.0
        %v3422 = vadd.f32 %v3338, %v3410
        %v3423 = vadd.f32 %v3339, %v3411
        %v3424 = vadd.f32 %v3340, %v3412
        %v3425 = vadd.f32 %v3341, %v3413
        %v3426 = vadd.f32 %v3342, %v3414
        %v3427 = vadd.f32 %v3343, %v3415
        %v3428 = vadd.f32 %v3344, %v3416
        %v3429 = vadd.f32 %v3345, %v3417
        %v3430 = vadd.f32 %v3346, %v3418
        %v3431 = vadd.f32 %v3347, %v3419
        %v3432 = vadd.f32 %v3348, %v3420
        %v3433 = vadd.f32 %v3349, %v3421
        %v3434 = vadd.f32 %v3422, %v3374
        %v3435 = vadd.f32 %v3423, %v3375
        %v3436 = vadd.f32 %v3424, %v3376
        %v3437 = vadd.f32 %v3425, %v3377
        %v3438 = vadd.f32 %v3426, %v3378
        %v3439 = vadd.f32 %v3427, %v3379
        %v3440 = vadd.f32 %v3428, %v3380
        %v3441 = vadd.f32 %v3429, %v3381
        %v3442 = vadd.f32 %v3430, %v3382
        %v3443 = vadd.f32 %v3431, %v3383
        %v3444 = vadd.f32 %v3432, %v3384
        %v3445 = vadd.f32 %v3433, %v3385
        %v3446 = vld [vmem:[%s1787] sm:$0xff]
        %v3447 = vld [vmem:[%s1787 + $0x8] sm:$0xff]
        %v3448 = vld [vmem:[%s1787 + $0x10] sm:$0xff]
        %v3449 = vld [vmem:[%s1787 + $0x18] sm:$0xff]
        %v3450 = vld [vmem:[%s1787 + $0x20] sm:$0xff]
        %v3451 = vld [vmem:[%s1787 + $0x28] sm:$0xff]
        %v3452 = vld [vmem:[%s1787 + $0x30] sm:$0xff]
        %v3453 = vld [vmem:[%s1787 + $0x38] sm:$0xff]
        %v3454 = vld [vmem:[%s1787 + $0x40] sm:$0xff]
        %v3455 = vld [vmem:[%s1787 + $0x48] sm:$0xff]
        %v3456 = vld [vmem:[%s1787 + $0x50] sm:$0xff]
        %v3457 = vld [vmem:[%s1787 + $0x58] sm:$0xff]
        %v3458 = vlaneseq
        %v3459 = vshrl.u32 %v3458, 7
        %v3460 = vsub.s32 6, %v3459
        %v3461 = vrot.slane %v2026, %v3460
        %v3462 = vlaneseq
        %v3463 = vshrl.u32 %v3462, 7
        %v3464 = vsub.s32 6, %v3463
        %v3465 = vrot.slane %v2027, %v3464
        %v3466 = vlaneseq
        %v3467 = vshrl.u32 %v3466, 7
        %v3468 = vsub.s32 6, %v3467
        %v3469 = vrot.slane %v2028, %v3468
        %v3470 = vmul.f32 %v3461, %v3446
        %v3471 = vmul.f32 %v3465, %v3447
        %v3472 = vmul.f32 %v3469, %v3448
        %v3473 = vmul.f32 %v3461, %v3449
        %v3474 = vmul.f32 %v3465, %v3450
        %v3475 = vmul.f32 %v3469, %v3451
        %v3476 = vmul.f32 %v3461, %v3452
        %v3477 = vmul.f32 %v3465, %v3453
        %v3478 = vmul.f32 %v3469, %v3454
        %v3479 = vmul.f32 %v3461, %v3455
        %v3480 = vmul.f32 %v3465, %v3456
        %v3481 = vmul.f32 %v3469, %v3457
        %v3482 = vlaneseq
        %v3483 = vshrl.u32 %v3482, 7
        %v3484 = vsub.s32 6, %v3483
        %v3485 = vrot.slane %v2099, %v3484
        %v3486 = vlaneseq
        %v3487 = vshrl.u32 %v3486, 7
        %v3488 = vsub.s32 6, %v3487
        %v3489 = vrot.slane %v2100, %v3488
        %v3490 = vlaneseq
        %v3491 = vshrl.u32 %v3490, 7
        %v3492 = vsub.s32 6, %v3491
        %v3493 = vrot.slane %v2101, %v3492
        %v3494 = vmul.f32 %v3485, %v3470
        %v3495 = vmul.f32 %v3489, %v3471
        %v3496 = vmul.f32 %v3493, %v3472
        %v3497 = vmul.f32 %v3485, %v3473
        %v3498 = vmul.f32 %v3489, %v3474
        %v3499 = vmul.f32 %v3493, %v3475
        %v3500 = vmul.f32 %v3485, %v3476
        %v3501 = vmul.f32 %v3489, %v3477
        %v3502 = vmul.f32 %v3493, %v3478
        %v3503 = vmul.f32 %v3485, %v3479
        %v3504 = vmul.f32 %v3489, %v3480
        %v3505 = vmul.f32 %v3493, %v3481
        %v3506 = vmax.f32 %v3494, 0.0
        %v3507 = vmax.f32 %v3495, 0.0
        %v3508 = vmax.f32 %v3496, 0.0
        %v3509 = vmax.f32 %v3497, 0.0
        %v3510 = vmax.f32 %v3498, 0.0
        %v3511 = vmax.f32 %v3499, 0.0
        %v3512 = vmax.f32 %v3500, 0.0
        %v3513 = vmax.f32 %v3501, 0.0
        %v3514 = vmax.f32 %v3502, 0.0
        %v3515 = vmax.f32 %v3503, 0.0
        %v3516 = vmax.f32 %v3504, 0.0
        %v3517 = vmax.f32 %v3505, 0.0
        %v3518 = vadd.f32 %v3434, %v3506
        %v3519 = vadd.f32 %v3435, %v3507
        %v3520 = vadd.f32 %v3436, %v3508
        %v3521 = vadd.f32 %v3437, %v3509
        %v3522 = vadd.f32 %v3438, %v3510
        %v3523 = vadd.f32 %v3439, %v3511
        %v3524 = vadd.f32 %v3440, %v3512
        %v3525 = vadd.f32 %v3441, %v3513
        %v3526 = vadd.f32 %v3442, %v3514
        %v3527 = vadd.f32 %v3443, %v3515
        %v3528 = vadd.f32 %v3444, %v3516
        %v3529 = vadd.f32 %v3445, %v3517
        %v3530 = vadd.f32 %v3518, %v3470
        %v3531 = vadd.f32 %v3519, %v3471
        %v3532 = vadd.f32 %v3520, %v3472
        %v3533 = vadd.f32 %v3521, %v3473
        %v3534 = vadd.f32 %v3522, %v3474
        %v3535 = vadd.f32 %v3523, %v3475
        %v3536 = vadd.f32 %v3524, %v3476
        %v3537 = vadd.f32 %v3525, %v3477
        %v3538 = vadd.f32 %v3526, %v3478
        %v3539 = vadd.f32 %v3527, %v3479
        %v3540 = vadd.f32 %v3528, %v3480
        %v3541 = vadd.f32 %v3529, %v3481
        %v3542 = vld [vmem:[%s1869] sm:$0xff]
        %v3543 = vld [vmem:[%s1869 + $0x8] sm:$0xff]
        %v3544 = vld [vmem:[%s1869 + $0x10] sm:$0xff]
        %v3545 = vld [vmem:[%s1869 + $0x18] sm:$0xff]
        %v3546 = vld [vmem:[%s1869 + $0x20] sm:$0xff]
        %v3547 = vld [vmem:[%s1869 + $0x28] sm:$0xff]
        %v3548 = vld [vmem:[%s1869 + $0x30] sm:$0xff]
        %v3549 = vld [vmem:[%s1869 + $0x38] sm:$0xff]
        %v3550 = vld [vmem:[%s1869 + $0x40] sm:$0xff]
        %v3551 = vld [vmem:[%s1869 + $0x48] sm:$0xff]
        %v3552 = vld [vmem:[%s1869 + $0x50] sm:$0xff]
        %v3553 = vld [vmem:[%s1869 + $0x58] sm:$0xff]
        %v3554 = vlaneseq
        %v3555 = vshrl.u32 %v3554, 7
        %v3556 = vsub.s32 7, %v3555
        %v3557 = vrot.slane %v2026, %v3556
        %v3558 = vlaneseq
        %v3559 = vshrl.u32 %v3558, 7
        %v3560 = vsub.s32 7, %v3559
        %v3561 = vrot.slane %v2027, %v3560
        %v3562 = vlaneseq
        %v3563 = vshrl.u32 %v3562, 7
        %v3564 = vsub.s32 7, %v3563
        %v3565 = vrot.slane %v2028, %v3564
        %v3566 = vmul.f32 %v3557, %v3542
        %v3567 = vmul.f32 %v3561, %v3543
        %v3568 = vmul.f32 %v3565, %v3544
        %v3569 = vmul.f32 %v3557, %v3545
        %v3570 = vmul.f32 %v3561, %v3546
        %v3571 = vmul.f32 %v3565, %v3547
        %v3572 = vmul.f32 %v3557, %v3548
        %v3573 = vmul.f32 %v3561, %v3549
        %v3574 = vmul.f32 %v3565, %v3550
        %v3575 = vmul.f32 %v3557, %v3551
        %v3576 = vmul.f32 %v3561, %v3552
        %v3577 = vmul.f32 %v3565, %v3553
        %v3578 = vlaneseq
        %v3579 = vshrl.u32 %v3578, 7
        %v3580 = vsub.s32 7, %v3579
        %v3581 = vrot.slane %v2099, %v3580
        %v3582 = vlaneseq
        %v3583 = vshrl.u32 %v3582, 7
        %v3584 = vsub.s32 7, %v3583
        %v3585 = vrot.slane %v2100, %v3584
        %v3586 = vlaneseq
        %v3587 = vshrl.u32 %v3586, 7
        %v3588 = vsub.s32 7, %v3587
        %v3589 = vrot.slane %v2101, %v3588
        %v3590 = vmul.f32 %v3581, %v3566
        %v3591 = vmul.f32 %v3585, %v3567
        %v3592 = vmul.f32 %v3589, %v3568
        %v3593 = vmul.f32 %v3581, %v3569
        %v3594 = vmul.f32 %v3585, %v3570
        %v3595 = vmul.f32 %v3589, %v3571
        %v3596 = vmul.f32 %v3581, %v3572
        %v3597 = vmul.f32 %v3585, %v3573
        %v3598 = vmul.f32 %v3589, %v3574
        %v3599 = vmul.f32 %v3581, %v3575
        %v3600 = vmul.f32 %v3585, %v3576
        %v3601 = vmul.f32 %v3589, %v3577
        %v3602 = vmax.f32 %v3590, 0.0
        %v3603 = vmax.f32 %v3591, 0.0
        %v3604 = vmax.f32 %v3592, 0.0
        %v3605 = vmax.f32 %v3593, 0.0
        %v3606 = vmax.f32 %v3594, 0.0
        %v3607 = vmax.f32 %v3595, 0.0
        %v3608 = vmax.f32 %v3596, 0.0
        %v3609 = vmax.f32 %v3597, 0.0
        %v3610 = vmax.f32 %v3598, 0.0
        %v3611 = vmax.f32 %v3599, 0.0
        %v3612 = vmax.f32 %v3600, 0.0
        %v3613 = vmax.f32 %v3601, 0.0
        %v3614 = vadd.f32 %v3530, %v3602
        %v3615 = vadd.f32 %v3531, %v3603
        %v3616 = vadd.f32 %v3532, %v3604
        %v3617 = vadd.f32 %v3533, %v3605
        %v3618 = vadd.f32 %v3534, %v3606
        %v3619 = vadd.f32 %v3535, %v3607
        %v3620 = vadd.f32 %v3536, %v3608
        %v3621 = vadd.f32 %v3537, %v3609
        %v3622 = vadd.f32 %v3538, %v3610
        %v3623 = vadd.f32 %v3539, %v3611
        %v3624 = vadd.f32 %v3540, %v3612
        %v3625 = vadd.f32 %v3541, %v3613
        %v3626 = vadd.f32 %v3614, %v3566
        %v3627 = vadd.f32 %v3615, %v3567
        %v3628 = vadd.f32 %v3616, %v3568
        %v3629 = vadd.f32 %v3617, %v3569
        %v3630 = vadd.f32 %v3618, %v3570
        %v3631 = vadd.f32 %v3619, %v3571
        %v3632 = vadd.f32 %v3620, %v3572
        %v3633 = vadd.f32 %v3621, %v3573
        %v3634 = vadd.f32 %v3622, %v3574
        %v3635 = vadd.f32 %v3623, %v3575
        %v3636 = vadd.f32 %v3624, %v3576
        %v3637 = vadd.f32 %v3625, %v3577
        %v3638 = vld [vmem:[#allocation9] sm:$0xff]
        %v3639 = vld [vmem:[#allocation9 + $0x8] sm:$0xff]
        %v3640 = vld [vmem:[#allocation9 + $0x10] sm:$0xff]
        %v3641 = vld [vmem:[#allocation9 + $0x18] sm:$0xff]
        %v3642 = vld [vmem:[#allocation11] sm:$0xff]
        %v3643 = vld [vmem:[#allocation11 + $0x8] sm:$0xff]
        %v3644 = vld [vmem:[#allocation11 + $0x10] sm:$0xff]
        %v3645 = vld [vmem:[#allocation11 + $0x18] sm:$0xff]
        %v3647 = vsel %vm450, %v3642, 0
        %v3650 = vsel %vm450, %v3643, 0
        %v3653 = vsel %vm450, %v3644, 0
        %v3656 = vsel %vm450, %v3645, 0
        %3658 = vmatprep.subr.mxu0 %v532
        %3659 = vmatpush1.msra.mxu0 %v530
        %3660 = vmatprep.subr.mxu0 %v538
        %3661 = vmatpush1.msra.mxu0 %v536
        %3662 = vmatprep.subr.mxu0 %v544
        %3663 = vmatpush1.msra.mxu0 %v542
        %3664 = vmatprep.subr.mxu0 %v550
        %3665 = vmatpush1.msra.mxu0 %v548
        %3666 = vmatprep.subr.mxu0 0.0
        %3667 = vmatpush1.msra.mxu0 0.0
        %3668 = vmatprep.subr.mxu0 0.0
        %3669 = vmatpush1.msra.mxu0 0.0
        %3670 = vmatprep.subr.mxu0 0.0
        %3671 = vmatpush1.msra.mxu0 0.0
        %3672 = vmatprep.subr.mxu0 0.0
        %3673 = vmatpush1.msra.mxu0 0.0
        %3674 = vmatprep.subr.mxu0 0.0
        %3675 = vmatpush1.msra.mxu0 0.0
        %3676 = vmatprep.subr.mxu0 0.0
        %3677 = vmatpush1.msra.mxu0 0.0
        %3678 = vmatprep.subr.mxu0 0.0
        %3679 = vmatpush1.msra.mxu0 0.0
        %3680 = vmatprep.subr.mxu0 0.0
        %3681 = vmatpush1.msra.mxu0 0.0
        %3682 = vmatprep.subr.mxu0 0.0
        %3683 = vmatpush1.msra.mxu0 0.0
        %3684 = vmatprep.subr.mxu0 0.0
        %3685 = vmatpush1.msra.mxu0 0.0
        %3686 = vmatprep.subr.mxu0 0.0
        %3687 = vmatpush1.msra.mxu0 0.0
        %3688 = vmatprep.subr.mxu0 0.0
        %3689 = vmatpush1.msra.mxu0 0.0
        %3690 = vmatprep.subr.mxu0 0.0
        %3691 = vmatpush1.msra.mxu0 0.0
        %3692 = vmatprep.subr.mxu0 0.0
        %3693 = vmatpush1.msra.mxu0 0.0
        %3694 = vmatprep.subr.mxu0 0.0
        %3695 = vmatpush1.msra.mxu0 0.0
        %3696 = vmatprep.subr.mxu0 0.0
        %3697 = vmatpush1.msra.mxu0 0.0
        %3698 = vmatprep.subr.mxu0 0.0
        %3699 = vmatpush1.msra.mxu0 0.0
        %3700 = vmatprep.subr.mxu0 0.0
        %3701 = vmatpush1.msra.mxu0 0.0
        %3702 = vmatprep.subr.mxu0 0.0
        %3703 = vmatpush1.msra.mxu0 0.0
        %3704 = vmatprep.subr.mxu0 0.0
        %3705 = vmatpush1.msra.mxu0 0.0
        %3706 = vmatprep.subr.mxu0 0.0
        %3707 = vmatpush1.msra.mxu0 0.0
        %3708 = vmatprep.subr.mxu0 0.0
        %3709 = vmatpush1.msra.mxu0 0.0
        %3710 = vmatprep.subr.mxu0 0.0
        %3711 = vmatpush1.msra.mxu0 0.0
        %3712 = vmatprep.subr.mxu0 0.0
        %3713 = vmatpush1.msra.mxu0 0.0
        %3714 = vmatprep.subr.mxu0 0.0
        %3715 = vmatpush1.msra.mxu0 0.0
        %3716 = vmatprep.subr.mxu0 0.0
        %3717 = vmatpush1.msra.mxu0 0.0
        %3718 = vmatprep.subr.mxu0 0.0
        %3719 = vmatpush1.msra.mxu0 0.0
        %3720 = vmatprep.subr.mxu0 0.0
        %3721 = vmatpush1.msra.mxu0 0.0
        %3722 = vmatprep.mubr.f32.mxu0 0.0
        %3723 = vmatmul.mubr.f32.gmra.mrb[0].mxu0 %v3647
        %v3724 = vpop.f32.mrb[0].mxu0
        %v3725 = vadd.f32 0.0, %v3724
        %v3726 = vpop.f32.mrb[0].mxu0
        %v3727 = vadd.f32 0.0, %v3726
        %3728 = vmatprep.mubr.f32.mxu0 0.0
        %3729 = vmatmul.mubr.f32.gmra.mrb[0].mxu0 %v3650
        %v3730 = vpop.f32.mrb[0].mxu0
        %v3731 = vadd.f32 0.0, %v3730
        %v3732 = vpop.f32.mrb[0].mxu0
        %v3733 = vadd.f32 0.0, %v3732
        %3734 = vmatprep.mubr.f32.mxu0 0.0
        %3735 = vmatmul.mubr.f32.gmra.mrb[0].mxu0 %v3653
        %v3736 = vpop.f32.mrb[0].mxu0
        %v3737 = vadd.f32 0.0, %v3736
        %v3738 = vpop.f32.mrb[0].mxu0
        %v3739 = vadd.f32 0.0, %v3738
        %3740 = vmatprep.mubr.f32.mxu0 0.0
        %3741 = vmatmul.mubr.f32.gmra.mrb[0].mxu0 %v3656
        %v3742 = vpop.f32.mrb[0].mxu0
        %v3743 = vadd.f32 0.0, %v3742
        %v3744 = vpop.f32.mrb[0].mxu0
        %v3745 = vadd.f32 0.0, %v3744
        %3746 = vdwg.mxu0
        %3747 = vmatprep.subr.mxu0 0.0
        %3748 = vmatpush1.msra.mxu0 %v619
        %3749 = vmatprep.subr.mxu0 0.0
        %3750 = vmatpush1.msra.mxu0 %v624
        %3751 = vmatprep.subr.mxu0 0.0
        %3752 = vmatpush1.msra.mxu0 %v629
        %3753 = vmatprep.subr.mxu0 0.0
        %3754 = vmatpush1.msra.mxu0 %v634
        %3755 = vmatprep.subr.mxu0 0.0
        %3756 = vmatpush1.msra.mxu0 0.0
        %3757 = vmatprep.subr.mxu0 0.0
        %3758 = vmatpush1.msra.mxu0 0.0
        %3759 = vmatprep.subr.mxu0 0.0
        %3760 = vmatpush1.msra.mxu0 0.0
        %3761 = vmatprep.subr.mxu0 0.0
        %3762 = vmatpush1.msra.mxu0 0.0
        %3763 = vmatprep.subr.mxu0 0.0
        %3764 = vmatpush1.msra.mxu0 0.0
        %3765 = vmatprep.subr.mxu0 0.0
        %3766 = vmatpush1.msra.mxu0 0.0
        %3767 = vmatprep.subr.mxu0 0.0
        %3768 = vmatpush1.msra.mxu0 0.0
        %3769 = vmatprep.subr.mxu0 0.0
        %3770 = vmatpush1.msra.mxu0 0.0
        %3771 = vmatprep.subr.mxu0 0.0
        %3772 = vmatpush1.msra.mxu0 0.0
        %3773 = vmatprep.subr.mxu0 0.0
        %3774 = vmatpush1.msra.mxu0 0.0
        %3775 = vmatprep.subr.mxu0 0.0
        %3776 = vmatpush1.msra.mxu0 0.0
        %3777 = vmatprep.subr.mxu0 0.0
        %3778 = vmatpush1.msra.mxu0 0.0
        %3779 = vmatprep.subr.mxu0 0.0
        %3780 = vmatpush1.msra.mxu0 0.0
        %3781 = vmatprep.subr.mxu0 0.0
        %3782 = vmatpush1.msra.mxu0 0.0
        %3783 = vmatprep.subr.mxu0 0.0
        %3784 = vmatpush1.msra.mxu0 0.0
        %3785 = vmatprep.subr.mxu0 0.0
        %3786 = vmatpush1.msra.mxu0 0.0
        %3787 = vmatprep.subr.mxu0 0.0
        %3788 = vmatpush1.msra.mxu0 0.0
        %3789 = vmatprep.subr.mxu0 0.0
        %3790 = vmatpush1.msra.mxu0 0.0
        %3791 = vmatprep.subr.mxu0 0.0
        %3792 = vmatpush1.msra.mxu0 0.0
        %3793 = vmatprep.subr.mxu0 0.0
        %3794 = vmatpush1.msra.mxu0 0.0
        %3795 = vmatprep.subr.mxu0 0.0
        %3796 = vmatpush1.msra.mxu0 0.0
        %3797 = vmatprep.subr.mxu0 0.0
        %3798 = vmatpush1.msra.mxu0 0.0
        %3799 = vmatprep.subr.mxu0 0.0
        %3800 = vmatpush1.msra.mxu0 0.0
        %3801 = vmatprep.subr.mxu0 0.0
        %3802 = vmatpush1.msra.mxu0 0.0
        %3803 = vmatprep.subr.mxu0 0.0
        %3804 = vmatpush1.msra.mxu0 0.0
        %3805 = vmatprep.subr.mxu0 0.0
        %3806 = vmatpush1.msra.mxu0 0.0
        %3807 = vmatprep.subr.mxu0 0.0
        %3808 = vmatpush1.msra.mxu0 0.0
        %3809 = vmatprep.subr.mxu0 0.0
        %3810 = vmatpush1.msra.mxu0 0.0
        %3811 = vmatprep.mubr.f32.mxu0 0.0
        %3812 = vmatmul.mubr.f32.gmra.mrb[0].mxu0 %v3647
        %v3813 = vpop.f32.mrb[0].mxu0
        %v3814 = vadd.f32 0.0, %v3813
        %v3815 = vpop.f32.mrb[0].mxu0
        %3816 = vmatprep.mubr.f32.mxu0 0.0
        %3817 = vmatmul.mubr.f32.gmra.mrb[0].mxu0 %v3650
        %v3818 = vpop.f32.mrb[0].mxu0
        %v3819 = vadd.f32 0.0, %v3818
        %v3820 = vpop.f32.mrb[0].mxu0
        %3821 = vmatprep.mubr.f32.mxu0 0.0
        %3822 = vmatmul.mubr.f32.gmra.mrb[0].mxu0 %v3653
        %v3823 = vpop.f32.mrb[0].mxu0
        %v3824 = vadd.f32 0.0, %v3823
        %v3825 = vpop.f32.mrb[0].mxu0
        %3826 = vmatprep.mubr.f32.mxu0 0.0
        %3827 = vmatmul.mubr.f32.gmra.mrb[0].mxu0 %v3656
        %v3828 = vpop.f32.mrb[0].mxu0
        %v3829 = vadd.f32 0.0, %v3828
        %v3830 = vpop.f32.mrb[0].mxu0
        %3831 = vdwg.mxu0
        %v3833 = vsel %vm450, %v3638, 0
        %v3836 = vsel %vm450, %v3639, 0
        %v3839 = vsel %vm450, %v3640, 0
        %v3842 = vsel %vm450, %v3641, 0
        %3844 = vmatprep.subr.mxu0 %v3627
        %3845 = vmatpush1.msra.mxu0 %v3626
        %3846 = vmatprep.subr.mxu0 %v3630
        %3847 = vmatpush1.msra.mxu0 %v3629
        %3848 = vmatprep.subr.mxu0 %v3633
        %3849 = vmatpush1.msra.mxu0 %v3632
        %3850 = vmatprep.subr.mxu0 %v3636
        %3851 = vmatpush1.msra.mxu0 %v3635
        %3852 = vmatprep.subr.mxu0 0.0
        %3853 = vmatpush1.msra.mxu0 0.0
        %3854 = vmatprep.subr.mxu0 0.0
        %3855 = vmatpush1.msra.mxu0 0.0
        %3856 = vmatprep.subr.mxu0 0.0
        %3857 = vmatpush1.msra.mxu0 0.0
        %3858 = vmatprep.subr.mxu0 0.0
        %3859 = vmatpush1.msra.mxu0 0.0
        %3860 = vmatprep.subr.mxu0 0.0
        %3861 = vmatpush1.msra.mxu0 0.0
        %3862 = vmatprep.subr.mxu0 0.0
        %3863 = vmatpush1.msra.mxu0 0.0
        %3864 = vmatprep.subr.mxu0 0.0
        %3865 = vmatpush1.msra.mxu0 0.0
        %3866 = vmatprep.subr.mxu0 0.0
        %3867 = vmatpush1.msra.mxu0 0.0
        %3868 = vmatprep.subr.mxu0 0.0
        %3869 = vmatpush1.msra.mxu0 0.0
        %3870 = vmatprep.subr.mxu0 0.0
        %3871 = vmatpush1.msra.mxu0 0.0
        %3872 = vmatprep.subr.mxu0 0.0
        %3873 = vmatpush1.msra.mxu0 0.0
        %3874 = vmatprep.subr.mxu0 0.0
        %3875 = vmatpush1.msra.mxu0 0.0
        %3876 = vmatprep.subr.mxu0 0.0
        %3877 = vmatpush1.msra.mxu0 0.0
        %3878 = vmatprep.subr.mxu0 0.0
        %3879 = vmatpush1.msra.mxu0 0.0
        %3880 = vmatprep.subr.mxu0 0.0
        %3881 = vmatpush1.msra.mxu0 0.0
        %3882 = vmatprep.subr.mxu0 0.0
        %3883 = vmatpush1.msra.mxu0 0.0
        %3884 = vmatprep.subr.mxu0 0.0
        %3885 = vmatpush1.msra.mxu0 0.0
        %3886 = vmatprep.subr.mxu0 0.0
        %3887 = vmatpush1.msra.mxu0 0.0
        %3888 = vmatprep.subr.mxu0 0.0
        %3889 = vmatpush1.msra.mxu0 0.0
        %3890 = vmatprep.subr.mxu0 0.0
        %3891 = vmatpush1.msra.mxu0 0.0
        %3892 = vmatprep.subr.mxu0 0.0
        %3893 = vmatpush1.msra.mxu0 0.0
        %3894 = vmatprep.subr.mxu0 0.0
        %3895 = vmatpush1.msra.mxu0 0.0
        %3896 = vmatprep.subr.mxu0 0.0
        %3897 = vmatpush1.msra.mxu0 0.0
        %3898 = vmatprep.subr.mxu0 0.0
        %3899 = vmatpush1.msra.mxu0 0.0
        %3900 = vmatprep.subr.mxu0 0.0
        %3901 = vmatpush1.msra.mxu0 0.0
        %3902 = vmatprep.subr.mxu0 0.0
        %3903 = vmatpush1.msra.mxu0 0.0
        %3904 = vmatprep.subr.mxu0 0.0
        %3905 = vmatpush1.msra.mxu0 0.0
        %3906 = vmatprep.subr.mxu0 0.0
        %3907 = vmatpush1.msra.mxu0 0.0
        %3908 = vmatprep.mubr.f32.mxu0 0.0
        %3909 = vmatmul.mubr.f32.gmra.mrb[0].mxu0 %v3833
        %v3910 = vpop.f32.mrb[0].mxu0
        %v3911 = vadd.f32 %v3725, %v3910
        %v3912 = vpop.f32.mrb[0].mxu0
        %v3913 = vadd.f32 %v3727, %v3912
        %3914 = vmatprep.mubr.f32.mxu0 0.0
        %3915 = vmatmul.mubr.f32.gmra.mrb[0].mxu0 %v3836
        %v3916 = vpop.f32.mrb[0].mxu0
        %v3917 = vadd.f32 %v3731, %v3916
        %v3918 = vpop.f32.mrb[0].mxu0
        %v3919 = vadd.f32 %v3733, %v3918
        %3920 = vmatprep.mubr.f32.mxu0 0.0
        %3921 = vmatmul.mubr.f32.gmra.mrb[0].mxu0 %v3839
        %v3922 = vpop.f32.mrb[0].mxu0
        %v3923 = vadd.f32 %v3737, %v3922
        %v3924 = vpop.f32.mrb[0].mxu0
        %v3925 = vadd.f32 %v3739, %v3924
        %3926 = vmatprep.mubr.f32.mxu0 0.0
        %3927 = vmatmul.mubr.f32.gmra.mrb[0].mxu0 %v3842
        %v3928 = vpop.f32.mrb[0].mxu0
        %v3929 = vadd.f32 %v3743, %v3928
        %v3930 = vpop.f32.mrb[0].mxu0
        %v3931 = vadd.f32 %v3745, %v3930
        %3932 = vdwg.mxu0
        %3933 = vmatprep.subr.mxu0 0.0
        %3934 = vmatpush1.msra.mxu0 %v3628
        %3935 = vmatprep.subr.mxu0 0.0
        %3936 = vmatpush1.msra.mxu0 %v3631
        %3937 = vmatprep.subr.mxu0 0.0
        %3938 = vmatpush1.msra.mxu0 %v3634
        %3939 = vmatprep.subr.mxu0 0.0
        %3940 = vmatpush1.msra.mxu0 %v3637
        %3941 = vmatprep.subr.mxu0 0.0
        %3942 = vmatpush1.msra.mxu0 0.0
        %3943 = vmatprep.subr.mxu0 0.0
        %3944 = vmatpush1.msra.mxu0 0.0
        %3945 = vmatprep.subr.mxu0 0.0
        %3946 = vmatpush1.msra.mxu0 0.0
        %3947 = vmatprep.subr.mxu0 0.0
        %3948 = vmatpush1.msra.mxu0 0.0
        %3949 = vmatprep.subr.mxu0 0.0
        %3950 = vmatpush1.msra.mxu0 0.0
        %3951 = vmatprep.subr.mxu0 0.0
        %3952 = vmatpush1.msra.mxu0 0.0
        %3953 = vmatprep.subr.mxu0 0.0
        %3954 = vmatpush1.msra.mxu0 0.0
        %3955 = vmatprep.subr.mxu0 0.0
        %3956 = vmatpush1.msra.mxu0 0.0
        %3957 = vmatprep.subr.mxu0 0.0
        %3958 = vmatpush1.msra.mxu0 0.0
        %3959 = vmatprep.subr.mxu0 0.0
        %3960 = vmatpush1.msra.mxu0 0.0
        %3961 = vmatprep.subr.mxu0 0.0
        %3962 = vmatpush1.msra.mxu0 0.0
        %3963 = vmatprep.subr.mxu0 0.0
        %3964 = vmatpush1.msra.mxu0 0.0
        %3965 = vmatprep.subr.mxu0 0.0
        %3966 = vmatpush1.msra.mxu0 0.0
        %3967 = vmatprep.subr.mxu0 0.0
        %3968 = vmatpush1.msra.mxu0 0.0
        %3969 = vmatprep.subr.mxu0 0.0
        %3970 = vmatpush1.msra.mxu0 0.0
        %3971 = vmatprep.subr.mxu0 0.0
        %3972 = vmatpush1.msra.mxu0 0.0
        %3973 = vmatprep.subr.mxu0 0.0
        %3974 = vmatpush1.msra.mxu0 0.0
        %3975 = vmatprep.subr.mxu0 0.0
        %3976 = vmatpush1.msra.mxu0 0.0
        %3977 = vmatprep.subr.mxu0 0.0
        %3978 = vmatpush1.msra.mxu0 0.0
        %3979 = vmatprep.subr.mxu0 0.0
        %3980 = vmatpush1.msra.mxu0 0.0
        %3981 = vmatprep.subr.mxu0 0.0
        %3982 = vmatpush1.msra.mxu0 0.0
        %3983 = vmatprep.subr.mxu0 0.0
        %3984 = vmatpush1.msra.mxu0 0.0
        %3985 = vmatprep.subr.mxu0 0.0
        %3986 = vmatpush1.msra.mxu0 0.0
        %3987 = vmatprep.subr.mxu0 0.0
        %3988 = vmatpush1.msra.mxu0 0.0
        %3989 = vmatprep.subr.mxu0 0.0
        %3990 = vmatpush1.msra.mxu0 0.0
        %3991 = vmatprep.subr.mxu0 0.0
        %3992 = vmatpush1.msra.mxu0 0.0
        %3993 = vmatprep.subr.mxu0 0.0
        %3994 = vmatpush1.msra.mxu0 0.0
        %3995 = vmatprep.subr.mxu0 0.0
        %3996 = vmatpush1.msra.mxu0 0.0
        %3997 = vmatprep.mubr.f32.mxu0 0.0
        %3998 = vmatmul.mubr.f32.gmra.mrb[0].mxu0 %v3833
        %v3999 = vpop.f32.mrb[0].mxu0
        %v4000 = vadd.f32 %v3814, %v3999
        %v4001 = vpop.f32.mrb[0].mxu0
        %4002 = vmatprep.mubr.f32.mxu0 0.0
        %4003 = vmatmul.mubr.f32.gmra.mrb[0].mxu0 %v3836
        %v4004 = vpop.f32.mrb[0].mxu0
        %v4005 = vadd.f32 %v3819, %v4004
        %v4006 = vpop.f32.mrb[0].mxu0
        %4007 = vmatprep.mubr.f32.mxu0 0.0
        %4008 = vmatmul.mubr.f32.gmra.mrb[0].mxu0 %v3839
        %v4009 = vpop.f32.mrb[0].mxu0
        %v4010 = vadd.f32 %v3824, %v4009
        %v4011 = vpop.f32.mrb[0].mxu0
        %4012 = vmatprep.mubr.f32.mxu0 0.0
        %4013 = vmatmul.mubr.f32.gmra.mrb[0].mxu0 %v3842
        %v4014 = vpop.f32.mrb[0].mxu0
        %v4015 = vadd.f32 %v3829, %v4014
        %v4016 = vpop.f32.mrb[0].mxu0
        %4017 = vdwg.mxu0
        %v4018 = vtanh.pop %v3911
        %v4019 = vtanh.pop %v3913
        %v4020 = vtanh.pop %v4000
        %v4021 = vtanh.pop %v3917
        %v4022 = vtanh.pop %v3919
        %v4023 = vtanh.pop %v4005
        %v4024 = vtanh.pop %v3923
        %v4025 = vtanh.pop %v3925
        %v4026 = vtanh.pop %v4010
        %v4027 = vtanh.pop %v3929
        %v4028 = vtanh.pop %v3931
        %v4029 = vtanh.pop %v4015
        %4030 = vst [vmem:[%s421] sm:$0xff] %v4018
        %4031 = vst [vmem:[%s421 + $0x8] sm:$0xff] %v4019
        %4032 = vst [vmem:[%s421 + $0x10] sm:$0xff] %v4020
        %4033 = vst [vmem:[%s421 + $0x18] sm:$0xff] %v4021
        %4034 = vst [vmem:[%s421 + $0x20] sm:$0xff] %v4022
        %4035 = vst [vmem:[%s421 + $0x28] sm:$0xff] %v4023
        %4036 = vst [vmem:[%s421 + $0x30] sm:$0xff] %v4024
        %4037 = vst [vmem:[%s421 + $0x38] sm:$0xff] %v4025
        %4038 = vst [vmem:[%s421 + $0x40] sm:$0xff] %v4026
        %4039 = vst [vmem:[%s421 + $0x48] sm:$0xff] %v4027
        %4040 = vst [vmem:[%s421 + $0x50] sm:$0xff] %v4028
        %4041 = vst [vmem:[%s421 + $0x58] sm:$0xff] %v4029
        %s4042 = sand.u32 %s184, 1
        %s4043 = scalar_lea.sflag [#allocation5], %s4042
        %s4044 = sand.u32 %s184, 1
        %s4045 = smul.addr %s4044, 96
        %s4046 = scalar_lea.vmem [#allocation14], %s4045
        %s4047 = sand.u32 %s210, 1
        %s4048 = scalar_lea.sflag [#allocation16], %s4047
        %s4049 = sand.u32 %s210, 1
        %s4050 = smul.addr %s4049, 48
        %s4051 = scalar_lea.vmem [#allocation15], %s4050
        // Predicated region
        $region69: #{tpu_custom_call.1} parent=43 // pred_check
          %p4052 = pneg %p194
        $region70: #{tpu_custom_call.1} parent=43 // pred_check_branch
          %4054 = sbr.rel (%p4052) target = $region72
        $region71: #{tpu_custom_call.1} parent=43 // pred_region
          %s4055 = smul.u32 3, %s35
          %s4057 = ssub.s32 1536, 1536
          %4058 = vsyncadd %s4043, %s4057
          %s4059 = smul.addr %s4055, 128
          %s4060 = scalar_lea.hbm %s6, %s4059
          %s4061 = sshll.u32 %s4046, 4
          %s4062 = int_to_ptr.vmem [resolvable:$true] %s4061
          %4067 = dma.vmem_to_hbm [thread:$0]  %s4062, 1536, %s4060, %s4043, 384, 1152, 24
        $region72: #{tpu_custom_call.1} parent=43 // pred_fallthru
          _
        // Predicated region
        $region73: #{tpu_custom_call.1} parent=43 // pred_check
          %p4068 = pneg %p220
        $region74: #{tpu_custom_call.1} parent=43 // pred_check_branch
          %4070 = sbr.rel (%p4068) target = $region76
        $region75: #{tpu_custom_call.1} parent=43 // pred_region
          %s4071 = smul.u32 3, %s35
          %s4073 = ssub.s32 768, 768
          %4074 = vsyncadd %s4048, %s4073
          %s4075 = smul.addr %s4071, 128
          %s4076 = scalar_lea.hbm %s7, %s4075
          %s4077 = sshll.u32 %s4051, 4
          %s4078 = int_to_ptr.vmem [resolvable:$true] %s4077
          %4083 = dma.vmem_to_hbm [thread:$0]  %s4078, 768, %s4076, %s4048, 384, 1152, 24
        $region76: #{tpu_custom_call.1} parent=43 // pred_fallthru
          _
      $region44: #{tpu_custom_call.1} parent=5 // pred_fallthru
        _
      %p4084 = scmp.le.s32.totalorder 2, %s30
      // Predicated region
      $region77: #{tpu_custom_call.1} parent=5 // pred_check
        %p4085 = pneg %p4084
      $region78: #{tpu_custom_call.1} parent=5 // pred_check_branch
        %4087 = sbr.rel (%p4085) target = $region80
      $region79: #{tpu_custom_call.1} parent=5 // pred_region
        %s4088 = ssub.s32 %s30, 2
        // Predicated region
        $region81: #{tpu_custom_call.1} parent=79 // pred_check
          %p4089 = pneg %p200
        $region82: #{tpu_custom_call.1} parent=79 // pred_check_branch
          %4091 = sbr.rel (%p4089) target = $region84
        $region83: #{tpu_custom_call.1} parent=79 // pred_region
          %s4092 = sand.u32 %s185, 1
          %s4093 = scalar_lea.sflag [#allocation5], %s4092
          %s4094 = sand.u32 %s185, 1
          %s4095 = smul.addr %s4094, 96
          %s4096 = scalar_lea.vmem [#allocation14], %s4095
          %4097 = dma.done %s4093, 1536
        $region84: #{tpu_custom_call.1} parent=79 // pred_fallthru
          _
        // Predicated region
        $region85: #{tpu_custom_call.1} parent=79 // pred_check
          %p4098 = pneg %p226
        $region86: #{tpu_custom_call.1} parent=79 // pred_check_branch
          %4100 = sbr.rel (%p4098) target = $region88
        $region87: #{tpu_custom_call.1} parent=79 // pred_region
          %s4101 = sand.u32 %s211, 1
          %s4102 = scalar_lea.sflag [#allocation16], %s4101
          %s4103 = sand.u32 %s211, 1
          %s4104 = smul.addr %s4103, 48
          %s4105 = scalar_lea.vmem [#allocation15], %s4104
          %4106 = dma.done %s4102, 768
        $region88: #{tpu_custom_call.1} parent=79 // pred_fallthru
          _
      $region80: #{tpu_custom_call.1} parent=5 // pred_fallthru
        _
    $region6: #{tpu_custom_call.1} parent=1 // loop_footer
      %s34 = sadd.s32 1, %s30
    $region7: #{tpu_custom_call.1} parent=1 // loop_footer_branch
      %29 = sbr.rel target = $region3
    $region8: #{tpu_custom_call.1} parent=1 // loop_exit
      _
    %4107 = vsyncpa [#allocation4], 1
    %s4108 = scalar_lea.sflag [#allocation4], 1
    %4109 = vsyncpa %s4108, 1
    %4110 = vsyncpa [#allocation7], 1
    %s4111 = scalar_lea.sflag [#allocation7], 1
    %4112 = vsyncpa %s4111, 1
    %4113 = vsyncpa [#allocation10], 1
    %4114 = vsyncpa [#allocation13], 1
    %s4115 = scalar_lea.sflag [#allocation13], 1
    %4116 = vsyncpa %s4115, 1
    %4117 = vsyncpa [#allocation5], 1
    %s4118 = scalar_lea.sflag [#allocation5], 1
    %4119 = vsyncpa %s4118, 1
    %4120 = vsyncpa [#allocation16], 1
    %s4121 = scalar_lea.sflag [#allocation16], 1
    %4122 = vsyncpa %s4121, 1

</llo_original>
